<compile_context>
chip_gen: v5e
topology: v5e:2x2
jax: 0.10.0
libtpu: 0.0.40
codegen_flags: <defaults>
</compile_context>

<pallas_src>
import jax
import jax.numpy as jnp
from jax.experimental import pallas as pl
from jax.experimental.pallas import tpu as pltpu  # noqa: F401  (TPU backend)

LANES = 128        # lane width / padded output-channel count
C1_IN_PAD = 8      # conv1 input channels 2  -> 8   (K = 25*8  = 200, mult of 8)
C2_IN_PAD = 24     # conv2 input channels 20 -> 24  (K = 25*24 = 600, mult of 8)
FC1_OUT_PAD = 512  # fc1 outputs 500 -> 512
FC2_OUT_PAD = LANES


# ----------------------------------------------------------------------------
# Pallas kernels
# ----------------------------------------------------------------------------
def _conv_relu_pool_kernel(p_ref, w_ref, b_ref, o_ref):
    """Fused conv-as-GEMM + bias + ReLU + 2x2 max-pool.

    p_ref : (4, M, K) f32  im2col patches; axis 0 enumerates the 4 positions of
                           the 2x2 pooling window that share output row m.
    w_ref : (K, N)  bf16   conv weight, K ordered (kh, kw, c), N padded to 128.
    b_ref : (1, N)  f32
    o_ref : (M, N)  f32    pooled activations, M = B*POH*POW (lane-dense N).

    relu(max_i(z_i) + b) == max_i(relu(z_i + b)), so pooling before the bias/ReLU
    epilogue is exact.
    """
    w = w_ref[...]
    z = jnp.dot(p_ref[0].astype(jnp.bfloat16), w, preferred_element_type=jnp.float32)
    for i in range(1, 4):                      # static unroll: 4 MXU GEMMs + VPU max
        zi = jnp.dot(p_ref[i].astype(jnp.bfloat16), w, preferred_element_type=jnp.float32)
        z = jnp.maximum(z, zi)
    o_ref[...] = jnp.maximum(z + b_ref[...], 0.0)


def _mlp_kernel(x_ref, w1_ref, b1_ref, w2_ref, b2_ref, o_ref):
    """Fused fc1 + bias + ReLU + fc2 + bias.  f32 epilogues, bf16 MXU inputs."""
    h = jnp.dot(x_ref[...].astype(jnp.bfloat16), w1_ref[...],
                preferred_element_type=jnp.float32)
    h = jnp.maximum(h + b1_ref[...], 0.0)
    o = jnp.dot(h.astype(jnp.bfloat16), w2_ref[...],
                preferred_element_type=jnp.float32)
    o_ref[...] = o + b2_ref[...]


# ----------------------------------------------------------------------------
# pallas_call wrappers (single block, everything fits VMEM at this size)
# ----------------------------------------------------------------------------
def conv_relu_pool(patches, w, b):
    _, M, K = patches.shape
    Kw, N = w.shape
    assert K == Kw
    return pl.pallas_call(
        _conv_relu_pool_kernel,
        out_shape=jax.ShapeDtypeStruct((M, N), jnp.float32),
        in_specs=[
            pl.BlockSpec((4, M, K), lambda: (0, 0, 0)),
            pl.BlockSpec((K, N), lambda: (0, 0)),
            pl.BlockSpec((1, N), lambda: (0, 0)),
        ],
        out_specs=pl.BlockSpec((M, N), lambda: (0, 0)),
    )(patches, w, b)


def mlp(x, w1, b1, w2, b2):
    B, K1 = x.shape
    _, H = w1.shape
    _, N = w2.shape
    return pl.pallas_call(
        _mlp_kernel,
        out_shape=jax.ShapeDtypeStruct((B, N), jnp.float32),
        in_specs=[
            pl.BlockSpec((B, K1), lambda: (0, 0)),
            pl.BlockSpec((K1, H), lambda: (0, 0)),
            pl.BlockSpec((1, H), lambda: (0, 0)),
            pl.BlockSpec((H, N), lambda: (0, 0)),
            pl.BlockSpec((1, N), lambda: (0, 0)),
        ],
        out_specs=pl.BlockSpec((B, N), lambda: (0, 0)),
    )(x, w1, b1, w2, b2)


# ----------------------------------------------------------------------------
# Thin XLA glue: channels-last im2col split into the 4 pooling phases.
# Only layout-preserving slices / last-dim concat / leading-dim reshape — no
# transposes, no channel shuffles.
# ----------------------------------------------------------------------------
def _pooled_patches(x, KH, KW):
    """x: (B, H, W, C) NHWC -> (4, B*POH*POW, KH*KW*C), K ordered (kh, kw, c)."""
    B, H, W, C = x.shape
    OH, OW = H - KH + 1, W - KW + 1
    POH, POW = OH // 2, OW // 2
    cols = [x[:, kh:kh + OH, kw:kw + OW, :] for kh in range(KH) for kw in range(KW)]
    p = jnp.concatenate(cols, axis=-1)                       # (B, OH, OW, KH*KW*C)
    slabs = [p[:, dh::2, dw::2, :] for dh in range(2) for dw in range(2)]
    p4 = jnp.stack(slabs, axis=0)                            # (4, B, POH, POW, K)
    return p4.reshape(4, B * POH * POW, KH * KW * C), POH, POW


# ----------------------------------------------------------------------------
# Parameters: torch-layout f32 init, then a one-time repack into kernel layouts
# ----------------------------------------------------------------------------
def init_params(key):
    def u(k, shape, fan_in):
        bound = 1.0 / jnp.sqrt(jnp.float32(fan_in))
        return jax.random.uniform(k, shape, jnp.float32, -bound, bound)

    ks = jax.random.split(key, 8)
    return {
        "conv1_w": u(ks[0], (20, 2, 5, 5), 2 * 5 * 5),
        "conv1_b": u(ks[1], (20,), 2 * 5 * 5),
        "conv2_w": u(ks[2], (50, 20, 5, 5), 20 * 5 * 5),
        "conv2_b": u(ks[3], (50,), 20 * 5 * 5),
        "fc1_w": u(ks[4], (500, 4 * 4 * 50), 4 * 4 * 50),    # (out, in), torch layout
        "fc1_b": u(ks[5], (500,), 4 * 4 * 50),
        "fc2_w": u(ks[6], (2, 500), 500),
        "fc2_b": u(ks[7], (2,), 500),
    }


def pack_params(p):
    """One-time repack: (K, N) bf16 GEMM weights with N padded to 128 and K
    padded to sublane multiples; f32 (1, N) biases.  No per-forward transposes."""
    def conv_pack(w, cin_pad):
        oc, ic, kh, kw = w.shape
        wk = jnp.zeros((kh, kw, cin_pad, LANES), jnp.float32)
        wk = wk.at[:, :, :ic, :oc].set(jnp.transpose(w, (2, 3, 1, 0)))   # (kh,kw,c,oc)
        return wk.reshape(kh * kw * cin_pad, LANES).astype(jnp.bfloat16)

    def bias_pack(b, n):
        return jnp.zeros((1, n), jnp.float32).at[0, :b.shape[0]].set(b)

    # fc1: torch flatten index = c*16 + h*4 + w  ->  NHWC flatten index = h*512 + w*128 + c
    w1 = p["fc1_w"].reshape(500, 50, 4, 4).transpose(2, 3, 1, 0)          # (h, w, c, out)
    w1p = jnp.zeros((4, 4, LANES, FC1_OUT_PAD), jnp.float32)
    w1p = w1p.at[:, :, :50, :500].set(w1)
    w1p = w1p.reshape(4 * 4 * LANES, FC1_OUT_PAD).astype(jnp.bfloat16)

    w2p = jnp.zeros((FC1_OUT_PAD, FC2_OUT_PAD), jnp.float32)
    w2p = w2p.at[:500, :2].set(p["fc2_w"].T).astype(jnp.bfloat16)

    return {
        "conv1_w": conv_pack(p["conv1_w"], C1_IN_PAD),
        "conv1_b": bias_pack(p["conv1_b"], LANES),
        "conv2_w": conv_pack(p["conv2_w"], C2_IN_PAD),
        "conv2_b": bias_pack(p["conv2_b"], LANES),
        "fc1_w": w1p,
        "fc1_b": bias_pack(p["fc1_b"], FC1_OUT_PAD),
        "fc2_w": w2p,
        "fc2_b": bias_pack(p["fc2_b"], FC2_OUT_PAD),
    }


# ----------------------------------------------------------------------------
# Forward pass (semantics of LeNet.forward; x is NCHW like PyTorch)
# ----------------------------------------------------------------------------
@jax.jit
def lenet_forward(packed, x):
    B = x.shape[0]
    # single entry transpose to channels-last + zero-pad channels 2 -> 8
    xh = jnp.transpose(x, (0, 2, 3, 1))
    xh = jnp.pad(xh, ((0, 0), (0, 0), (0, 0), (0, C1_IN_PAD - xh.shape[-1])))

    # stage 1: conv1 + ReLU + 2x2 max-pool (one pallas_call)
    p1, poh1, pow1 = _pooled_patches(xh, 5, 5)                       # (4, B*144, 200)
    a1 = conv_relu_pool(p1, packed["conv1_w"], packed["conv1_b"])    # (B*144, 128)
    a1 = a1.reshape(B, poh1, pow1, LANES)[..., :C2_IN_PAD]           # (B,12,12,24); ch 20..23 == 0

    # stage 2: conv2 + ReLU + 2x2 max-pool (one pallas_call)
    p2, poh2, pow2 = _pooled_patches(a1, 5, 5)                       # (4, B*16, 600)
    a2 = conv_relu_pool(p2, packed["conv2_w"], packed["conv2_b"])    # (B*16, 128)

    # stage 3: flatten (row-major (h, w, c_pad)) + fc1 + ReLU + fc2 (one pallas_call)
    flat = a2.reshape(B, poh2 * pow2 * LANES)                        # (B, 2048)
    out = mlp(flat, packed["fc1_w"], packed["fc1_b"],
              packed["fc2_w"], packed["fc2_b"])                      # (B, 128)
    return out[:, :2]


# ----------------------------------------------------------------------------
# Pure-JAX f32 reference (torch semantics) for an in-script sanity check
# ----------------------------------------------------------------------------
def _reference_forward(params, x):
    def conv(h, w, b):
        y = jax.lax.conv_general_dilated(
            h, w, window_strides=(1, 1), padding="VALID",
            dimension_numbers=("NCHW", "OIHW", "NCHW"))
        return y + b[None, :, None, None]

    def pool(h):
        return jax.lax.reduce_window(h, -jnp.inf, jax.lax.max,
                                     (1, 1, 2, 2), (1, 1, 2, 2), "VALID")

    h = pool(jax.nn.relu(conv(x, params["conv1_w"], params["conv1_b"])))
    h = pool(jax.nn.relu(conv(h, params["conv2_w"], params["conv2_b"])))
    h = h.reshape(h.shape[0], -1)                                    # NCHW flatten (c, h, w)
    h = jax.nn.relu(h @ params["fc1_w"].T + params["fc1_b"])
    return h @ params["fc2_w"].T + params["fc2_b"]


if __name__ == "__main__":
    key = jax.random.PRNGKey(0)
    k_x, k_p = jax.random.split(key)
    # Input implied by the module: 2 channels, 28x28 spatial (-> 4*4*50 flatten).
    x = jax.random.normal(k_x, (2, 2, 28, 28), jnp.float32)
    params = init_params(k_p)
    packed = pack_params(params)

    out = lenet_forward(packed, x)
    out = jax.block_until_ready(out)
    assert out.shape == (2, 2) and out.dtype == jnp.float32

    # loose tolerance: kernel path uses bf16 MXU operands, reference is f32
    ref = _reference_forward(params, x)
    assert jnp.allclose(out, ref, rtol=5e-2, atol=2e-2), (out, ref)

    print("KERNEL_OK")
</pallas_src>

<mosaic_0001>
module attributes {stable_mosaic.version = 11 : i64} {
  func.func @_conv_relu_pool_kernel(%arg0: memref<4x288x200xf32, #tpu.memory_space<vmem>>, %arg1: memref<200x128xbf16, #tpu.memory_space<vmem>>, %arg2: memref<1x128xf32, #tpu.memory_space<vmem>>, %arg3: memref<288x128xf32, #tpu.memory_space<vmem>>) attributes {dimension_semantics = [], scalar_prefetch = 0 : i64, scratch_operands = 0 : i64, tpu.core_type = #tpu.core_type<tc>} {
    %c0 = arith.constant 0 : index
    %c0_0 = arith.constant 0 : index
    %0 = vector.load %arg1[%c0, %c0_0] : memref<200x128xbf16, #tpu.memory_space<vmem>>, vector<200x128xbf16>
    %c0_1 = arith.constant 0 : index
    %c0_2 = arith.constant 0 : index
    %c0_3 = arith.constant 0 : index
    %1 = vector.load %arg0[%c0_1, %c0_2, %c0_3] : memref<4x288x200xf32, #tpu.memory_space<vmem>>, vector<1x288x200xf32>
    %2 = vector.shape_cast %1 : vector<1x288x200xf32> to vector<288x200xf32>
    %3 = arith.truncf %2 : vector<288x200xf32> to vector<288x200xbf16>
    %cst = arith.constant dense<0.000000e+00> : vector<288x128xf32>
    %4 = tpu.matmul %3, %0, %cst {dimension_numbers = #tpu.dot_dimension_numbers<[1], [0], [0], [1], [0, 0, 1, 1], [], []>} : vector<288x200xbf16>, vector<200x128xbf16>, vector<288x128xf32> -> vector<288x128xf32>
    %c1 = arith.constant 1 : index
    %c0_4 = arith.constant 0 : index
    %c0_5 = arith.constant 0 : index
    %5 = vector.load %arg0[%c1, %c0_4, %c0_5] : memref<4x288x200xf32, #tpu.memory_space<vmem>>, vector<1x288x200xf32>
    %6 = vector.shape_cast %5 : vector<1x288x200xf32> to vector<288x200xf32>
    %7 = arith.truncf %6 : vector<288x200xf32> to vector<288x200xbf16>
    %cst_6 = arith.constant dense<0.000000e+00> : vector<288x128xf32>
    %8 = tpu.matmul %7, %0, %cst_6 {dimension_numbers = #tpu.dot_dimension_numbers<[1], [0], [0], [1], [0, 0, 1, 1], [], []>} : vector<288x200xbf16>, vector<200x128xbf16>, vector<288x128xf32> -> vector<288x128xf32>
    %9 = arith.maximumf %4, %8 : vector<288x128xf32>
    %c2 = arith.constant 2 : index
    %c0_7 = arith.constant 0 : index
    %c0_8 = arith.constant 0 : index
    %10 = vector.load %arg0[%c2, %c0_7, %c0_8] : memref<4x288x200xf32, #tpu.memory_space<vmem>>, vector<1x288x200xf32>
    %11 = vector.shape_cast %10 : vector<1x288x200xf32> to vector<288x200xf32>
    %12 = arith.truncf %11 : vector<288x200xf32> to vector<288x200xbf16>
    %cst_9 = arith.constant dense<0.000000e+00> : vector<288x128xf32>
    %13 = tpu.matmul %12, %0, %cst_9 {dimension_numbers = #tpu.dot_dimension_numbers<[1], [0], [0], [1], [0, 0, 1, 1], [], []>} : vector<288x200xbf16>, vector<200x128xbf16>, vector<288x128xf32> -> vector<288x128xf32>
    %14 = arith.maximumf %9, %13 : vector<288x128xf32>
    %c3 = arith.constant 3 : index
    %c0_10 = arith.constant 0 : index
    %c0_11 = arith.constant 0 : index
    %15 = vector.load %arg0[%c3, %c0_10, %c0_11] : memref<4x288x200xf32, #tpu.memory_space<vmem>>, vector<1x288x200xf32>
    %16 = vector.shape_cast %15 : vector<1x288x200xf32> to vector<288x200xf32>
    %17 = arith.truncf %16 : vector<288x200xf32> to vector<288x200xbf16>
    %cst_12 = arith.constant dense<0.000000e+00> : vector<288x128xf32>
    %18 = tpu.matmul %17, %0, %cst_12 {dimension_numbers = #tpu.dot_dimension_numbers<[1], [0], [0], [1], [0, 0, 1, 1], [], []>} : vector<288x200xbf16>, vector<200x128xbf16>, vector<288x128xf32> -> vector<288x128xf32>
    %19 = arith.maximumf %14, %18 : vector<288x128xf32>
    %c0_13 = arith.constant 0 : index
    %c0_14 = arith.constant 0 : index
    %20 = vector.load %arg2[%c0_13, %c0_14] : memref<1x128xf32, #tpu.memory_space<vmem>>, vector<1x128xf32>
    %21 = vector.broadcast %20 : vector<1x128xf32> to vector<288x128xf32>
    %22 = arith.addf %19, %21 : vector<288x128xf32>
    %cst_15 = arith.constant 0.000000e+00 : f32
    %23 = vector.broadcast %cst_15 : f32 to vector<288x128xf32>
    %24 = arith.maximumf %22, %23 : vector<288x128xf32>
    %c0_16 = arith.constant 0 : index
    %c0_17 = arith.constant 0 : index
    %25 = vector.load %arg3[%c0_16, %c0_17] : memref<288x128xf32, #tpu.memory_space<vmem>>, vector<288x128xf32>
    tpu.vector_store %arg3[%c0_16, %c0_17], %24 {strides = array<i32>} : memref<288x128xf32, #tpu.memory_space<vmem>>, vector<288x128xf32>,
    return
  }
}

module attributes {stable_mosaic.version = 11 : i64} {
  func.func @_mlp_kernel(%arg0: memref<2x2048xf32, #tpu.memory_space<vmem>>, %arg1: memref<2048x512xbf16, #tpu.memory_space<vmem>>, %arg2: memref<1x512xf32, #tpu.memory_space<vmem>>, %arg3: memref<512x128xbf16, #tpu.memory_space<vmem>>, %arg4: memref<1x128xf32, #tpu.memory_space<vmem>>, %arg5: memref<2x128xf32, #tpu.memory_space<vmem>>) attributes {dimension_semantics = [], scalar_prefetch = 0 : i64, scratch_operands = 0 : i64, tpu.core_type = #tpu.core_type<tc>} {
    %c0 = arith.constant 0 : index
    %c0_0 = arith.constant 0 : index
    %0 = vector.load %arg0[%c0, %c0_0] : memref<2x2048xf32, #tpu.memory_space<vmem>>, vector<2x2048xf32>
    %1 = arith.truncf %0 : vector<2x2048xf32> to vector<2x2048xbf16>
    %c0_1 = arith.constant 0 : index
    %c0_2 = arith.constant 0 : index
    %2 = vector.load %arg1[%c0_1, %c0_2] : memref<2048x512xbf16, #tpu.memory_space<vmem>>, vector<2048x512xbf16>
    %cst = arith.constant dense<0.000000e+00> : vector<2x512xf32>
    %3 = tpu.matmul %1, %2, %cst {dimension_numbers = #tpu.dot_dimension_numbers<[1], [0], [0], [1], [0, 0, 1, 1], [], []>} : vector<2x2048xbf16>, vector<2048x512xbf16>, vector<2x512xf32> -> vector<2x512xf32>
    %c0_3 = arith.constant 0 : index
    %c0_4 = arith.constant 0 : index
    %4 = vector.load %arg2[%c0_3, %c0_4] : memref<1x512xf32, #tpu.memory_space<vmem>>, vector<1x512xf32>
    %5 = vector.broadcast %4 : vector<1x512xf32> to vector<2x512xf32>
    %6 = arith.addf %3, %5 : vector<2x512xf32>
    %cst_5 = arith.constant 0.000000e+00 : f32
    %7 = vector.broadcast %cst_5 : f32 to vector<2x512xf32>
    %8 = arith.maximumf %6, %7 : vector<2x512xf32>
    %9 = arith.truncf %8 : vector<2x512xf32> to vector<2x512xbf16>
    %c0_6 = arith.constant 0 : index
    %c0_7 = arith.constant 0 : index
    %10 = vector.load %arg3[%c0_6, %c0_7] : memref<512x128xbf16, #tpu.memory_space<vmem>>, vector<512x128xbf16>
    %cst_8 = arith.constant dense<0.000000e+00> : vector<2x128xf32>
    %11 = tpu.matmul %9, %10, %cst_8 {dimension_numbers = #tpu.dot_dimension_numbers<[1], [0], [0], [1], [0, 0, 1, 1], [], []>} : vector<2x512xbf16>, vector<512x128xbf16>, vector<2x128xf32> -> vector<2x128xf32>
    %c0_9 = arith.constant 0 : index
    %c0_10 = arith.constant 0 : index
    %12 = vector.load %arg4[%c0_9, %c0_10] : memref<1x128xf32, #tpu.memory_space<vmem>>, vector<1x128xf32>
    %13 = vector.broadcast %12 : vector<1x128xf32> to vector<2x128xf32>
    %14 = arith.addf %11, %13 : vector<2x128xf32>
    %c0_11 = arith.constant 0 : index
    %c0_12 = arith.constant 0 : index
    %15 = vector.load %arg5[%c0_11, %c0_12] : memref<2x128xf32, #tpu.memory_space<vmem>>, vector<2x128xf32>
    tpu.vector_store %arg5[%c0_11, %c0_12], %14 {strides = array<i32>} : memref<2x128xf32, #tpu.memory_space<vmem>>, vector<2x128xf32>,
    return
  }
}

module attributes {stable_mosaic.version = 11 : i64} {
  func.func @_conv_relu_pool_kernel(%arg0: memref<4x32x600xf32, #tpu.memory_space<vmem>>, %arg1: memref<600x128xbf16, #tpu.memory_space<vmem>>, %arg2: memref<1x128xf32, #tpu.memory_space<vmem>>, %arg3: memref<32x128xf32, #tpu.memory_space<vmem>>) attributes {dimension_semantics = [], scalar_prefetch = 0 : i64, scratch_operands = 0 : i64, tpu.core_type = #tpu.core_type<tc>} {
    %c0 = arith.constant 0 : index
    %c0_0 = arith.constant 0 : index
    %0 = vector.load %arg1[%c0, %c0_0] : memref<600x128xbf16, #tpu.memory_space<vmem>>, vector<600x128xbf16>
    %c0_1 = arith.constant 0 : index
    %c0_2 = arith.constant 0 : index
    %c0_3 = arith.constant 0 : index
    %1 = vector.load %arg0[%c0_1, %c0_2, %c0_3] : memref<4x32x600xf32, #tpu.memory_space<vmem>>, vector<1x32x600xf32>
    %2 = vector.shape_cast %1 : vector<1x32x600xf32> to vector<32x600xf32>
    %3 = arith.truncf %2 : vector<32x600xf32> to vector<32x600xbf16>
    %cst = arith.constant dense<0.000000e+00> : vector<32x128xf32>
    %4 = tpu.matmul %3, %0, %cst {dimension_numbers = #tpu.dot_dimension_numbers<[1], [0], [0], [1], [0, 0, 1, 1], [], []>} : vector<32x600xbf16>, vector<600x128xbf16>, vector<32x128xf32> -> vector<32x128xf32>
    %c1 = arith.constant 1 : index
    %c0_4 = arith.constant 0 : index
    %c0_5 = arith.constant 0 : index
    %5 = vector.load %arg0[%c1, %c0_4, %c0_5] : memref<4x32x600xf32, #tpu.memory_space<vmem>>, vector<1x32x600xf32>
    %6 = vector.shape_cast %5 : vector<1x32x600xf32> to vector<32x600xf32>
    %7 = arith.truncf %6 : vector<32x600xf32> to vector<32x600xbf16>
    %cst_6 = arith.constant dense<0.000000e+00> : vector<32x128xf32>
    %8 = tpu.matmul %7, %0, %cst_6 {dimension_numbers = #tpu.dot_dimension_numbers<[1], [0], [0], [1], [0, 0, 1, 1], [], []>} : vector<32x600xbf16>, vector<600x128xbf16>, vector<32x128xf32> -> vector<32x128xf32>
    %9 = arith.maximumf %4, %8 : vector<32x128xf32>
    %c2 = arith.constant 2 : index
    %c0_7 = arith.constant 0 : index
    %c0_8 = arith.constant 0 : index
    %10 = vector.load %arg0[%c2, %c0_7, %c0_8] : memref<4x32x600xf32, #tpu.memory_space<vmem>>, vector<1x32x600xf32>
    %11 = vector.shape_cast %10 : vector<1x32x600xf32> to vector<32x600xf32>
    %12 = arith.truncf %11 : vector<32x600xf32> to vector<32x600xbf16>
    %cst_9 = arith.constant dense<0.000000e+00> : vector<32x128xf32>
    %13 = tpu.matmul %12, %0, %cst_9 {dimension_numbers = #tpu.dot_dimension_numbers<[1], [0], [0], [1], [0, 0, 1, 1], [], []>} : vector<32x600xbf16>, vector<600x128xbf16>, vector<32x128xf32> -> vector<32x128xf32>
    %14 = arith.maximumf %9, %13 : vector<32x128xf32>
    %c3 = arith.constant 3 : index
    %c0_10 = arith.constant 0 : index
    %c0_11 = arith.constant 0 : index
    %15 = vector.load %arg0[%c3, %c0_10, %c0_11] : memref<4x32x600xf32, #tpu.memory_space<vmem>>, vector<1x32x600xf32>
    %16 = vector.shape_cast %15 : vector<1x32x600xf32> to vector<32x600xf32>
    %17 = arith.truncf %16 : vector<32x600xf32> to vector<32x600xbf16>
    %cst_12 = arith.constant dense<0.000000e+00> : vector<32x128xf32>
    %18 = tpu.matmul %17, %0, %cst_12 {dimension_numbers = #tpu.dot_dimension_numbers<[1], [0], [0], [1], [0, 0, 1, 1], [], []>} : vector<32x600xbf16>, vector<600x128xbf16>, vector<32x128xf32> -> vector<32x128xf32>
    %19 = arith.maximumf %14, %18 : vector<32x128xf32>
    %c0_13 = arith.constant 0 : index
    %c0_14 = arith.constant 0 : index
    %20 = vector.load %arg2[%c0_13, %c0_14] : memref<1x128xf32, #tpu.memory_space<vmem>>, vector<1x128xf32>
    %21 = vector.broadcast %20 : vector<1x128xf32> to vector<32x128xf32>
    %22 = arith.addf %19, %21 : vector<32x128xf32>
    %cst_15 = arith.constant 0.000000e+00 : f32
    %23 = vector.broadcast %cst_15 : f32 to vector<32x128xf32>
    %24 = arith.maximumf %22, %23 : vector<32x128xf32>
    %c0_16 = arith.constant 0 : index
    %c0_17 = arith.constant 0 : index
    %25 = vector.load %arg3[%c0_16, %c0_17] : memref<32x128xf32, #tpu.memory_space<vmem>>, vector<32x128xf32>
    tpu.vector_store %arg3[%c0_16, %c0_17], %24 {strides = array<i32>} : memref<32x128xf32, #tpu.memory_space<vmem>>, vector<32x128xf32>,
    return
  }
}

</mosaic_0001>

<llo_original>
// kernel: lenet_forward.3
$region0: #{lenet_forward.3}
  #allocation0 [shape = 'u32[]', space=smem, size = 0x4, offset = 0x4, fixed_abs, tag = 'smem constant byte address 0x4 - core index']
  #allocation1 [shape = 'u32[72,128]{1,0:T(1,128)}', space=vmem, size = 0x9000, scoped, tag = 'internal scratch']
  %s0 = inlined_call_operand.vmem [shape: f32[4,288,200], index: 0, kind: input, shape index: {}]
  %s1 = inlined_call_operand.vmem [shape: bf16[200,128], index: 1, kind: input, shape index: {}]
  %s2 = inlined_call_operand.vmem [shape: f32[1,128], index: 2, kind: input, shape index: {}]
  %s3 = inlined_call_operand.vmem [shape: f32[288,128], index: 3, kind: output, shape index: {}]
  %s4 = sld [smem:[#allocation0]]
  $region22: #{lenet_forward.3} parent=0
    _
  %s6 = ssub.s32 1, %s4
  %s7 = scalar_select 0, %s6, %s4
  // Predicated region
  $region2: #{lenet_forward.3} parent=0 // pred_check
    _
  $region3: #{lenet_forward.3} parent=0 // pred_check_branch
    %9 = sbr.rel (0) target = $region5
  $region4: #{lenet_forward.3} parent=0 // pred_region
    _
  $region5: #{lenet_forward.3} parent=0 // pred_fallthru
    _
  // Predicated region
  $region6: #{lenet_forward.3} parent=0 // pred_check
    _
  $region7: #{lenet_forward.3} parent=0 // pred_check_branch
    %11 = sbr.rel (0) target = $region9
  $region8: #{lenet_forward.3} parent=0 // pred_region
    _
  $region9: #{lenet_forward.3} parent=0 // pred_fallthru
    _
  // Predicated region
  $region10: #{lenet_forward.3} parent=0 // pred_check
    _
  $region11: #{lenet_forward.3} parent=0 // pred_check_branch
    %13 = sbr.rel (0) target = $region13
  $region12: #{lenet_forward.3} parent=0 // pred_region
    _
  $region13: #{lenet_forward.3} parent=0 // pred_fallthru
    _
  %v15 = vld [vmem:[%s1] sm:$0xf]
  %v16 = vld [vmem:[%s1 + $0x4] sm:$0xf]
  %v17 = vld [vmem:[%s1 + $0x8] sm:$0xf]
  %v18 = vld [vmem:[%s1 + $0xc] sm:$0xf]
  %v19 = vld [vmem:[%s1 + $0x10] sm:$0xf]
  %v20 = vld [vmem:[%s1 + $0x14] sm:$0xf]
  %v21 = vld [vmem:[%s1 + $0x18] sm:$0xf]
  %v22 = vld [vmem:[%s1 + $0x1c] sm:$0xf]
  %v23 = vld [vmem:[%s1 + $0x20] sm:$0xf]
  %v24 = vld [vmem:[%s1 + $0x24] sm:$0xf]
  %v25 = vld [vmem:[%s1 + $0x28] sm:$0xf]
  %v26 = vld [vmem:[%s1 + $0x2c] sm:$0xf]
  %v27 = vld [vmem:[%s1 + $0x30] sm:$0xf]
  %v28 = vld [vmem:[%s1 + $0x34] sm:$0xf]
  %v29 = vld [vmem:[%s1 + $0x38] sm:$0xf]
  %v30 = vld [vmem:[%s1 + $0x3c] sm:$0xf]
  %v31 = vld [vmem:[%s1 + $0x40] sm:$0xf]
  %v32 = vld [vmem:[%s1 + $0x44] sm:$0xf]
  %v33 = vld [vmem:[%s1 + $0x48] sm:$0xf]
  %v34 = vld [vmem:[%s1 + $0x4c] sm:$0xf]
  %v35 = vld [vmem:[%s1 + $0x50] sm:$0xf]
  %v36 = vld [vmem:[%s1 + $0x54] sm:$0xf]
  %v37 = vld [vmem:[%s1 + $0x58] sm:$0xf]
  %v38 = vld [vmem:[%s1 + $0x5c] sm:$0xf]
  %v39 = vld [vmem:[%s1 + $0x60] sm:$0xf]
  %v40 = vld [vmem:[%s0] sm:$0xff]
  %v41 = vld [vmem:[%s0 + $0x8] sm:$0xff]
  %v42 = vld [vmem:[%s0 + $0x10] sm:$0xff]
  %v43 = vld [vmem:[%s0 + $0x18] sm:$0xff]
  %v44 = vld [vmem:[%s0 + $0x20] sm:$0xff]
  %v45 = vld [vmem:[%s0 + $0x28] sm:$0xff]
  %v46 = vld [vmem:[%s0 + $0x30] sm:$0xff]
  %v47 = vld [vmem:[%s0 + $0x38] sm:$0xff]
  %v48 = vld [vmem:[%s0 + $0x40] sm:$0xff]
  %v49 = vld [vmem:[%s0 + $0x48] sm:$0xff]
  %v50 = vld [vmem:[%s0 + $0x50] sm:$0xff]
  %v51 = vld [vmem:[%s0 + $0x58] sm:$0xff]
  %v52 = vld [vmem:[%s0 + $0x60] sm:$0xff]
  %v53 = vld [vmem:[%s0 + $0x68] sm:$0xff]
  %v54 = vld [vmem:[%s0 + $0x70] sm:$0xff]
  %v55 = vld [vmem:[%s0 + $0x78] sm:$0xff]
  %v56 = vld [vmem:[%s0 + $0x80] sm:$0xff]
  %v57 = vld [vmem:[%s0 + $0x88] sm:$0xff]
  %v58 = vld [vmem:[%s0 + $0x90] sm:$0xff]
  %v59 = vld [vmem:[%s0 + $0x98] sm:$0xff]
  %v60 = vld [vmem:[%s0 + $0xa0] sm:$0xff]
  %v61 = vld [vmem:[%s0 + $0xa8] sm:$0xff]
  %v62 = vld [vmem:[%s0 + $0xb0] sm:$0xff]
  %v63 = vld [vmem:[%s0 + $0xb8] sm:$0xff]
  %v64 = vld [vmem:[%s0 + $0xc0] sm:$0xff]
  %v65 = vld [vmem:[%s0 + $0xc8] sm:$0xff]
  %v66 = vld [vmem:[%s0 + $0xd0] sm:$0xff]
  %v67 = vld [vmem:[%s0 + $0xd8] sm:$0xff]
  %v68 = vld [vmem:[%s0 + $0xe0] sm:$0xff]
  %v69 = vld [vmem:[%s0 + $0xe8] sm:$0xff]
  %v70 = vld [vmem:[%s0 + $0xf0] sm:$0xff]
  %v71 = vld [vmem:[%s0 + $0xf8] sm:$0xff]
  %v72 = vld [vmem:[%s0 + $0x100] sm:$0xff]
  %v73 = vld [vmem:[%s0 + $0x108] sm:$0xff]
  %v74 = vld [vmem:[%s0 + $0x110] sm:$0xff]
  %v75 = vld [vmem:[%s0 + $0x118] sm:$0xff]
  %v76 = vld [vmem:[%s0 + $0x120] sm:$0xff]
  %v77 = vld [vmem:[%s0 + $0x128] sm:$0xff]
  %v78 = vld [vmem:[%s0 + $0x130] sm:$0xff]
  %v79 = vld [vmem:[%s0 + $0x138] sm:$0xff]
  %v80 = vld [vmem:[%s0 + $0x140] sm:$0xff]
  %v81 = vld [vmem:[%s0 + $0x148] sm:$0xff]
  %v82 = vld [vmem:[%s0 + $0x150] sm:$0xff]
  %v83 = vld [vmem:[%s0 + $0x158] sm:$0xff]
  %v84 = vld [vmem:[%s0 + $0x160] sm:$0xff]
  %v85 = vld [vmem:[%s0 + $0x168] sm:$0xff]
  %v86 = vld [vmem:[%s0 + $0x170] sm:$0xff]
  %v87 = vld [vmem:[%s0 + $0x178] sm:$0xff]
  %v88 = vld [vmem:[%s0 + $0x180] sm:$0xff]
  %v89 = vld [vmem:[%s0 + $0x188] sm:$0xff]
  %v90 = vld [vmem:[%s0 + $0x190] sm:$0xff]
  %v91 = vld [vmem:[%s0 + $0x198] sm:$0xff]
  %v92 = vld [vmem:[%s0 + $0x1a0] sm:$0xff]
  %v93 = vld [vmem:[%s0 + $0x1a8] sm:$0xff]
  %v94 = vld [vmem:[%s0 + $0x1b0] sm:$0xff]
  %v95 = vld [vmem:[%s0 + $0x1b8] sm:$0xff]
  %v96 = vld [vmem:[%s0 + $0x1c0] sm:$0xff]
  %v97 = vld [vmem:[%s0 + $0x1c8] sm:$0xff]
  %v98 = vld [vmem:[%s0 + $0x1d0] sm:$0xff]
  %v99 = vld [vmem:[%s0 + $0x1d8] sm:$0xff]
  %v100 = vld [vmem:[%s0 + $0x1e0] sm:$0xff]
  %v101 = vld [vmem:[%s0 + $0x1e8] sm:$0xff]
  %v102 = vld [vmem:[%s0 + $0x1f0] sm:$0xff]
  %v103 = vld [vmem:[%s0 + $0x1f8] sm:$0xff]
  %v104 = vld [vmem:[%s0 + $0x200] sm:$0xff]
  %v105 = vld [vmem:[%s0 + $0x208] sm:$0xff]
  %v106 = vld [vmem:[%s0 + $0x210] sm:$0xff]
  %v107 = vld [vmem:[%s0 + $0x218] sm:$0xff]
  %v108 = vld [vmem:[%s0 + $0x220] sm:$0xff]
  %v109 = vld [vmem:[%s0 + $0x228] sm:$0xff]
  %v110 = vld [vmem:[%s0 + $0x230] sm:$0xff]
  %v111 = vld [vmem:[%s0 + $0x238] sm:$0xff]
  %v112 = vpack.c.bf16 %v42, %v40
  %v113 = vpack.c.bf16 %v43, %v41
  %v114 = vpack.c.bf16 %v46, %v44
  %v115 = vpack.c.bf16 %v47, %v45
  %v116 = vpack.c.bf16 %v50, %v48
  %v117 = vpack.c.bf16 %v51, %v49
  %v118 = vpack.c.bf16 %v54, %v52
  %v119 = vpack.c.bf16 %v55, %v53
  %v120 = vpack.c.bf16 %v58, %v56
  %v121 = vpack.c.bf16 %v59, %v57
  %v122 = vpack.c.bf16 %v62, %v60
  %v123 = vpack.c.bf16 %v63, %v61
  %v124 = vpack.c.bf16 %v66, %v64
  %v125 = vpack.c.bf16 %v67, %v65
  %v126 = vpack.c.bf16 %v70, %v68
  %v127 = vpack.c.bf16 %v71, %v69
  %v128 = vpack.c.bf16 %v74, %v72
  %v129 = vpack.c.bf16 %v75, %v73
  %v130 = vpack.c.bf16 %v78, %v76
  %v131 = vpack.c.bf16 %v79, %v77
  %v132 = vpack.c.bf16 %v82, %v80
  %v133 = vpack.c.bf16 %v83, %v81
  %v134 = vpack.c.bf16 %v86, %v84
  %v135 = vpack.c.bf16 %v87, %v85
  %v136 = vpack.c.bf16 %v90, %v88
  %v137 = vpack.c.bf16 %v91, %v89
  %v138 = vpack.c.bf16 %v94, %v92
  %v139 = vpack.c.bf16 %v95, %v93
  %v140 = vpack.c.bf16 %v98, %v96
  %v141 = vpack.c.bf16 %v99, %v97
  %v142 = vpack.c.bf16 %v102, %v100
  %v143 = vpack.c.bf16 %v103, %v101
  %v144 = vpack.c.bf16 %v106, %v104
  %v145 = vpack.c.bf16 %v107, %v105
  %v146 = vpack.c.bf16 %v110, %v108
  %v147 = vpack.c.bf16 %v111, %v109
  %v173 = vunpack.c.l.b16 %v15
  %v174 = vunpack.c.l.b16 %v16
  %v175 = vunpack.c.l.b16 %v17
  %v176 = vunpack.c.l.b16 %v18
  %v177 = vunpack.c.l.b16 %v19
  %v178 = vunpack.c.l.b16 %v20
  %v179 = vunpack.c.l.b16 %v21
  %v180 = vunpack.c.l.b16 %v22
  %v181 = vunpack.c.l.b16 %v23
  %v182 = vunpack.c.l.b16 %v24
  %v183 = vunpack.c.l.b16 %v25
  %v184 = vunpack.c.l.b16 %v26
  %v185 = vunpack.c.l.b16 %v27
  %v186 = vunpack.c.l.b16 %v28
  %v187 = vunpack.c.l.b16 %v29
  %v188 = vunpack.c.l.b16 %v30
  %v189 = vunpack.c.l.b16 %v31
  %v190 = vunpack.c.l.b16 %v32
  %v191 = vunpack.c.l.b16 %v33
  %v192 = vunpack.c.l.b16 %v34
  %v193 = vunpack.c.l.b16 %v35
  %v194 = vunpack.c.l.b16 %v36
  %v195 = vunpack.c.l.b16 %v37
  %v196 = vunpack.c.l.b16 %v38
  %v197 = vunpack.c.l.b16 %v39
  %v198 = vpack.c.b16 %v174, %v173
  %v199 = vpack.c.b16 %v176, %v175
  %v200 = vpack.c.b16 %v178, %v177
  %v201 = vpack.c.b16 %v180, %v179
  %v202 = vpack.c.b16 %v182, %v181
  %v203 = vpack.c.b16 %v184, %v183
  %v204 = vpack.c.b16 %v186, %v185
  %v205 = vpack.c.b16 %v188, %v187
  %v206 = vpack.c.b16 %v190, %v189
  %v207 = vpack.c.b16 %v192, %v191
  %v208 = vpack.c.b16 %v194, %v193
  %v209 = vpack.c.b16 %v196, %v195
  %v210 = vpack.c.b16 %v197, %v197
  %vm223 = vcmask 588800
  %v225 = vsel %vm223, %v113, 0
  %v228 = vsel %vm223, %v115, 0
  %v231 = vsel %vm223, %v117, 0
  %v234 = vsel %vm223, %v119, 0
  %v237 = vsel %vm223, %v121, 0
  %v240 = vsel %vm223, %v123, 0
  %v243 = vsel %vm223, %v125, 0
  %v246 = vsel %vm223, %v127, 0
  %v249 = vsel %vm223, %v129, 0
  %v252 = vsel %vm223, %v131, 0
  %v255 = vsel %vm223, %v133, 0
  %v258 = vsel %vm223, %v135, 0
  %v261 = vsel %vm223, %v137, 0
  %v264 = vsel %vm223, %v139, 0
  %v267 = vsel %vm223, %v141, 0
  %v270 = vsel %vm223, %v143, 0
  %v273 = vsel %vm223, %v145, 0
  %v276 = vsel %vm223, %v147, 0
  %vm278 = vcmask 1043456
  %v280 = vsel %vm278, %v210, 0
  %282 = vmatpush.bf16.msra.mxu0 %v205
  %283 = vmatpush.bf16.msra.mxu0 %v204
  %284 = vmatpush.bf16.msra.mxu0 %v203
  %285 = vmatpush.bf16.msra.mxu0 %v202
  %286 = vmatpush.bf16.msra.mxu0 %v201
  %287 = vmatpush.bf16.msra.mxu0 %v200
  %288 = vmatpush.bf16.msra.mxu0 %v199
  %289 = vmatpush.bf16.msra.mxu0 %v198
  %290 = vmatmul.bf16.gmra.mxu0 %v112
  %v291 = vpop.f32.mrf.mxu0
  %v292 = vadd.f32 0.0, %v291
  %v293 = vpop.f32.mrf.mxu0
  %v294 = vadd.f32 0.0, %v293
  %295 = vmatmul.bf16.gmra.mxu0 %v114
  %v296 = vpop.f32.mrf.mxu0
  %v297 = vadd.f32 0.0, %v296
  %v298 = vpop.f32.mrf.mxu0
  %v299 = vadd.f32 0.0, %v298
  %300 = vmatmul.bf16.gmra.mxu0 %v116
  %v301 = vpop.f32.mrf.mxu0
  %v302 = vadd.f32 0.0, %v301
  %v303 = vpop.f32.mrf.mxu0
  %v304 = vadd.f32 0.0, %v303
  %305 = vmatmul.bf16.gmra.mxu0 %v118
  %v306 = vpop.f32.mrf.mxu0
  %v307 = vadd.f32 0.0, %v306
  %v308 = vpop.f32.mrf.mxu0
  %v309 = vadd.f32 0.0, %v308
  %310 = vmatmul.bf16.gmra.mxu0 %v120
  %v311 = vpop.f32.mrf.mxu0
  %v312 = vadd.f32 0.0, %v311
  %v313 = vpop.f32.mrf.mxu0
  %v314 = vadd.f32 0.0, %v313
  %315 = vmatmul.bf16.gmra.mxu0 %v122
  %v316 = vpop.f32.mrf.mxu0
  %v317 = vadd.f32 0.0, %v316
  %v318 = vpop.f32.mrf.mxu0
  %v319 = vadd.f32 0.0, %v318
  %320 = vmatmul.bf16.gmra.mxu0 %v124
  %v321 = vpop.f32.mrf.mxu0
  %v322 = vadd.f32 0.0, %v321
  %v323 = vpop.f32.mrf.mxu0
  %v324 = vadd.f32 0.0, %v323
  %325 = vmatmul.bf16.gmra.mxu0 %v126
  %v326 = vpop.f32.mrf.mxu0
  %v327 = vadd.f32 0.0, %v326
  %v328 = vpop.f32.mrf.mxu0
  %v329 = vadd.f32 0.0, %v328
  %330 = vmatmul.bf16.gmra.mxu0 %v128
  %v331 = vpop.f32.mrf.mxu0
  %v332 = vadd.f32 0.0, %v331
  %v333 = vpop.f32.mrf.mxu0
  %v334 = vadd.f32 0.0, %v333
  %335 = vmatmul.bf16.gmra.mxu0 %v130
  %v336 = vpop.f32.mrf.mxu0
  %v337 = vadd.f32 0.0, %v336
  %v338 = vpop.f32.mrf.mxu0
  %v339 = vadd.f32 0.0, %v338
  %340 = vmatmul.bf16.gmra.mxu0 %v132
  %v341 = vpop.f32.mrf.mxu0
  %v342 = vadd.f32 0.0, %v341
  %v343 = vpop.f32.mrf.mxu0
  %v344 = vadd.f32 0.0, %v343
  %345 = vmatmul.bf16.gmra.mxu0 %v134
  %v346 = vpop.f32.mrf.mxu0
  %v347 = vadd.f32 0.0, %v346
  %v348 = vpop.f32.mrf.mxu0
  %v349 = vadd.f32 0.0, %v348
  %350 = vmatmul.bf16.gmra.mxu0 %v136
  %v351 = vpop.f32.mrf.mxu0
  %v352 = vadd.f32 0.0, %v351
  %v353 = vpop.f32.mrf.mxu0
  %v354 = vadd.f32 0.0, %v353
  %355 = vmatmul.bf16.gmra.mxu0 %v138
  %v356 = vpop.f32.mrf.mxu0
  %v357 = vadd.f32 0.0, %v356
  %v358 = vpop.f32.mrf.mxu0
  %v359 = vadd.f32 0.0, %v358
  %360 = vmatmul.bf16.gmra.mxu0 %v140
  %v361 = vpop.f32.mrf.mxu0
  %v362 = vadd.f32 0.0, %v361
  %v363 = vpop.f32.mrf.mxu0
  %v364 = vadd.f32 0.0, %v363
  %365 = vmatmul.bf16.gmra.mxu0 %v142
  %v366 = vpop.f32.mrf.mxu0
  %v367 = vadd.f32 0.0, %v366
  %v368 = vpop.f32.mrf.mxu0
  %v369 = vadd.f32 0.0, %v368
  %370 = vmatmul.bf16.gmra.mxu0 %v144
  %v371 = vpop.f32.mrf.mxu0
  %v372 = vadd.f32 0.0, %v371
  %v373 = vpop.f32.mrf.mxu0
  %v374 = vadd.f32 0.0, %v373
  %375 = vmatmul.bf16.gmra.mxu0 %v146
  %v376 = vpop.f32.mrf.mxu0
  %v377 = vadd.f32 0.0, %v376
  %v378 = vpop.f32.mrf.mxu0
  %v379 = vadd.f32 0.0, %v378
  %380 = vdwg.mxu0
  %381 = vmatpush.bf16.msra.mxu0 0
  %382 = vmatpush.bf16.msra.mxu0 0
  %383 = vmatpush.bf16.msra.mxu0 0
  %384 = vmatpush.bf16.msra.mxu0 %v280
  %385 = vmatpush.bf16.msra.mxu0 %v209
  %386 = vmatpush.bf16.msra.mxu0 %v208
  %387 = vmatpush.bf16.msra.mxu0 %v207
  %388 = vmatpush.bf16.msra.mxu0 %v206
  %389 = vmatmul.bf16.gmra.mxu0 %v225
  %v390 = vpop.f32.mrf.mxu0
  %v391 = vadd.f32 %v292, %v390
  %v392 = vpop.f32.mrf.mxu0
  %v393 = vadd.f32 %v294, %v392
  %394 = vmatmul.bf16.gmra.mxu0 %v228
  %v395 = vpop.f32.mrf.mxu0
  %v396 = vadd.f32 %v297, %v395
  %v397 = vpop.f32.mrf.mxu0
  %v398 = vadd.f32 %v299, %v397
  %399 = vmatmul.bf16.gmra.mxu0 %v231
  %v400 = vpop.f32.mrf.mxu0
  %v401 = vadd.f32 %v302, %v400
  %v402 = vpop.f32.mrf.mxu0
  %v403 = vadd.f32 %v304, %v402
  %404 = vmatmul.bf16.gmra.mxu0 %v234
  %v405 = vpop.f32.mrf.mxu0
  %v406 = vadd.f32 %v307, %v405
  %v407 = vpop.f32.mrf.mxu0
  %v408 = vadd.f32 %v309, %v407
  %409 = vmatmul.bf16.gmra.mxu0 %v237
  %v410 = vpop.f32.mrf.mxu0
  %v411 = vadd.f32 %v312, %v410
  %v412 = vpop.f32.mrf.mxu0
  %v413 = vadd.f32 %v314, %v412
  %414 = vmatmul.bf16.gmra.mxu0 %v240
  %v415 = vpop.f32.mrf.mxu0
  %v416 = vadd.f32 %v317, %v415
  %v417 = vpop.f32.mrf.mxu0
  %v418 = vadd.f32 %v319, %v417
  %419 = vmatmul.bf16.gmra.mxu0 %v243
  %v420 = vpop.f32.mrf.mxu0
  %v421 = vadd.f32 %v322, %v420
  %v422 = vpop.f32.mrf.mxu0
  %v423 = vadd.f32 %v324, %v422
  %424 = vmatmul.bf16.gmra.mxu0 %v246
  %v425 = vpop.f32.mrf.mxu0
  %v426 = vadd.f32 %v327, %v425
  %v427 = vpop.f32.mrf.mxu0
  %v428 = vadd.f32 %v329, %v427
  %429 = vmatmul.bf16.gmra.mxu0 %v249
  %v430 = vpop.f32.mrf.mxu0
  %v431 = vadd.f32 %v332, %v430
  %v432 = vpop.f32.mrf.mxu0
  %v433 = vadd.f32 %v334, %v432
  %434 = vmatmul.bf16.gmra.mxu0 %v252
  %v435 = vpop.f32.mrf.mxu0
  %v436 = vadd.f32 %v337, %v435
  %v437 = vpop.f32.mrf.mxu0
  %v438 = vadd.f32 %v339, %v437
  %439 = vmatmul.bf16.gmra.mxu0 %v255
  %v440 = vpop.f32.mrf.mxu0
  %v441 = vadd.f32 %v342, %v440
  %v442 = vpop.f32.mrf.mxu0
  %v443 = vadd.f32 %v344, %v442
  %444 = vmatmul.bf16.gmra.mxu0 %v258
  %v445 = vpop.f32.mrf.mxu0
  %v446 = vadd.f32 %v347, %v445
  %v447 = vpop.f32.mrf.mxu0
  %v448 = vadd.f32 %v349, %v447
  %449 = vmatmul.bf16.gmra.mxu0 %v261
  %v450 = vpop.f32.mrf.mxu0
  %v451 = vadd.f32 %v352, %v450
  %v452 = vpop.f32.mrf.mxu0
  %v453 = vadd.f32 %v354, %v452
  %454 = vmatmul.bf16.gmra.mxu0 %v264
  %v455 = vpop.f32.mrf.mxu0
  %v456 = vadd.f32 %v357, %v455
  %v457 = vpop.f32.mrf.mxu0
  %v458 = vadd.f32 %v359, %v457
  %459 = vmatmul.bf16.gmra.mxu0 %v267
  %v460 = vpop.f32.mrf.mxu0
  %v461 = vadd.f32 %v362, %v460
  %v462 = vpop.f32.mrf.mxu0
  %v463 = vadd.f32 %v364, %v462
  %464 = vmatmul.bf16.gmra.mxu0 %v270
  %v465 = vpop.f32.mrf.mxu0
  %v466 = vadd.f32 %v367, %v465
  %v467 = vpop.f32.mrf.mxu0
  %v468 = vadd.f32 %v369, %v467
  %469 = vmatmul.bf16.gmra.mxu0 %v273
  %v470 = vpop.f32.mrf.mxu0
  %v471 = vadd.f32 %v372, %v470
  %v472 = vpop.f32.mrf.mxu0
  %v473 = vadd.f32 %v374, %v472
  %474 = vmatmul.bf16.gmra.mxu0 %v276
  %v475 = vpop.f32.mrf.mxu0
  %v476 = vadd.f32 %v377, %v475
  %v477 = vpop.f32.mrf.mxu0
  %v478 = vadd.f32 %v379, %v477
  %479 = vdwg.mxu0
  %s480 = scalar_lea.vmem %s0, 576
  %v481 = vld [vmem:[%s480] sm:$0xff]
  %v482 = vld [vmem:[%s480 + $0x8] sm:$0xff]
  %v483 = vld [vmem:[%s480 + $0x10] sm:$0xff]
  %v484 = vld [vmem:[%s480 + $0x18] sm:$0xff]
  %v485 = vld [vmem:[%s480 + $0x20] sm:$0xff]
  %v486 = vld [vmem:[%s480 + $0x28] sm:$0xff]
  %v487 = vld [vmem:[%s480 + $0x30] sm:$0xff]
  %v488 = vld [vmem:[%s480 + $0x38] sm:$0xff]
  %v489 = vld [vmem:[%s480 + $0x40] sm:$0xff]
  %v490 = vld [vmem:[%s480 + $0x48] sm:$0xff]
  %v491 = vld [vmem:[%s480 + $0x50] sm:$0xff]
  %v492 = vld [vmem:[%s480 + $0x58] sm:$0xff]
  %v493 = vld [vmem:[%s480 + $0x60] sm:$0xff]
  %v494 = vld [vmem:[%s480 + $0x68] sm:$0xff]
  %v495 = vld [vmem:[%s480 + $0x70] sm:$0xff]
  %v496 = vld [vmem:[%s480 + $0x78] sm:$0xff]
  %v497 = vld [vmem:[%s480 + $0x80] sm:$0xff]
  %v498 = vld [vmem:[%s480 + $0x88] sm:$0xff]
  %v499 = vld [vmem:[%s480 + $0x90] sm:$0xff]
  %v500 = vld [vmem:[%s480 + $0x98] sm:$0xff]
  %v501 = vld [vmem:[%s480 + $0xa0] sm:$0xff]
  %v502 = vld [vmem:[%s480 + $0xa8] sm:$0xff]
  %v503 = vld [vmem:[%s480 + $0xb0] sm:$0xff]
  %v504 = vld [vmem:[%s480 + $0xb8] sm:$0xff]
  %v505 = vld [vmem:[%s480 + $0xc0] sm:$0xff]
  %v506 = vld [vmem:[%s480 + $0xc8] sm:$0xff]
  %v507 = vld [vmem:[%s480 + $0xd0] sm:$0xff]
  %v508 = vld [vmem:[%s480 + $0xd8] sm:$0xff]
  %v509 = vld [vmem:[%s480 + $0xe0] sm:$0xff]
  %v510 = vld [vmem:[%s480 + $0xe8] sm:$0xff]
  %v511 = vld [vmem:[%s480 + $0xf0] sm:$0xff]
  %v512 = vld [vmem:[%s480 + $0xf8] sm:$0xff]
  %v513 = vld [vmem:[%s480 + $0x100] sm:$0xff]
  %v514 = vld [vmem:[%s480 + $0x108] sm:$0xff]
  %v515 = vld [vmem:[%s480 + $0x110] sm:$0xff]
  %v516 = vld [vmem:[%s480 + $0x118] sm:$0xff]
  %v517 = vld [vmem:[%s480 + $0x120] sm:$0xff]
  %v518 = vld [vmem:[%s480 + $0x128] sm:$0xff]
  %v519 = vld [vmem:[%s480 + $0x130] sm:$0xff]
  %v520 = vld [vmem:[%s480 + $0x138] sm:$0xff]
  %v521 = vld [vmem:[%s480 + $0x140] sm:$0xff]
  %v522 = vld [vmem:[%s480 + $0x148] sm:$0xff]
  %v523 = vld [vmem:[%s480 + $0x150] sm:$0xff]
  %v524 = vld [vmem:[%s480 + $0x158] sm:$0xff]
  %v525 = vld [vmem:[%s480 + $0x160] sm:$0xff]
  %v526 = vld [vmem:[%s480 + $0x168] sm:$0xff]
  %v527 = vld [vmem:[%s480 + $0x170] sm:$0xff]
  %v528 = vld [vmem:[%s480 + $0x178] sm:$0xff]
  %v529 = vld [vmem:[%s480 + $0x180] sm:$0xff]
  %v530 = vld [vmem:[%s480 + $0x188] sm:$0xff]
  %v531 = vld [vmem:[%s480 + $0x190] sm:$0xff]
  %v532 = vld [vmem:[%s480 + $0x198] sm:$0xff]
  %v533 = vld [vmem:[%s480 + $0x1a0] sm:$0xff]
  %v534 = vld [vmem:[%s480 + $0x1a8] sm:$0xff]
  %v535 = vld [vmem:[%s480 + $0x1b0] sm:$0xff]
  %v536 = vld [vmem:[%s480 + $0x1b8] sm:$0xff]
  %v537 = vld [vmem:[%s480 + $0x1c0] sm:$0xff]
  %v538 = vld [vmem:[%s480 + $0x1c8] sm:$0xff]
  %v539 = vld [vmem:[%s480 + $0x1d0] sm:$0xff]
  %v540 = vld [vmem:[%s480 + $0x1d8] sm:$0xff]
  %v541 = vld [vmem:[%s480 + $0x1e0] sm:$0xff]
  %v542 = vld [vmem:[%s480 + $0x1e8] sm:$0xff]
  %v543 = vld [vmem:[%s480 + $0x1f0] sm:$0xff]
  %v544 = vld [vmem:[%s480 + $0x1f8] sm:$0xff]
  %v545 = vld [vmem:[%s480 + $0x200] sm:$0xff]
  %v546 = vld [vmem:[%s480 + $0x208] sm:$0xff]
  %v547 = vld [vmem:[%s480 + $0x210] sm:$0xff]
  %v548 = vld [vmem:[%s480 + $0x218] sm:$0xff]
  %v549 = vld [vmem:[%s480 + $0x220] sm:$0xff]
  %v550 = vld [vmem:[%s480 + $0x228] sm:$0xff]
  %v551 = vld [vmem:[%s480 + $0x230] sm:$0xff]
  %v552 = vld [vmem:[%s480 + $0x238] sm:$0xff]
  %v553 = vpack.c.bf16 %v483, %v481
  %v554 = vpack.c.bf16 %v484, %v482
  %v555 = vpack.c.bf16 %v487, %v485
  %v556 = vpack.c.bf16 %v488, %v486
  %v557 = vpack.c.bf16 %v491, %v489
  %v558 = vpack.c.bf16 %v492, %v490
  %v559 = vpack.c.bf16 %v495, %v493
  %v560 = vpack.c.bf16 %v496, %v494
  %v561 = vpack.c.bf16 %v499, %v497
  %v562 = vpack.c.bf16 %v500, %v498
  %v563 = vpack.c.bf16 %v503, %v501
  %v564 = vpack.c.bf16 %v504, %v502
  %v565 = vpack.c.bf16 %v507, %v505
  %v566 = vpack.c.bf16 %v508, %v506
  %v567 = vpack.c.bf16 %v511, %v509
  %v568 = vpack.c.bf16 %v512, %v510
  %v569 = vpack.c.bf16 %v515, %v513
  %v570 = vpack.c.bf16 %v516, %v514
  %v571 = vpack.c.bf16 %v519, %v517
  %v572 = vpack.c.bf16 %v520, %v518
  %v573 = vpack.c.bf16 %v523, %v521
  %v574 = vpack.c.bf16 %v524, %v522
  %v575 = vpack.c.bf16 %v527, %v525
  %v576 = vpack.c.bf16 %v528, %v526
  %v577 = vpack.c.bf16 %v531, %v529
  %v578 = vpack.c.bf16 %v532, %v530
  %v579 = vpack.c.bf16 %v535, %v533
  %v580 = vpack.c.bf16 %v536, %v534
  %v581 = vpack.c.bf16 %v539, %v537
  %v582 = vpack.c.bf16 %v540, %v538
  %v583 = vpack.c.bf16 %v543, %v541
  %v584 = vpack.c.bf16 %v544, %v542
  %v585 = vpack.c.bf16 %v547, %v545
  %v586 = vpack.c.bf16 %v548, %v546
  %v587 = vpack.c.bf16 %v551, %v549
  %v588 = vpack.c.bf16 %v552, %v550
  %v590 = vsel %vm223, %v554, 0
  %v593 = vsel %vm223, %v556, 0
  %v596 = vsel %vm223, %v558, 0
  %v599 = vsel %vm223, %v560, 0
  %v602 = vsel %vm223, %v562, 0
  %v605 = vsel %vm223, %v564, 0
  %v608 = vsel %vm223, %v566, 0
  %v611 = vsel %vm223, %v568, 0
  %v614 = vsel %vm223, %v570, 0
  %v617 = vsel %vm223, %v572, 0
  %v620 = vsel %vm223, %v574, 0
  %v623 = vsel %vm223, %v576, 0
  %v626 = vsel %vm223, %v578, 0
  %v629 = vsel %vm223, %v580, 0
  %v632 = vsel %vm223, %v582, 0
  %v635 = vsel %vm223, %v584, 0
  %v638 = vsel %vm223, %v586, 0
  %v641 = vsel %vm223, %v588, 0
  %643 = vmatpush.bf16.msra.mxu0 %v205
  %644 = vmatpush.bf16.msra.mxu0 %v204
  %645 = vmatpush.bf16.msra.mxu0 %v203
  %646 = vmatpush.bf16.msra.mxu0 %v202
  %647 = vmatpush.bf16.msra.mxu0 %v201
  %648 = vmatpush.bf16.msra.mxu0 %v200
  %649 = vmatpush.bf16.msra.mxu0 %v199
  %650 = vmatpush.bf16.msra.mxu0 %v198
  %651 = vmatmul.bf16.gmra.mxu0 %v553
  %v652 = vpop.f32.mrf.mxu0
  %v653 = vadd.f32 0.0, %v652
  %v654 = vpop.f32.mrf.mxu0
  %v655 = vadd.f32 0.0, %v654
  %656 = vmatmul.bf16.gmra.mxu0 %v555
  %v657 = vpop.f32.mrf.mxu0
  %v658 = vadd.f32 0.0, %v657
  %v659 = vpop.f32.mrf.mxu0
  %v660 = vadd.f32 0.0, %v659
  %661 = vmatmul.bf16.gmra.mxu0 %v557
  %v662 = vpop.f32.mrf.mxu0
  %v663 = vadd.f32 0.0, %v662
  %v664 = vpop.f32.mrf.mxu0
  %v665 = vadd.f32 0.0, %v664
  %666 = vmatmul.bf16.gmra.mxu0 %v559
  %v667 = vpop.f32.mrf.mxu0
  %v668 = vadd.f32 0.0, %v667
  %v669 = vpop.f32.mrf.mxu0
  %v670 = vadd.f32 0.0, %v669
  %671 = vmatmul.bf16.gmra.mxu0 %v561
  %v672 = vpop.f32.mrf.mxu0
  %v673 = vadd.f32 0.0, %v672
  %v674 = vpop.f32.mrf.mxu0
  %v675 = vadd.f32 0.0, %v674
  %676 = vmatmul.bf16.gmra.mxu0 %v563
  %v677 = vpop.f32.mrf.mxu0
  %v678 = vadd.f32 0.0, %v677
  %v679 = vpop.f32.mrf.mxu0
  %v680 = vadd.f32 0.0, %v679
  %681 = vmatmul.bf16.gmra.mxu0 %v565
  %v682 = vpop.f32.mrf.mxu0
  %v683 = vadd.f32 0.0, %v682
  %v684 = vpop.f32.mrf.mxu0
  %v685 = vadd.f32 0.0, %v684
  %686 = vmatmul.bf16.gmra.mxu0 %v567
  %v687 = vpop.f32.mrf.mxu0
  %v688 = vadd.f32 0.0, %v687
  %v689 = vpop.f32.mrf.mxu0
  %v690 = vadd.f32 0.0, %v689
  %691 = vmatmul.bf16.gmra.mxu0 %v569
  %v692 = vpop.f32.mrf.mxu0
  %v693 = vadd.f32 0.0, %v692
  %v694 = vpop.f32.mrf.mxu0
  %v695 = vadd.f32 0.0, %v694
  %696 = vmatmul.bf16.gmra.mxu0 %v571
  %v697 = vpop.f32.mrf.mxu0
  %v698 = vadd.f32 0.0, %v697
  %v699 = vpop.f32.mrf.mxu0
  %v700 = vadd.f32 0.0, %v699
  %701 = vmatmul.bf16.gmra.mxu0 %v573
  %v702 = vpop.f32.mrf.mxu0
  %v703 = vadd.f32 0.0, %v702
  %v704 = vpop.f32.mrf.mxu0
  %v705 = vadd.f32 0.0, %v704
  %706 = vmatmul.bf16.gmra.mxu0 %v575
  %v707 = vpop.f32.mrf.mxu0
  %v708 = vadd.f32 0.0, %v707
  %v709 = vpop.f32.mrf.mxu0
  %v710 = vadd.f32 0.0, %v709
  %711 = vmatmul.bf16.gmra.mxu0 %v577
  %v712 = vpop.f32.mrf.mxu0
  %v713 = vadd.f32 0.0, %v712
  %v714 = vpop.f32.mrf.mxu0
  %v715 = vadd.f32 0.0, %v714
  %716 = vmatmul.bf16.gmra.mxu0 %v579
  %v717 = vpop.f32.mrf.mxu0
  %v718 = vadd.f32 0.0, %v717
  %v719 = vpop.f32.mrf.mxu0
  %v720 = vadd.f32 0.0, %v719
  %721 = vmatmul.bf16.gmra.mxu0 %v581
  %v722 = vpop.f32.mrf.mxu0
  %v723 = vadd.f32 0.0, %v722
  %v724 = vpop.f32.mrf.mxu0
  %v725 = vadd.f32 0.0, %v724
  %726 = vmatmul.bf16.gmra.mxu0 %v583
  %v727 = vpop.f32.mrf.mxu0
  %v728 = vadd.f32 0.0, %v727
  %v729 = vpop.f32.mrf.mxu0
  %v730 = vadd.f32 0.0, %v729
  %731 = vmatmul.bf16.gmra.mxu0 %v585
  %v732 = vpop.f32.mrf.mxu0
  %v733 = vadd.f32 0.0, %v732
  %v734 = vpop.f32.mrf.mxu0
  %v735 = vadd.f32 0.0, %v734
  %736 = vmatmul.bf16.gmra.mxu0 %v587
  %v737 = vpop.f32.mrf.mxu0
  %v738 = vadd.f32 0.0, %v737
  %v739 = vpop.f32.mrf.mxu0
  %v740 = vadd.f32 0.0, %v739
  %741 = vdwg.mxu0
  %742 = vmatpush.bf16.msra.mxu0 0
  %743 = vmatpush.bf16.msra.mxu0 0
  %744 = vmatpush.bf16.msra.mxu0 0
  %745 = vmatpush.bf16.msra.mxu0 %v280
  %746 = vmatpush.bf16.msra.mxu0 %v209
  %747 = vmatpush.bf16.msra.mxu0 %v208
  %748 = vmatpush.bf16.msra.mxu0 %v207
  %749 = vmatpush.bf16.msra.mxu0 %v206
  %750 = vmatmul.bf16.gmra.mxu0 %v590
  %v751 = vpop.f32.mrf.mxu0
  %v752 = vadd.f32 %v653, %v751
  %v753 = vpop.f32.mrf.mxu0
  %v754 = vadd.f32 %v655, %v753
  %755 = vmatmul.bf16.gmra.mxu0 %v593
  %v756 = vpop.f32.mrf.mxu0
  %v757 = vadd.f32 %v658, %v756
  %v758 = vpop.f32.mrf.mxu0
  %v759 = vadd.f32 %v660, %v758
  %760 = vmatmul.bf16.gmra.mxu0 %v596
  %v761 = vpop.f32.mrf.mxu0
  %v762 = vadd.f32 %v663, %v761
  %v763 = vpop.f32.mrf.mxu0
  %v764 = vadd.f32 %v665, %v763
  %765 = vmatmul.bf16.gmra.mxu0 %v599
  %v766 = vpop.f32.mrf.mxu0
  %v767 = vadd.f32 %v668, %v766
  %v768 = vpop.f32.mrf.mxu0
  %v769 = vadd.f32 %v670, %v768
  %770 = vmatmul.bf16.gmra.mxu0 %v602
  %v771 = vpop.f32.mrf.mxu0
  %v772 = vadd.f32 %v673, %v771
  %v773 = vpop.f32.mrf.mxu0
  %v774 = vadd.f32 %v675, %v773
  %775 = vmatmul.bf16.gmra.mxu0 %v605
  %v776 = vpop.f32.mrf.mxu0
  %v777 = vadd.f32 %v678, %v776
  %v778 = vpop.f32.mrf.mxu0
  %v779 = vadd.f32 %v680, %v778
  %780 = vmatmul.bf16.gmra.mxu0 %v608
  %v781 = vpop.f32.mrf.mxu0
  %v782 = vadd.f32 %v683, %v781
  %v783 = vpop.f32.mrf.mxu0
  %v784 = vadd.f32 %v685, %v783
  %785 = vmatmul.bf16.gmra.mxu0 %v611
  %v786 = vpop.f32.mrf.mxu0
  %v787 = vadd.f32 %v688, %v786
  %v788 = vpop.f32.mrf.mxu0
  %v789 = vadd.f32 %v690, %v788
  %790 = vmatmul.bf16.gmra.mxu0 %v614
  %v791 = vpop.f32.mrf.mxu0
  %v792 = vadd.f32 %v693, %v791
  %v793 = vpop.f32.mrf.mxu0
  %v794 = vadd.f32 %v695, %v793
  %795 = vmatmul.bf16.gmra.mxu0 %v617
  %v796 = vpop.f32.mrf.mxu0
  %v797 = vadd.f32 %v698, %v796
  %v798 = vpop.f32.mrf.mxu0
  %v799 = vadd.f32 %v700, %v798
  %800 = vmatmul.bf16.gmra.mxu0 %v620
  %v801 = vpop.f32.mrf.mxu0
  %v802 = vadd.f32 %v703, %v801
  %v803 = vpop.f32.mrf.mxu0
  %v804 = vadd.f32 %v705, %v803
  %805 = vmatmul.bf16.gmra.mxu0 %v623
  %v806 = vpop.f32.mrf.mxu0
  %v807 = vadd.f32 %v708, %v806
  %v808 = vpop.f32.mrf.mxu0
  %v809 = vadd.f32 %v710, %v808
  %810 = vmatmul.bf16.gmra.mxu0 %v626
  %v811 = vpop.f32.mrf.mxu0
  %v812 = vadd.f32 %v713, %v811
  %v813 = vpop.f32.mrf.mxu0
  %v814 = vadd.f32 %v715, %v813
  %815 = vmatmul.bf16.gmra.mxu0 %v629
  %v816 = vpop.f32.mrf.mxu0
  %v817 = vadd.f32 %v718, %v816
  %v818 = vpop.f32.mrf.mxu0
  %v819 = vadd.f32 %v720, %v818
  %820 = vmatmul.bf16.gmra.mxu0 %v632
  %v821 = vpop.f32.mrf.mxu0
  %v822 = vadd.f32 %v723, %v821
  %v823 = vpop.f32.mrf.mxu0
  %v824 = vadd.f32 %v725, %v823
  %825 = vmatmul.bf16.gmra.mxu0 %v635
  %v826 = vpop.f32.mrf.mxu0
  %v827 = vadd.f32 %v728, %v826
  %v828 = vpop.f32.mrf.mxu0
  %v829 = vadd.f32 %v730, %v828
  %830 = vmatmul.bf16.gmra.mxu0 %v638
  %v831 = vpop.f32.mrf.mxu0
  %v832 = vadd.f32 %v733, %v831
  %v833 = vpop.f32.mrf.mxu0
  %v834 = vadd.f32 %v735, %v833
  %835 = vmatmul.bf16.gmra.mxu0 %v641
  %v836 = vpop.f32.mrf.mxu0
  %v837 = vadd.f32 %v738, %v836
  %v838 = vpop.f32.mrf.mxu0
  %v839 = vadd.f32 %v740, %v838
  %840 = vdwg.mxu0
  %v841 = vmax.f32 %v391, %v752
  %v842 = vmax.f32 %v393, %v754
  %v843 = vmax.f32 %v396, %v757
  %v844 = vmax.f32 %v398, %v759
  %v845 = vmax.f32 %v401, %v762
  %v846 = vmax.f32 %v403, %v764
  %v847 = vmax.f32 %v406, %v767
  %v848 = vmax.f32 %v408, %v769
  %v849 = vmax.f32 %v411, %v772
  %v850 = vmax.f32 %v413, %v774
  %v851 = vmax.f32 %v416, %v777
  %v852 = vmax.f32 %v418, %v779
  %v853 = vmax.f32 %v421, %v782
  %v854 = vmax.f32 %v423, %v784
  %v855 = vmax.f32 %v426, %v787
  %v856 = vmax.f32 %v428, %v789
  %v857 = vmax.f32 %v431, %v792
  %v858 = vmax.f32 %v433, %v794
  %v859 = vmax.f32 %v436, %v797
  %v860 = vmax.f32 %v438, %v799
  %v861 = vmax.f32 %v441, %v802
  %v862 = vmax.f32 %v443, %v804
  %v863 = vmax.f32 %v446, %v807
  %v864 = vmax.f32 %v448, %v809
  %v865 = vmax.f32 %v451, %v812
  %v866 = vmax.f32 %v453, %v814
  %v867 = vmax.f32 %v456, %v817
  %v868 = vmax.f32 %v458, %v819
  %v869 = vmax.f32 %v461, %v822
  %v870 = vmax.f32 %v463, %v824
  %v871 = vmax.f32 %v466, %v827
  %v872 = vmax.f32 %v468, %v829
  %v873 = vmax.f32 %v471, %v832
  %v874 = vmax.f32 %v473, %v834
  %v875 = vmax.f32 %v476, %v837
  %v876 = vmax.f32 %v478, %v839
  %s877 = scalar_lea.vmem %s0, 1152
  %v878 = vld [vmem:[%s877] sm:$0xff]
  %v879 = vld [vmem:[%s877 + $0x8] sm:$0xff]
  %v880 = vld [vmem:[%s877 + $0x10] sm:$0xff]
  %v881 = vld [vmem:[%s877 + $0x18] sm:$0xff]
  %v882 = vld [vmem:[%s877 + $0x20] sm:$0xff]
  %v883 = vld [vmem:[%s877 + $0x28] sm:$0xff]
  %v884 = vld [vmem:[%s877 + $0x30] sm:$0xff]
  %v885 = vld [vmem:[%s877 + $0x38] sm:$0xff]
  %v886 = vld [vmem:[%s877 + $0x40] sm:$0xff]
  %v887 = vld [vmem:[%s877 + $0x48] sm:$0xff]
  %v888 = vld [vmem:[%s877 + $0x50] sm:$0xff]
  %v889 = vld [vmem:[%s877 + $0x58] sm:$0xff]
  %v890 = vld [vmem:[%s877 + $0x60] sm:$0xff]
  %v891 = vld [vmem:[%s877 + $0x68] sm:$0xff]
  %v892 = vld [vmem:[%s877 + $0x70] sm:$0xff]
  %v893 = vld [vmem:[%s877 + $0x78] sm:$0xff]
  %v894 = vld [vmem:[%s877 + $0x80] sm:$0xff]
  %v895 = vld [vmem:[%s877 + $0x88] sm:$0xff]
  %v896 = vld [vmem:[%s877 + $0x90] sm:$0xff]
  %v897 = vld [vmem:[%s877 + $0x98] sm:$0xff]
  %v898 = vld [vmem:[%s877 + $0xa0] sm:$0xff]
  %v899 = vld [vmem:[%s877 + $0xa8] sm:$0xff]
  %v900 = vld [vmem:[%s877 + $0xb0] sm:$0xff]
  %v901 = vld [vmem:[%s877 + $0xb8] sm:$0xff]
  %v902 = vld [vmem:[%s877 + $0xc0] sm:$0xff]
  %v903 = vld [vmem:[%s877 + $0xc8] sm:$0xff]
  %v904 = vld [vmem:[%s877 + $0xd0] sm:$0xff]
  %v905 = vld [vmem:[%s877 + $0xd8] sm:$0xff]
  %v906 = vld [vmem:[%s877 + $0xe0] sm:$0xff]
  %v907 = vld [vmem:[%s877 + $0xe8] sm:$0xff]
  %v908 = vld [vmem:[%s877 + $0xf0] sm:$0xff]
  %v909 = vld [vmem:[%s877 + $0xf8] sm:$0xff]
  %v910 = vld [vmem:[%s877 + $0x100] sm:$0xff]
  %v911 = vld [vmem:[%s877 + $0x108] sm:$0xff]
  %v912 = vld [vmem:[%s877 + $0x110] sm:$0xff]
  %v913 = vld [vmem:[%s877 + $0x118] sm:$0xff]
  %v914 = vld [vmem:[%s877 + $0x120] sm:$0xff]
  %v915 = vld [vmem:[%s877 + $0x128] sm:$0xff]
  %v916 = vld [vmem:[%s877 + $0x130] sm:$0xff]
  %v917 = vld [vmem:[%s877 + $0x138] sm:$0xff]
  %v918 = vld [vmem:[%s877 + $0x140] sm:$0xff]
  %v919 = vld [vmem:[%s877 + $0x148] sm:$0xff]
  %v920 = vld [vmem:[%s877 + $0x150] sm:$0xff]
  %v921 = vld [vmem:[%s877 + $0x158] sm:$0xff]
  %v922 = vld [vmem:[%s877 + $0x160] sm:$0xff]
  %v923 = vld [vmem:[%s877 + $0x168] sm:$0xff]
  %v924 = vld [vmem:[%s877 + $0x170] sm:$0xff]
  %v925 = vld [vmem:[%s877 + $0x178] sm:$0xff]
  %v926 = vld [vmem:[%s877 + $0x180] sm:$0xff]
  %v927 = vld [vmem:[%s877 + $0x188] sm:$0xff]
  %v928 = vld [vmem:[%s877 + $0x190] sm:$0xff]
  %v929 = vld [vmem:[%s877 + $0x198] sm:$0xff]
  %v930 = vld [vmem:[%s877 + $0x1a0] sm:$0xff]
  %v931 = vld [vmem:[%s877 + $0x1a8] sm:$0xff]
  %v932 = vld [vmem:[%s877 + $0x1b0] sm:$0xff]
  %v933 = vld [vmem:[%s877 + $0x1b8] sm:$0xff]
  %v934 = vld [vmem:[%s877 + $0x1c0] sm:$0xff]
  %v935 = vld [vmem:[%s877 + $0x1c8] sm:$0xff]
  %v936 = vld [vmem:[%s877 + $0x1d0] sm:$0xff]
  %v937 = vld [vmem:[%s877 + $0x1d8] sm:$0xff]
  %v938 = vld [vmem:[%s877 + $0x1e0] sm:$0xff]
  %v939 = vld [vmem:[%s877 + $0x1e8] sm:$0xff]
  %v940 = vld [vmem:[%s877 + $0x1f0] sm:$0xff]
  %v941 = vld [vmem:[%s877 + $0x1f8] sm:$0xff]
  %v942 = vld [vmem:[%s877 + $0x200] sm:$0xff]
  %v943 = vld [vmem:[%s877 + $0x208] sm:$0xff]
  %v944 = vld [vmem:[%s877 + $0x210] sm:$0xff]
  %v945 = vld [vmem:[%s877 + $0x218] sm:$0xff]
  %v946 = vld [vmem:[%s877 + $0x220] sm:$0xff]
  %v947 = vld [vmem:[%s877 + $0x228] sm:$0xff]
  %v948 = vld [vmem:[%s877 + $0x230] sm:$0xff]
  %v949 = vld [vmem:[%s877 + $0x238] sm:$0xff]
  %v950 = vpack.c.bf16 %v880, %v878
  %v951 = vpack.c.bf16 %v881, %v879
  %v952 = vpack.c.bf16 %v884, %v882
  %v953 = vpack.c.bf16 %v885, %v883
  %v954 = vpack.c.bf16 %v888, %v886
  %v955 = vpack.c.bf16 %v889, %v887
  %v956 = vpack.c.bf16 %v892, %v890
  %v957 = vpack.c.bf16 %v893, %v891
  %v958 = vpack.c.bf16 %v896, %v894
  %v959 = vpack.c.bf16 %v897, %v895
  %v960 = vpack.c.bf16 %v900, %v898
  %v961 = vpack.c.bf16 %v901, %v899
  %v962 = vpack.c.bf16 %v904, %v902
  %v963 = vpack.c.bf16 %v905, %v903
  %v964 = vpack.c.bf16 %v908, %v906
  %v965 = vpack.c.bf16 %v909, %v907
  %v966 = vpack.c.bf16 %v912, %v910
  %v967 = vpack.c.bf16 %v913, %v911
  %v968 = vpack.c.bf16 %v916, %v914
  %v969 = vpack.c.bf16 %v917, %v915
  %v970 = vpack.c.bf16 %v920, %v918
  %v971 = vpack.c.bf16 %v921, %v919
  %v972 = vpack.c.bf16 %v924, %v922
  %v973 = vpack.c.bf16 %v925, %v923
  %v974 = vpack.c.bf16 %v928, %v926
  %v975 = vpack.c.bf16 %v929, %v927
  %v976 = vpack.c.bf16 %v932, %v930
  %v977 = vpack.c.bf16 %v933, %v931
  %v978 = vpack.c.bf16 %v936, %v934
  %v979 = vpack.c.bf16 %v937, %v935
  %v980 = vpack.c.bf16 %v940, %v938
  %v981 = vpack.c.bf16 %v941, %v939
  %v982 = vpack.c.bf16 %v944, %v942
  %v983 = vpack.c.bf16 %v945, %v943
  %v984 = vpack.c.bf16 %v948, %v946
  %v985 = vpack.c.bf16 %v949, %v947
  %v987 = vsel %vm223, %v951, 0
  %v990 = vsel %vm223, %v953, 0
  %v993 = vsel %vm223, %v955, 0
  %v996 = vsel %vm223, %v957, 0
  %v999 = vsel %vm223, %v959, 0
  %v1002 = vsel %vm223, %v961, 0
  %v1005 = vsel %vm223, %v963, 0
  %v1008 = vsel %vm223, %v965, 0
  %v1011 = vsel %vm223, %v967, 0
  %v1014 = vsel %vm223, %v969, 0
  %v1017 = vsel %vm223, %v971, 0
  %v1020 = vsel %vm223, %v973, 0
  %v1023 = vsel %vm223, %v975, 0
  %v1026 = vsel %vm223, %v977, 0
  %v1029 = vsel %vm223, %v979, 0
  %v1032 = vsel %vm223, %v981, 0
  %v1035 = vsel %vm223, %v983, 0
  %v1038 = vsel %vm223, %v985, 0
  %1040 = vmatpush.bf16.msra.mxu0 %v205
  %1041 = vmatpush.bf16.msra.mxu0 %v204
  %1042 = vmatpush.bf16.msra.mxu0 %v203
  %1043 = vmatpush.bf16.msra.mxu0 %v202
  %1044 = vmatpush.bf16.msra.mxu0 %v201
  %1045 = vmatpush.bf16.msra.mxu0 %v200
  %1046 = vmatpush.bf16.msra.mxu0 %v199
  %1047 = vmatpush.bf16.msra.mxu0 %v198
  %1048 = vmatmul.bf16.gmra.mxu0 %v950
  %v1049 = vpop.f32.mrf.mxu0
  %v1050 = vadd.f32 0.0, %v1049
  %v1051 = vpop.f32.mrf.mxu0
  %v1052 = vadd.f32 0.0, %v1051
  %1053 = vmatmul.bf16.gmra.mxu0 %v952
  %v1054 = vpop.f32.mrf.mxu0
  %v1055 = vadd.f32 0.0, %v1054
  %v1056 = vpop.f32.mrf.mxu0
  %v1057 = vadd.f32 0.0, %v1056
  %1058 = vmatmul.bf16.gmra.mxu0 %v954
  %v1059 = vpop.f32.mrf.mxu0
  %v1060 = vadd.f32 0.0, %v1059
  %v1061 = vpop.f32.mrf.mxu0
  %v1062 = vadd.f32 0.0, %v1061
  %1063 = vmatmul.bf16.gmra.mxu0 %v956
  %v1064 = vpop.f32.mrf.mxu0
  %v1065 = vadd.f32 0.0, %v1064
  %v1066 = vpop.f32.mrf.mxu0
  %v1067 = vadd.f32 0.0, %v1066
  %1068 = vmatmul.bf16.gmra.mxu0 %v958
  %v1069 = vpop.f32.mrf.mxu0
  %v1070 = vadd.f32 0.0, %v1069
  %v1071 = vpop.f32.mrf.mxu0
  %v1072 = vadd.f32 0.0, %v1071
  %1073 = vmatmul.bf16.gmra.mxu0 %v960
  %v1074 = vpop.f32.mrf.mxu0
  %v1075 = vadd.f32 0.0, %v1074
  %v1076 = vpop.f32.mrf.mxu0
  %v1077 = vadd.f32 0.0, %v1076
  %1078 = vmatmul.bf16.gmra.mxu0 %v962
  %v1079 = vpop.f32.mrf.mxu0
  %v1080 = vadd.f32 0.0, %v1079
  %v1081 = vpop.f32.mrf.mxu0
  %v1082 = vadd.f32 0.0, %v1081
  %1083 = vmatmul.bf16.gmra.mxu0 %v964
  %v1084 = vpop.f32.mrf.mxu0
  %v1085 = vadd.f32 0.0, %v1084
  %v1086 = vpop.f32.mrf.mxu0
  %v1087 = vadd.f32 0.0, %v1086
  %1088 = vmatmul.bf16.gmra.mxu0 %v966
  %v1089 = vpop.f32.mrf.mxu0
  %v1090 = vadd.f32 0.0, %v1089
  %v1091 = vpop.f32.mrf.mxu0
  %v1092 = vadd.f32 0.0, %v1091
  %1093 = vmatmul.bf16.gmra.mxu0 %v968
  %v1094 = vpop.f32.mrf.mxu0
  %v1095 = vadd.f32 0.0, %v1094
  %v1096 = vpop.f32.mrf.mxu0
  %v1097 = vadd.f32 0.0, %v1096
  %1098 = vmatmul.bf16.gmra.mxu0 %v970
  %v1099 = vpop.f32.mrf.mxu0
  %v1100 = vadd.f32 0.0, %v1099
  %v1101 = vpop.f32.mrf.mxu0
  %v1102 = vadd.f32 0.0, %v1101
  %1103 = vmatmul.bf16.gmra.mxu0 %v972
  %v1104 = vpop.f32.mrf.mxu0
  %v1105 = vadd.f32 0.0, %v1104
  %v1106 = vpop.f32.mrf.mxu0
  %v1107 = vadd.f32 0.0, %v1106
  %1108 = vmatmul.bf16.gmra.mxu0 %v974
  %v1109 = vpop.f32.mrf.mxu0
  %v1110 = vadd.f32 0.0, %v1109
  %v1111 = vpop.f32.mrf.mxu0
  %v1112 = vadd.f32 0.0, %v1111
  %1113 = vmatmul.bf16.gmra.mxu0 %v976
  %v1114 = vpop.f32.mrf.mxu0
  %v1115 = vadd.f32 0.0, %v1114
  %v1116 = vpop.f32.mrf.mxu0
  %v1117 = vadd.f32 0.0, %v1116
  %1118 = vmatmul.bf16.gmra.mxu0 %v978
  %v1119 = vpop.f32.mrf.mxu0
  %v1120 = vadd.f32 0.0, %v1119
  %v1121 = vpop.f32.mrf.mxu0
  %v1122 = vadd.f32 0.0, %v1121
  %1123 = vmatmul.bf16.gmra.mxu0 %v980
  %v1124 = vpop.f32.mrf.mxu0
  %v1125 = vadd.f32 0.0, %v1124
  %v1126 = vpop.f32.mrf.mxu0
  %v1127 = vadd.f32 0.0, %v1126
  %1128 = vmatmul.bf16.gmra.mxu0 %v982
  %v1129 = vpop.f32.mrf.mxu0
  %v1130 = vadd.f32 0.0, %v1129
  %v1131 = vpop.f32.mrf.mxu0
  %v1132 = vadd.f32 0.0, %v1131
  %1133 = vmatmul.bf16.gmra.mxu0 %v984
  %v1134 = vpop.f32.mrf.mxu0
  %v1135 = vadd.f32 0.0, %v1134
  %v1136 = vpop.f32.mrf.mxu0
  %v1137 = vadd.f32 0.0, %v1136
  %1138 = vdwg.mxu0
  %1139 = vmatpush.bf16.msra.mxu0 0
  %1140 = vmatpush.bf16.msra.mxu0 0
  %1141 = vmatpush.bf16.msra.mxu0 0
  %1142 = vmatpush.bf16.msra.mxu0 %v280
  %1143 = vmatpush.bf16.msra.mxu0 %v209
  %1144 = vmatpush.bf16.msra.mxu0 %v208
  %1145 = vmatpush.bf16.msra.mxu0 %v207
  %1146 = vmatpush.bf16.msra.mxu0 %v206
  %1147 = vmatmul.bf16.gmra.mxu0 %v987
  %v1148 = vpop.f32.mrf.mxu0
  %v1149 = vadd.f32 %v1050, %v1148
  %v1150 = vpop.f32.mrf.mxu0
  %v1151 = vadd.f32 %v1052, %v1150
  %1152 = vmatmul.bf16.gmra.mxu0 %v990
  %v1153 = vpop.f32.mrf.mxu0
  %v1154 = vadd.f32 %v1055, %v1153
  %v1155 = vpop.f32.mrf.mxu0
  %v1156 = vadd.f32 %v1057, %v1155
  %1157 = vmatmul.bf16.gmra.mxu0 %v993
  %v1158 = vpop.f32.mrf.mxu0
  %v1159 = vadd.f32 %v1060, %v1158
  %v1160 = vpop.f32.mrf.mxu0
  %v1161 = vadd.f32 %v1062, %v1160
  %1162 = vmatmul.bf16.gmra.mxu0 %v996
  %v1163 = vpop.f32.mrf.mxu0
  %v1164 = vadd.f32 %v1065, %v1163
  %v1165 = vpop.f32.mrf.mxu0
  %v1166 = vadd.f32 %v1067, %v1165
  %1167 = vmatmul.bf16.gmra.mxu0 %v999
  %v1168 = vpop.f32.mrf.mxu0
  %v1169 = vadd.f32 %v1070, %v1168
  %v1170 = vpop.f32.mrf.mxu0
  %v1171 = vadd.f32 %v1072, %v1170
  %1172 = vmatmul.bf16.gmra.mxu0 %v1002
  %v1173 = vpop.f32.mrf.mxu0
  %v1174 = vadd.f32 %v1075, %v1173
  %v1175 = vpop.f32.mrf.mxu0
  %v1176 = vadd.f32 %v1077, %v1175
  %1177 = vmatmul.bf16.gmra.mxu0 %v1005
  %v1178 = vpop.f32.mrf.mxu0
  %v1179 = vadd.f32 %v1080, %v1178
  %v1180 = vpop.f32.mrf.mxu0
  %v1181 = vadd.f32 %v1082, %v1180
  %1182 = vmatmul.bf16.gmra.mxu0 %v1008
  %v1183 = vpop.f32.mrf.mxu0
  %v1184 = vadd.f32 %v1085, %v1183
  %v1185 = vpop.f32.mrf.mxu0
  %v1186 = vadd.f32 %v1087, %v1185
  %1187 = vmatmul.bf16.gmra.mxu0 %v1011
  %v1188 = vpop.f32.mrf.mxu0
  %v1189 = vadd.f32 %v1090, %v1188
  %v1190 = vpop.f32.mrf.mxu0
  %v1191 = vadd.f32 %v1092, %v1190
  %1192 = vmatmul.bf16.gmra.mxu0 %v1014
  %v1193 = vpop.f32.mrf.mxu0
  %v1194 = vadd.f32 %v1095, %v1193
  %v1195 = vpop.f32.mrf.mxu0
  %v1196 = vadd.f32 %v1097, %v1195
  %1197 = vmatmul.bf16.gmra.mxu0 %v1017
  %v1198 = vpop.f32.mrf.mxu0
  %v1199 = vadd.f32 %v1100, %v1198
  %v1200 = vpop.f32.mrf.mxu0
  %v1201 = vadd.f32 %v1102, %v1200
  %1202 = vmatmul.bf16.gmra.mxu0 %v1020
  %v1203 = vpop.f32.mrf.mxu0
  %v1204 = vadd.f32 %v1105, %v1203
  %v1205 = vpop.f32.mrf.mxu0
  %v1206 = vadd.f32 %v1107, %v1205
  %1207 = vmatmul.bf16.gmra.mxu0 %v1023
  %v1208 = vpop.f32.mrf.mxu0
  %v1209 = vadd.f32 %v1110, %v1208
  %v1210 = vpop.f32.mrf.mxu0
  %v1211 = vadd.f32 %v1112, %v1210
  %1212 = vmatmul.bf16.gmra.mxu0 %v1026
  %v1213 = vpop.f32.mrf.mxu0
  %v1214 = vadd.f32 %v1115, %v1213
  %v1215 = vpop.f32.mrf.mxu0
  %v1216 = vadd.f32 %v1117, %v1215
  %1217 = vmatmul.bf16.gmra.mxu0 %v1029
  %v1218 = vpop.f32.mrf.mxu0
  %v1219 = vadd.f32 %v1120, %v1218
  %v1220 = vpop.f32.mrf.mxu0
  %v1221 = vadd.f32 %v1122, %v1220
  %1222 = vmatmul.bf16.gmra.mxu0 %v1032
  %v1223 = vpop.f32.mrf.mxu0
  %v1224 = vadd.f32 %v1125, %v1223
  %v1225 = vpop.f32.mrf.mxu0
  %v1226 = vadd.f32 %v1127, %v1225
  %1227 = vmatmul.bf16.gmra.mxu0 %v1035
  %v1228 = vpop.f32.mrf.mxu0
  %v1229 = vadd.f32 %v1130, %v1228
  %v1230 = vpop.f32.mrf.mxu0
  %v1231 = vadd.f32 %v1132, %v1230
  %1232 = vmatmul.bf16.gmra.mxu0 %v1038
  %v1233 = vpop.f32.mrf.mxu0
  %v1234 = vadd.f32 %v1135, %v1233
  %v1235 = vpop.f32.mrf.mxu0
  %v1236 = vadd.f32 %v1137, %v1235
  %1237 = vdwg.mxu0
  %v1238 = vmax.f32 %v841, %v1149
  %v1239 = vmax.f32 %v842, %v1151
  %v1240 = vmax.f32 %v843, %v1154
  %v1241 = vmax.f32 %v844, %v1156
  %v1242 = vmax.f32 %v845, %v1159
  %v1243 = vmax.f32 %v846, %v1161
  %v1244 = vmax.f32 %v847, %v1164
  %v1245 = vmax.f32 %v848, %v1166
  %v1246 = vmax.f32 %v849, %v1169
  %v1247 = vmax.f32 %v850, %v1171
  %v1248 = vmax.f32 %v851, %v1174
  %v1249 = vmax.f32 %v852, %v1176
  %v1250 = vmax.f32 %v853, %v1179
  %v1251 = vmax.f32 %v854, %v1181
  %v1252 = vmax.f32 %v855, %v1184
  %v1253 = vmax.f32 %v856, %v1186
  %v1254 = vmax.f32 %v857, %v1189
  %v1255 = vmax.f32 %v858, %v1191
  %v1256 = vmax.f32 %v859, %v1194
  %v1257 = vmax.f32 %v860, %v1196
  %v1258 = vmax.f32 %v861, %v1199
  %v1259 = vmax.f32 %v862, %v1201
  %v1260 = vmax.f32 %v863, %v1204
  %v1261 = vmax.f32 %v864, %v1206
  %v1262 = vmax.f32 %v865, %v1209
  %v1263 = vmax.f32 %v866, %v1211
  %v1264 = vmax.f32 %v867, %v1214
  %v1265 = vmax.f32 %v868, %v1216
  %v1266 = vmax.f32 %v869, %v1219
  %v1267 = vmax.f32 %v870, %v1221
  %v1268 = vmax.f32 %v871, %v1224
  %v1269 = vmax.f32 %v872, %v1226
  %v1270 = vmax.f32 %v873, %v1229
  %v1271 = vmax.f32 %v874, %v1231
  %v1272 = vmax.f32 %v875, %v1234
  %v1273 = vmax.f32 %v876, %v1236
  %s1274 = scalar_lea.vmem %s0, 1728
  %v1275 = vld [vmem:[%s1274] sm:$0xff]
  %v1276 = vld [vmem:[%s1274 + $0x8] sm:$0xff]
  %v1277 = vld [vmem:[%s1274 + $0x10] sm:$0xff]
  %v1278 = vld [vmem:[%s1274 + $0x18] sm:$0xff]
  %v1279 = vld [vmem:[%s1274 + $0x20] sm:$0xff]
  %v1280 = vld [vmem:[%s1274 + $0x28] sm:$0xff]
  %v1281 = vld [vmem:[%s1274 + $0x30] sm:$0xff]
  %v1282 = vld [vmem:[%s1274 + $0x38] sm:$0xff]
  %v1283 = vld [vmem:[%s1274 + $0x40] sm:$0xff]
  %v1284 = vld [vmem:[%s1274 + $0x48] sm:$0xff]
  %v1285 = vld [vmem:[%s1274 + $0x50] sm:$0xff]
  %v1286 = vld [vmem:[%s1274 + $0x58] sm:$0xff]
  %v1287 = vld [vmem:[%s1274 + $0x60] sm:$0xff]
  %v1288 = vld [vmem:[%s1274 + $0x68] sm:$0xff]
  %v1289 = vld [vmem:[%s1274 + $0x70] sm:$0xff]
  %v1290 = vld [vmem:[%s1274 + $0x78] sm:$0xff]
  %v1291 = vld [vmem:[%s1274 + $0x80] sm:$0xff]
  %v1292 = vld [vmem:[%s1274 + $0x88] sm:$0xff]
  %v1293 = vld [vmem:[%s1274 + $0x90] sm:$0xff]
  %v1294 = vld [vmem:[%s1274 + $0x98] sm:$0xff]
  %v1295 = vld [vmem:[%s1274 + $0xa0] sm:$0xff]
  %v1296 = vld [vmem:[%s1274 + $0xa8] sm:$0xff]
  %v1297 = vld [vmem:[%s1274 + $0xb0] sm:$0xff]
  %v1298 = vld [vmem:[%s1274 + $0xb8] sm:$0xff]
  %v1299 = vld [vmem:[%s1274 + $0xc0] sm:$0xff]
  %v1300 = vld [vmem:[%s1274 + $0xc8] sm:$0xff]
  %v1301 = vld [vmem:[%s1274 + $0xd0] sm:$0xff]
  %v1302 = vld [vmem:[%s1274 + $0xd8] sm:$0xff]
  %v1303 = vld [vmem:[%s1274 + $0xe0] sm:$0xff]
  %v1304 = vld [vmem:[%s1274 + $0xe8] sm:$0xff]
  %v1305 = vld [vmem:[%s1274 + $0xf0] sm:$0xff]
  %v1306 = vld [vmem:[%s1274 + $0xf8] sm:$0xff]
  %v1307 = vld [vmem:[%s1274 + $0x100] sm:$0xff]
  %v1308 = vld [vmem:[%s1274 + $0x108] sm:$0xff]
  %v1309 = vld [vmem:[%s1274 + $0x110] sm:$0xff]
  %v1310 = vld [vmem:[%s1274 + $0x118] sm:$0xff]
  %v1311 = vld [vmem:[%s1274 + $0x120] sm:$0xff]
  %v1312 = vld [vmem:[%s1274 + $0x128] sm:$0xff]
  %v1313 = vld [vmem:[%s1274 + $0x130] sm:$0xff]
  %v1314 = vld [vmem:[%s1274 + $0x138] sm:$0xff]
  %v1315 = vld [vmem:[%s1274 + $0x140] sm:$0xff]
  %v1316 = vld [vmem:[%s1274 + $0x148] sm:$0xff]
  %v1317 = vld [vmem:[%s1274 + $0x150] sm:$0xff]
  %v1318 = vld [vmem:[%s1274 + $0x158] sm:$0xff]
  %v1319 = vld [vmem:[%s1274 + $0x160] sm:$0xff]
  %v1320 = vld [vmem:[%s1274 + $0x168] sm:$0xff]
  %v1321 = vld [vmem:[%s1274 + $0x170] sm:$0xff]
  %v1322 = vld [vmem:[%s1274 + $0x178] sm:$0xff]
  %v1323 = vld [vmem:[%s1274 + $0x180] sm:$0xff]
  %v1324 = vld [vmem:[%s1274 + $0x188] sm:$0xff]
  %v1325 = vld [vmem:[%s1274 + $0x190] sm:$0xff]
  %v1326 = vld [vmem:[%s1274 + $0x198] sm:$0xff]
  %v1327 = vld [vmem:[%s1274 + $0x1a0] sm:$0xff]
  %v1328 = vld [vmem:[%s1274 + $0x1a8] sm:$0xff]
  %v1329 = vld [vmem:[%s1274 + $0x1b0] sm:$0xff]
  %v1330 = vld [vmem:[%s1274 + $0x1b8] sm:$0xff]
  %v1331 = vld [vmem:[%s1274 + $0x1c0] sm:$0xff]
  %v1332 = vld [vmem:[%s1274 + $0x1c8] sm:$0xff]
  %v1333 = vld [vmem:[%s1274 + $0x1d0] sm:$0xff]
  %v1334 = vld [vmem:[%s1274 + $0x1d8] sm:$0xff]
  %v1335 = vld [vmem:[%s1274 + $0x1e0] sm:$0xff]
  %v1336 = vld [vmem:[%s1274 + $0x1e8] sm:$0xff]
  %v1337 = vld [vmem:[%s1274 + $0x1f0] sm:$0xff]
  %v1338 = vld [vmem:[%s1274 + $0x1f8] sm:$0xff]
  %v1339 = vld [vmem:[%s1274 + $0x200] sm:$0xff]
  %v1340 = vld [vmem:[%s1274 + $0x208] sm:$0xff]
  %v1341 = vld [vmem:[%s1274 + $0x210] sm:$0xff]
  %v1342 = vld [vmem:[%s1274 + $0x218] sm:$0xff]
  %v1343 = vld [vmem:[%s1274 + $0x220] sm:$0xff]
  %v1344 = vld [vmem:[%s1274 + $0x228] sm:$0xff]
  %v1345 = vld [vmem:[%s1274 + $0x230] sm:$0xff]
  %v1346 = vld [vmem:[%s1274 + $0x238] sm:$0xff]
  %v1347 = vpack.c.bf16 %v1277, %v1275
  %v1348 = vpack.c.bf16 %v1278, %v1276
  %v1349 = vpack.c.bf16 %v1281, %v1279
  %v1350 = vpack.c.bf16 %v1282, %v1280
  %v1351 = vpack.c.bf16 %v1285, %v1283
  %v1352 = vpack.c.bf16 %v1286, %v1284
  %v1353 = vpack.c.bf16 %v1289, %v1287
  %v1354 = vpack.c.bf16 %v1290, %v1288
  %v1355 = vpack.c.bf16 %v1293, %v1291
  %v1356 = vpack.c.bf16 %v1294, %v1292
  %v1357 = vpack.c.bf16 %v1297, %v1295
  %v1358 = vpack.c.bf16 %v1298, %v1296
  %v1359 = vpack.c.bf16 %v1301, %v1299
  %v1360 = vpack.c.bf16 %v1302, %v1300
  %v1361 = vpack.c.bf16 %v1305, %v1303
  %v1362 = vpack.c.bf16 %v1306, %v1304
  %v1363 = vpack.c.bf16 %v1309, %v1307
  %v1364 = vpack.c.bf16 %v1310, %v1308
  %v1365 = vpack.c.bf16 %v1313, %v1311
  %v1366 = vpack.c.bf16 %v1314, %v1312
  %v1367 = vpack.c.bf16 %v1317, %v1315
  %v1368 = vpack.c.bf16 %v1318, %v1316
  %v1369 = vpack.c.bf16 %v1321, %v1319
  %v1370 = vpack.c.bf16 %v1322, %v1320
  %v1371 = vpack.c.bf16 %v1325, %v1323
  %v1372 = vpack.c.bf16 %v1326, %v1324
  %v1373 = vpack.c.bf16 %v1329, %v1327
  %v1374 = vpack.c.bf16 %v1330, %v1328
  %v1375 = vpack.c.bf16 %v1333, %v1331
  %v1376 = vpack.c.bf16 %v1334, %v1332
  %v1377 = vpack.c.bf16 %v1337, %v1335
  %v1378 = vpack.c.bf16 %v1338, %v1336
  %v1379 = vpack.c.bf16 %v1341, %v1339
  %v1380 = vpack.c.bf16 %v1342, %v1340
  %v1381 = vpack.c.bf16 %v1345, %v1343
  %v1382 = vpack.c.bf16 %v1346, %v1344
  %v1384 = vsel %vm223, %v1348, 0
  %v1387 = vsel %vm223, %v1350, 0
  %v1390 = vsel %vm223, %v1352, 0
  %v1393 = vsel %vm223, %v1354, 0
  %v1396 = vsel %vm223, %v1356, 0
  %v1399 = vsel %vm223, %v1358, 0
  %v1402 = vsel %vm223, %v1360, 0
  %v1405 = vsel %vm223, %v1362, 0
  %v1408 = vsel %vm223, %v1364, 0
  %v1411 = vsel %vm223, %v1366, 0
  %v1414 = vsel %vm223, %v1368, 0
  %v1417 = vsel %vm223, %v1370, 0
  %v1420 = vsel %vm223, %v1372, 0
  %v1423 = vsel %vm223, %v1374, 0
  %v1426 = vsel %vm223, %v1376, 0
  %v1429 = vsel %vm223, %v1378, 0
  %v1432 = vsel %vm223, %v1380, 0
  %v1435 = vsel %vm223, %v1382, 0
  %1437 = vmatpush.bf16.msra.mxu0 %v205
  %1438 = vmatpush.bf16.msra.mxu0 %v204
  %1439 = vmatpush.bf16.msra.mxu0 %v203
  %1440 = vmatpush.bf16.msra.mxu0 %v202
  %1441 = vmatpush.bf16.msra.mxu0 %v201
  %1442 = vmatpush.bf16.msra.mxu0 %v200
  %1443 = vmatpush.bf16.msra.mxu0 %v199
  %1444 = vmatpush.bf16.msra.mxu0 %v198
  %1445 = vmatmul.bf16.gmra.mxu0 %v1347
  %v1446 = vpop.f32.mrf.mxu0
  %v1447 = vadd.f32 0.0, %v1446
  %v1448 = vpop.f32.mrf.mxu0
  %v1449 = vadd.f32 0.0, %v1448
  %1450 = vmatmul.bf16.gmra.mxu0 %v1349
  %v1451 = vpop.f32.mrf.mxu0
  %v1452 = vadd.f32 0.0, %v1451
  %v1453 = vpop.f32.mrf.mxu0
  %v1454 = vadd.f32 0.0, %v1453
  %1455 = vmatmul.bf16.gmra.mxu0 %v1351
  %v1456 = vpop.f32.mrf.mxu0
  %v1457 = vadd.f32 0.0, %v1456
  %v1458 = vpop.f32.mrf.mxu0
  %v1459 = vadd.f32 0.0, %v1458
  %1460 = vmatmul.bf16.gmra.mxu0 %v1353
  %v1461 = vpop.f32.mrf.mxu0
  %v1462 = vadd.f32 0.0, %v1461
  %v1463 = vpop.f32.mrf.mxu0
  %v1464 = vadd.f32 0.0, %v1463
  %1465 = vmatmul.bf16.gmra.mxu0 %v1355
  %v1466 = vpop.f32.mrf.mxu0
  %v1467 = vadd.f32 0.0, %v1466
  %v1468 = vpop.f32.mrf.mxu0
  %v1469 = vadd.f32 0.0, %v1468
  %1470 = vmatmul.bf16.gmra.mxu0 %v1357
  %v1471 = vpop.f32.mrf.mxu0
  %v1472 = vadd.f32 0.0, %v1471
  %v1473 = vpop.f32.mrf.mxu0
  %v1474 = vadd.f32 0.0, %v1473
  %1475 = vmatmul.bf16.gmra.mxu0 %v1359
  %v1476 = vpop.f32.mrf.mxu0
  %v1477 = vadd.f32 0.0, %v1476
  %v1478 = vpop.f32.mrf.mxu0
  %v1479 = vadd.f32 0.0, %v1478
  %1480 = vmatmul.bf16.gmra.mxu0 %v1361
  %v1481 = vpop.f32.mrf.mxu0
  %v1482 = vadd.f32 0.0, %v1481
  %v1483 = vpop.f32.mrf.mxu0
  %v1484 = vadd.f32 0.0, %v1483
  %1485 = vmatmul.bf16.gmra.mxu0 %v1363
  %v1486 = vpop.f32.mrf.mxu0
  %v1487 = vadd.f32 0.0, %v1486
  %v1488 = vpop.f32.mrf.mxu0
  %v1489 = vadd.f32 0.0, %v1488
  %1490 = vmatmul.bf16.gmra.mxu0 %v1365
  %v1491 = vpop.f32.mrf.mxu0
  %v1492 = vadd.f32 0.0, %v1491
  %v1493 = vpop.f32.mrf.mxu0
  %v1494 = vadd.f32 0.0, %v1493
  %1495 = vmatmul.bf16.gmra.mxu0 %v1367
  %v1496 = vpop.f32.mrf.mxu0
  %v1497 = vadd.f32 0.0, %v1496
  %v1498 = vpop.f32.mrf.mxu0
  %v1499 = vadd.f32 0.0, %v1498
  %1500 = vmatmul.bf16.gmra.mxu0 %v1369
  %v1501 = vpop.f32.mrf.mxu0
  %v1502 = vadd.f32 0.0, %v1501
  %v1503 = vpop.f32.mrf.mxu0
  %v1504 = vadd.f32 0.0, %v1503
  %1505 = vmatmul.bf16.gmra.mxu0 %v1371
  %v1506 = vpop.f32.mrf.mxu0
  %v1507 = vadd.f32 0.0, %v1506
  %v1508 = vpop.f32.mrf.mxu0
  %v1509 = vadd.f32 0.0, %v1508
  %1510 = vmatmul.bf16.gmra.mxu0 %v1373
  %v1511 = vpop.f32.mrf.mxu0
  %v1512 = vadd.f32 0.0, %v1511
  %v1513 = vpop.f32.mrf.mxu0
  %v1514 = vadd.f32 0.0, %v1513
  %1515 = vmatmul.bf16.gmra.mxu0 %v1375
  %v1516 = vpop.f32.mrf.mxu0
  %v1517 = vadd.f32 0.0, %v1516
  %v1518 = vpop.f32.mrf.mxu0
  %v1519 = vadd.f32 0.0, %v1518
  %1520 = vmatmul.bf16.gmra.mxu0 %v1377
  %v1521 = vpop.f32.mrf.mxu0
  %v1522 = vadd.f32 0.0, %v1521
  %v1523 = vpop.f32.mrf.mxu0
  %v1524 = vadd.f32 0.0, %v1523
  %1525 = vmatmul.bf16.gmra.mxu0 %v1379
  %v1526 = vpop.f32.mrf.mxu0
  %v1527 = vadd.f32 0.0, %v1526
  %v1528 = vpop.f32.mrf.mxu0
  %v1529 = vadd.f32 0.0, %v1528
  %1530 = vmatmul.bf16.gmra.mxu0 %v1381
  %v1531 = vpop.f32.mrf.mxu0
  %v1532 = vadd.f32 0.0, %v1531
  %v1533 = vpop.f32.mrf.mxu0
  %v1534 = vadd.f32 0.0, %v1533
  %1535 = vdwg.mxu0
  %1536 = vmatpush.bf16.msra.mxu0 0
  %1537 = vmatpush.bf16.msra.mxu0 0
  %1538 = vmatpush.bf16.msra.mxu0 0
  %1539 = vmatpush.bf16.msra.mxu0 %v280
  %1540 = vmatpush.bf16.msra.mxu0 %v209
  %1541 = vmatpush.bf16.msra.mxu0 %v208
  %1542 = vmatpush.bf16.msra.mxu0 %v207
  %1543 = vmatpush.bf16.msra.mxu0 %v206
  %1544 = vmatmul.bf16.gmra.mxu0 %v1384
  %v1545 = vpop.f32.mrf.mxu0
  %v1546 = vadd.f32 %v1447, %v1545
  %v1547 = vpop.f32.mrf.mxu0
  %v1548 = vadd.f32 %v1449, %v1547
  %1549 = vmatmul.bf16.gmra.mxu0 %v1387
  %v1550 = vpop.f32.mrf.mxu0
  %v1551 = vadd.f32 %v1452, %v1550
  %v1552 = vpop.f32.mrf.mxu0
  %v1553 = vadd.f32 %v1454, %v1552
  %1554 = vmatmul.bf16.gmra.mxu0 %v1390
  %v1555 = vpop.f32.mrf.mxu0
  %v1556 = vadd.f32 %v1457, %v1555
  %v1557 = vpop.f32.mrf.mxu0
  %v1558 = vadd.f32 %v1459, %v1557
  %1559 = vmatmul.bf16.gmra.mxu0 %v1393
  %v1560 = vpop.f32.mrf.mxu0
  %v1561 = vadd.f32 %v1462, %v1560
  %v1562 = vpop.f32.mrf.mxu0
  %v1563 = vadd.f32 %v1464, %v1562
  %1564 = vmatmul.bf16.gmra.mxu0 %v1396
  %v1565 = vpop.f32.mrf.mxu0
  %v1566 = vadd.f32 %v1467, %v1565
  %v1567 = vpop.f32.mrf.mxu0
  %v1568 = vadd.f32 %v1469, %v1567
  %1569 = vmatmul.bf16.gmra.mxu0 %v1399
  %v1570 = vpop.f32.mrf.mxu0
  %v1571 = vadd.f32 %v1472, %v1570
  %v1572 = vpop.f32.mrf.mxu0
  %v1573 = vadd.f32 %v1474, %v1572
  %1574 = vmatmul.bf16.gmra.mxu0 %v1402
  %v1575 = vpop.f32.mrf.mxu0
  %v1576 = vadd.f32 %v1477, %v1575
  %v1577 = vpop.f32.mrf.mxu0
  %v1578 = vadd.f32 %v1479, %v1577
  %1579 = vmatmul.bf16.gmra.mxu0 %v1405
  %v1580 = vpop.f32.mrf.mxu0
  %v1581 = vadd.f32 %v1482, %v1580
  %v1582 = vpop.f32.mrf.mxu0
  %v1583 = vadd.f32 %v1484, %v1582
  %1584 = vmatmul.bf16.gmra.mxu0 %v1408
  %v1585 = vpop.f32.mrf.mxu0
  %v1586 = vadd.f32 %v1487, %v1585
  %v1587 = vpop.f32.mrf.mxu0
  %v1588 = vadd.f32 %v1489, %v1587
  %1589 = vmatmul.bf16.gmra.mxu0 %v1411
  %v1590 = vpop.f32.mrf.mxu0
  %v1591 = vadd.f32 %v1492, %v1590
  %v1592 = vpop.f32.mrf.mxu0
  %v1593 = vadd.f32 %v1494, %v1592
  %1594 = vmatmul.bf16.gmra.mxu0 %v1414
  %v1595 = vpop.f32.mrf.mxu0
  %v1596 = vadd.f32 %v1497, %v1595
  %v1597 = vpop.f32.mrf.mxu0
  %v1598 = vadd.f32 %v1499, %v1597
  %1599 = vmatmul.bf16.gmra.mxu0 %v1417
  %v1600 = vpop.f32.mrf.mxu0
  %v1601 = vadd.f32 %v1502, %v1600
  %v1602 = vpop.f32.mrf.mxu0
  %v1603 = vadd.f32 %v1504, %v1602
  %1604 = vmatmul.bf16.gmra.mxu0 %v1420
  %v1605 = vpop.f32.mrf.mxu0
  %v1606 = vadd.f32 %v1507, %v1605
  %v1607 = vpop.f32.mrf.mxu0
  %v1608 = vadd.f32 %v1509, %v1607
  %1609 = vmatmul.bf16.gmra.mxu0 %v1423
  %v1610 = vpop.f32.mrf.mxu0
  %v1611 = vadd.f32 %v1512, %v1610
  %v1612 = vpop.f32.mrf.mxu0
  %v1613 = vadd.f32 %v1514, %v1612
  %1614 = vmatmul.bf16.gmra.mxu0 %v1426
  %v1615 = vpop.f32.mrf.mxu0
  %v1616 = vadd.f32 %v1517, %v1615
  %v1617 = vpop.f32.mrf.mxu0
  %v1618 = vadd.f32 %v1519, %v1617
  %1619 = vmatmul.bf16.gmra.mxu0 %v1429
  %v1620 = vpop.f32.mrf.mxu0
  %v1621 = vadd.f32 %v1522, %v1620
  %v1622 = vpop.f32.mrf.mxu0
  %v1623 = vadd.f32 %v1524, %v1622
  %1624 = vmatmul.bf16.gmra.mxu0 %v1432
  %v1625 = vpop.f32.mrf.mxu0
  %v1626 = vadd.f32 %v1527, %v1625
  %v1627 = vpop.f32.mrf.mxu0
  %v1628 = vadd.f32 %v1529, %v1627
  %1629 = vmatmul.bf16.gmra.mxu0 %v1435
  %v1630 = vpop.f32.mrf.mxu0
  %v1631 = vadd.f32 %v1532, %v1630
  %v1632 = vpop.f32.mrf.mxu0
  %v1633 = vadd.f32 %v1534, %v1632
  %1634 = vdwg.mxu0
  %v1635 = vmax.f32 %v1238, %v1546
  %v1636 = vmax.f32 %v1239, %v1548
  %v1637 = vmax.f32 %v1240, %v1551
  %v1638 = vmax.f32 %v1241, %v1553
  %v1639 = vmax.f32 %v1242, %v1556
  %v1640 = vmax.f32 %v1243, %v1558
  %v1641 = vmax.f32 %v1244, %v1561
  %v1642 = vmax.f32 %v1245, %v1563
  %v1643 = vmax.f32 %v1246, %v1566
  %v1644 = vmax.f32 %v1247, %v1568
  %v1645 = vmax.f32 %v1248, %v1571
  %v1646 = vmax.f32 %v1249, %v1573
  %v1647 = vmax.f32 %v1250, %v1576
  %v1648 = vmax.f32 %v1251, %v1578
  %v1649 = vmax.f32 %v1252, %v1581
  %v1650 = vmax.f32 %v1253, %v1583
  %v1651 = vmax.f32 %v1254, %v1586
  %v1652 = vmax.f32 %v1255, %v1588
  %v1653 = vmax.f32 %v1256, %v1591
  %v1654 = vmax.f32 %v1257, %v1593
  %v1655 = vmax.f32 %v1258, %v1596
  %v1656 = vmax.f32 %v1259, %v1598
  %v1657 = vmax.f32 %v1260, %v1601
  %v1658 = vmax.f32 %v1261, %v1603
  %v1659 = vmax.f32 %v1262, %v1606
  %v1660 = vmax.f32 %v1263, %v1608
  %v1661 = vmax.f32 %v1264, %v1611
  %v1662 = vmax.f32 %v1265, %v1613
  %v1663 = vmax.f32 %v1266, %v1616
  %v1664 = vmax.f32 %v1267, %v1618
  %v1665 = vmax.f32 %v1268, %v1621
  %v1666 = vmax.f32 %v1269, %v1623
  %v1667 = vmax.f32 %v1270, %v1626
  %v1668 = vmax.f32 %v1271, %v1628
  %v1669 = vmax.f32 %v1272, %v1631
  %v1670 = vmax.f32 %v1273, %v1633
  %v1671 = vld [vmem:[%s2] sm:$0x1]
  %v1673 = vperm.slane %v1671, 0
  %v1675 = vadd.f32 %v1635, %v1673
  %v1676 = vadd.f32 %v1636, %v1673
  %v1677 = vadd.f32 %v1637, %v1673
  %v1678 = vadd.f32 %v1638, %v1673
  %v1679 = vadd.f32 %v1639, %v1673
  %v1680 = vadd.f32 %v1640, %v1673
  %v1681 = vadd.f32 %v1641, %v1673
  %v1682 = vadd.f32 %v1642, %v1673
  %v1683 = vadd.f32 %v1643, %v1673
  %v1684 = vadd.f32 %v1644, %v1673
  %v1685 = vadd.f32 %v1645, %v1673
  %v1686 = vadd.f32 %v1646, %v1673
  %v1687 = vadd.f32 %v1647, %v1673
  %v1688 = vadd.f32 %v1648, %v1673
  %v1689 = vadd.f32 %v1649, %v1673
  %v1690 = vadd.f32 %v1650, %v1673
  %v1691 = vadd.f32 %v1651, %v1673
  %v1692 = vadd.f32 %v1652, %v1673
  %v1693 = vadd.f32 %v1653, %v1673
  %v1694 = vadd.f32 %v1654, %v1673
  %v1695 = vadd.f32 %v1655, %v1673
  %v1696 = vadd.f32 %v1656, %v1673
  %v1697 = vadd.f32 %v1657, %v1673
  %v1698 = vadd.f32 %v1658, %v1673
  %v1699 = vadd.f32 %v1659, %v1673
  %v1700 = vadd.f32 %v1660, %v1673
  %v1701 = vadd.f32 %v1661, %v1673
  %v1702 = vadd.f32 %v1662, %v1673
  %v1703 = vadd.f32 %v1663, %v1673
  %v1704 = vadd.f32 %v1664, %v1673
  %v1705 = vadd.f32 %v1665, %v1673
  %v1706 = vadd.f32 %v1666, %v1673
  %v1707 = vadd.f32 %v1667, %v1673
  %v1708 = vadd.f32 %v1668, %v1673
  %v1709 = vadd.f32 %v1669, %v1673
  %v1710 = vadd.f32 %v1670, %v1673
  %v1711 = vmax.f32 %v1675, 0.0
  %v1712 = vmax.f32 %v1676, 0.0
  %v1713 = vmax.f32 %v1677, 0.0
  %v1714 = vmax.f32 %v1678, 0.0
  %v1715 = vmax.f32 %v1679, 0.0
  %v1716 = vmax.f32 %v1680, 0.0
  %v1717 = vmax.f32 %v1681, 0.0
  %v1718 = vmax.f32 %v1682, 0.0
  %v1719 = vmax.f32 %v1683, 0.0
  %v1720 = vmax.f32 %v1684, 0.0
  %v1721 = vmax.f32 %v1685, 0.0
  %v1722 = vmax.f32 %v1686, 0.0
  %v1723 = vmax.f32 %v1687, 0.0
  %v1724 = vmax.f32 %v1688, 0.0
  %v1725 = vmax.f32 %v1689, 0.0
  %v1726 = vmax.f32 %v1690, 0.0
  %v1727 = vmax.f32 %v1691, 0.0
  %v1728 = vmax.f32 %v1692, 0.0
  %v1729 = vmax.f32 %v1693, 0.0
  %v1730 = vmax.f32 %v1694, 0.0
  %v1731 = vmax.f32 %v1695, 0.0
  %v1732 = vmax.f32 %v1696, 0.0
  %v1733 = vmax.f32 %v1697, 0.0
  %v1734 = vmax.f32 %v1698, 0.0
  %v1735 = vmax.f32 %v1699, 0.0
  %v1736 = vmax.f32 %v1700, 0.0
  %v1737 = vmax.f32 %v1701, 0.0
  %v1738 = vmax.f32 %v1702, 0.0
  %v1739 = vmax.f32 %v1703, 0.0
  %v1740 = vmax.f32 %v1704, 0.0
  %v1741 = vmax.f32 %v1705, 0.0
  %v1742 = vmax.f32 %v1706, 0.0
  %v1743 = vmax.f32 %v1707, 0.0
  %v1744 = vmax.f32 %v1708, 0.0
  %v1745 = vmax.f32 %v1709, 0.0
  %v1746 = vmax.f32 %v1710, 0.0
  %1747 = vst [vmem:[%s3] sm:$0xff] %v1711
  %1748 = vst [vmem:[%s3 + $0x8] sm:$0xff] %v1712
  %1749 = vst [vmem:[%s3 + $0x10] sm:$0xff] %v1713
  %1750 = vst [vmem:[%s3 + $0x18] sm:$0xff] %v1714
  %1751 = vst [vmem:[%s3 + $0x20] sm:$0xff] %v1715
  %1752 = vst [vmem:[%s3 + $0x28] sm:$0xff] %v1716
  %1753 = vst [vmem:[%s3 + $0x30] sm:$0xff] %v1717
  %1754 = vst [vmem:[%s3 + $0x38] sm:$0xff] %v1718
  %1755 = vst [vmem:[%s3 + $0x40] sm:$0xff] %v1719
  %1756 = vst [vmem:[%s3 + $0x48] sm:$0xff] %v1720
  %1757 = vst [vmem:[%s3 + $0x50] sm:$0xff] %v1721
  %1758 = vst [vmem:[%s3 + $0x58] sm:$0xff] %v1722
  %1759 = vst [vmem:[%s3 + $0x60] sm:$0xff] %v1723
  %1760 = vst [vmem:[%s3 + $0x68] sm:$0xff] %v1724
  %1761 = vst [vmem:[%s3 + $0x70] sm:$0xff] %v1725
  %1762 = vst [vmem:[%s3 + $0x78] sm:$0xff] %v1726
  %1763 = vst [vmem:[%s3 + $0x80] sm:$0xff] %v1727
  %1764 = vst [vmem:[%s3 + $0x88] sm:$0xff] %v1728
  %1765 = vst [vmem:[%s3 + $0x90] sm:$0xff] %v1729
  %1766 = vst [vmem:[%s3 + $0x98] sm:$0xff] %v1730
  %1767 = vst [vmem:[%s3 + $0xa0] sm:$0xff] %v1731
  %1768 = vst [vmem:[%s3 + $0xa8] sm:$0xff] %v1732
  %1769 = vst [vmem:[%s3 + $0xb0] sm:$0xff] %v1733
  %1770 = vst [vmem:[%s3 + $0xb8] sm:$0xff] %v1734
  %1771 = vst [vmem:[%s3 + $0xc0] sm:$0xff] %v1735
  %1772 = vst [vmem:[%s3 + $0xc8] sm:$0xff] %v1736
  %1773 = vst [vmem:[%s3 + $0xd0] sm:$0xff] %v1737
  %1774 = vst [vmem:[%s3 + $0xd8] sm:$0xff] %v1738
  %1775 = vst [vmem:[%s3 + $0xe0] sm:$0xff] %v1739
  %1776 = vst [vmem:[%s3 + $0xe8] sm:$0xff] %v1740
  %1777 = vst [vmem:[%s3 + $0xf0] sm:$0xff] %v1741
  %1778 = vst [vmem:[%s3 + $0xf8] sm:$0xff] %v1742
  %1779 = vst [vmem:[%s3 + $0x100] sm:$0xff] %v1743
  %1780 = vst [vmem:[%s3 + $0x108] sm:$0xff] %v1744
  %1781 = vst [vmem:[%s3 + $0x110] sm:$0xff] %v1745
  %1782 = vst [vmem:[%s3 + $0x118] sm:$0xff] %v1746
  // Predicated region
  $region14: #{lenet_forward.3} parent=0 // pred_check
    _
  $region15: #{lenet_forward.3} parent=0 // pred_check_branch
    %1784 = sbr.rel (0) target = $region17
  $region16: #{lenet_forward.3} parent=0 // pred_region
    _
  $region17: #{lenet_forward.3} parent=0 // pred_fallthru
    _
  // Predicated region
  $region18: #{lenet_forward.3} parent=0 // pred_check
    _
  $region19: #{lenet_forward.3} parent=0 // pred_check_branch
    %1786 = sbr.rel (0) target = $region21
  $region20: #{lenet_forward.3} parent=0 // pred_region
    _
  $region21: #{lenet_forward.3} parent=0 // pred_fallthru
    _

// kernel: lenet_forward.4
$region0: #{lenet_forward.4}
  #allocation0 [shape = 'u32[]', space=smem, size = 0x4, offset = 0x4, fixed_abs, tag = 'smem constant byte address 0x4 - core index']
  #allocation1 [shape = 'u32[72,128]{1,0:T(1,128)}', space=vmem, size = 0x9000, scoped, tag = 'internal scratch']
  %s0 = inlined_call_operand.vmem [shape: f32[4,32,600], index: 0, kind: input, shape index: {}]
  %s1 = inlined_call_operand.vmem [shape: bf16[600,128], index: 1, kind: input, shape index: {}]
  %s2 = inlined_call_operand.vmem [shape: f32[1,128], index: 2, kind: input, shape index: {}]
  %s3 = inlined_call_operand.vmem [shape: f32[32,128], index: 3, kind: output, shape index: {}]
  %s4 = sld [smem:[#allocation0]]
  $region22: #{lenet_forward.4} parent=0
    _
  %s6 = ssub.s32 1, %s4
  %s7 = scalar_select 0, %s6, %s4
  // Predicated region
  $region2: #{lenet_forward.4} parent=0 // pred_check
    _
  $region3: #{lenet_forward.4} parent=0 // pred_check_branch
    %9 = sbr.rel (0) target = $region5
  $region4: #{lenet_forward.4} parent=0 // pred_region
    _
  $region5: #{lenet_forward.4} parent=0 // pred_fallthru
    _
  // Predicated region
  $region6: #{lenet_forward.4} parent=0 // pred_check
    _
  $region7: #{lenet_forward.4} parent=0 // pred_check_branch
    %11 = sbr.rel (0) target = $region9
  $region8: #{lenet_forward.4} parent=0 // pred_region
    _
  $region9: #{lenet_forward.4} parent=0 // pred_fallthru
    _
  // Predicated region
  $region10: #{lenet_forward.4} parent=0 // pred_check
    _
  $region11: #{lenet_forward.4} parent=0 // pred_check_branch
    %13 = sbr.rel (0) target = $region13
  $region12: #{lenet_forward.4} parent=0 // pred_region
    _
  $region13: #{lenet_forward.4} parent=0 // pred_fallthru
    _
  %v15 = vld [vmem:[%s1] sm:$0xf]
  %v16 = vld [vmem:[%s1 + $0x4] sm:$0xf]
  %v17 = vld [vmem:[%s1 + $0x8] sm:$0xf]
  %v18 = vld [vmem:[%s1 + $0xc] sm:$0xf]
  %v19 = vld [vmem:[%s1 + $0x10] sm:$0xf]
  %v20 = vld [vmem:[%s1 + $0x14] sm:$0xf]
  %v21 = vld [vmem:[%s1 + $0x18] sm:$0xf]
  %v22 = vld [vmem:[%s1 + $0x1c] sm:$0xf]
  %v23 = vld [vmem:[%s1 + $0x20] sm:$0xf]
  %v24 = vld [vmem:[%s1 + $0x24] sm:$0xf]
  %v25 = vld [vmem:[%s1 + $0x28] sm:$0xf]
  %v26 = vld [vmem:[%s1 + $0x2c] sm:$0xf]
  %v27 = vld [vmem:[%s1 + $0x30] sm:$0xf]
  %v28 = vld [vmem:[%s1 + $0x34] sm:$0xf]
  %v29 = vld [vmem:[%s1 + $0x38] sm:$0xf]
  %v30 = vld [vmem:[%s1 + $0x3c] sm:$0xf]
  %v31 = vld [vmem:[%s1 + $0x40] sm:$0xf]
  %v32 = vld [vmem:[%s1 + $0x44] sm:$0xf]
  %v33 = vld [vmem:[%s1 + $0x48] sm:$0xf]
  %v34 = vld [vmem:[%s1 + $0x4c] sm:$0xf]
  %v35 = vld [vmem:[%s1 + $0x50] sm:$0xf]
  %v36 = vld [vmem:[%s1 + $0x54] sm:$0xf]
  %v37 = vld [vmem:[%s1 + $0x58] sm:$0xf]
  %v38 = vld [vmem:[%s1 + $0x5c] sm:$0xf]
  %v39 = vld [vmem:[%s1 + $0x60] sm:$0xf]
  %v40 = vld [vmem:[%s1 + $0x64] sm:$0xf]
  %v41 = vld [vmem:[%s1 + $0x68] sm:$0xf]
  %v42 = vld [vmem:[%s1 + $0x6c] sm:$0xf]
  %v43 = vld [vmem:[%s1 + $0x70] sm:$0xf]
  %v44 = vld [vmem:[%s1 + $0x74] sm:$0xf]
  %v45 = vld [vmem:[%s1 + $0x78] sm:$0xf]
  %v46 = vld [vmem:[%s1 + $0x7c] sm:$0xf]
  %v47 = vld [vmem:[%s1 + $0x80] sm:$0xf]
  %v48 = vld [vmem:[%s1 + $0x84] sm:$0xf]
  %v49 = vld [vmem:[%s1 + $0x88] sm:$0xf]
  %v50 = vld [vmem:[%s1 + $0x8c] sm:$0xf]
  %v51 = vld [vmem:[%s1 + $0x90] sm:$0xf]
  %v52 = vld [vmem:[%s1 + $0x94] sm:$0xf]
  %v53 = vld [vmem:[%s1 + $0x98] sm:$0xf]
  %v54 = vld [vmem:[%s1 + $0x9c] sm:$0xf]
  %v55 = vld [vmem:[%s1 + $0xa0] sm:$0xf]
  %v56 = vld [vmem:[%s1 + $0xa4] sm:$0xf]
  %v57 = vld [vmem:[%s1 + $0xa8] sm:$0xf]
  %v58 = vld [vmem:[%s1 + $0xac] sm:$0xf]
  %v59 = vld [vmem:[%s1 + $0xb0] sm:$0xf]
  %v60 = vld [vmem:[%s1 + $0xb4] sm:$0xf]
  %v61 = vld [vmem:[%s1 + $0xb8] sm:$0xf]
  %v62 = vld [vmem:[%s1 + $0xbc] sm:$0xf]
  %v63 = vld [vmem:[%s1 + $0xc0] sm:$0xf]
  %v64 = vld [vmem:[%s1 + $0xc4] sm:$0xf]
  %v65 = vld [vmem:[%s1 + $0xc8] sm:$0xf]
  %v66 = vld [vmem:[%s1 + $0xcc] sm:$0xf]
  %v67 = vld [vmem:[%s1 + $0xd0] sm:$0xf]
  %v68 = vld [vmem:[%s1 + $0xd4] sm:$0xf]
  %v69 = vld [vmem:[%s1 + $0xd8] sm:$0xf]
  %v70 = vld [vmem:[%s1 + $0xdc] sm:$0xf]
  %v71 = vld [vmem:[%s1 + $0xe0] sm:$0xf]
  %v72 = vld [vmem:[%s1 + $0xe4] sm:$0xf]
  %v73 = vld [vmem:[%s1 + $0xe8] sm:$0xf]
  %v74 = vld [vmem:[%s1 + $0xec] sm:$0xf]
  %v75 = vld [vmem:[%s1 + $0xf0] sm:$0xf]
  %v76 = vld [vmem:[%s1 + $0xf4] sm:$0xf]
  %v77 = vld [vmem:[%s1 + $0xf8] sm:$0xf]
  %v78 = vld [vmem:[%s1 + $0xfc] sm:$0xf]
  %v79 = vld [vmem:[%s1 + $0x100] sm:$0xf]
  %v80 = vld [vmem:[%s1 + $0x104] sm:$0xf]
  %v81 = vld [vmem:[%s1 + $0x108] sm:$0xf]
  %v82 = vld [vmem:[%s1 + $0x10c] sm:$0xf]
  %v83 = vld [vmem:[%s1 + $0x110] sm:$0xf]
  %v84 = vld [vmem:[%s1 + $0x114] sm:$0xf]
  %v85 = vld [vmem:[%s1 + $0x118] sm:$0xf]
  %v86 = vld [vmem:[%s1 + $0x11c] sm:$0xf]
  %v87 = vld [vmem:[%s1 + $0x120] sm:$0xf]
  %v88 = vld [vmem:[%s1 + $0x124] sm:$0xf]
  %v89 = vld [vmem:[%s1 + $0x128] sm:$0xf]
  %v90 = vld [vmem:[%s0] sm:$0xff]
  %v91 = vld [vmem:[%s0 + $0x8] sm:$0xff]
  %v92 = vld [vmem:[%s0 + $0x10] sm:$0xff]
  %v93 = vld [vmem:[%s0 + $0x18] sm:$0xff]
  %v94 = vld [vmem:[%s0 + $0x20] sm:$0xff]
  %v95 = vld [vmem:[%s0 + $0x28] sm:$0xff]
  %v96 = vld [vmem:[%s0 + $0x30] sm:$0xff]
  %v97 = vld [vmem:[%s0 + $0x38] sm:$0xff]
  %v98 = vld [vmem:[%s0 + $0x40] sm:$0xff]
  %v99 = vld [vmem:[%s0 + $0x48] sm:$0xff]
  %v100 = vld [vmem:[%s0 + $0x50] sm:$0xff]
  %v101 = vld [vmem:[%s0 + $0x58] sm:$0xff]
  %v102 = vld [vmem:[%s0 + $0x60] sm:$0xff]
  %v103 = vld [vmem:[%s0 + $0x68] sm:$0xff]
  %v104 = vld [vmem:[%s0 + $0x70] sm:$0xff]
  %v105 = vld [vmem:[%s0 + $0x78] sm:$0xff]
  %v106 = vld [vmem:[%s0 + $0x80] sm:$0xff]
  %v107 = vld [vmem:[%s0 + $0x88] sm:$0xff]
  %v108 = vld [vmem:[%s0 + $0x90] sm:$0xff]
  %v109 = vld [vmem:[%s0 + $0x98] sm:$0xff]
  %v110 = vpack.c.bf16 %v95, %v90
  %v111 = vpack.c.bf16 %v96, %v91
  %v112 = vpack.c.bf16 %v97, %v92
  %v113 = vpack.c.bf16 %v98, %v93
  %v114 = vpack.c.bf16 %v99, %v94
  %v115 = vpack.c.bf16 %v105, %v100
  %v116 = vpack.c.bf16 %v106, %v101
  %v117 = vpack.c.bf16 %v107, %v102
  %v118 = vpack.c.bf16 %v108, %v103
  %v119 = vpack.c.bf16 %v109, %v104
  %v195 = vunpack.c.l.b16 %v15
  %v196 = vunpack.c.l.b16 %v16
  %v197 = vunpack.c.l.b16 %v17
  %v198 = vunpack.c.l.b16 %v18
  %v199 = vunpack.c.l.b16 %v19
  %v200 = vunpack.c.l.b16 %v20
  %v201 = vunpack.c.l.b16 %v21
  %v202 = vunpack.c.l.b16 %v22
  %v203 = vunpack.c.l.b16 %v23
  %v204 = vunpack.c.l.b16 %v24
  %v205 = vunpack.c.l.b16 %v25
  %v206 = vunpack.c.l.b16 %v26
  %v207 = vunpack.c.l.b16 %v27
  %v208 = vunpack.c.l.b16 %v28
  %v209 = vunpack.c.l.b16 %v29
  %v210 = vunpack.c.l.b16 %v30
  %v211 = vunpack.c.l.b16 %v31
  %v212 = vunpack.c.l.b16 %v32
  %v213 = vunpack.c.l.b16 %v33
  %v214 = vunpack.c.l.b16 %v34
  %v215 = vunpack.c.l.b16 %v35
  %v216 = vunpack.c.l.b16 %v36
  %v217 = vunpack.c.l.b16 %v37
  %v218 = vunpack.c.l.b16 %v38
  %v219 = vunpack.c.l.b16 %v39
  %v220 = vunpack.c.l.b16 %v40
  %v221 = vunpack.c.l.b16 %v41
  %v222 = vunpack.c.l.b16 %v42
  %v223 = vunpack.c.l.b16 %v43
  %v224 = vunpack.c.l.b16 %v44
  %v225 = vunpack.c.l.b16 %v45
  %v226 = vunpack.c.l.b16 %v46
  %v227 = vunpack.c.l.b16 %v47
  %v228 = vunpack.c.l.b16 %v48
  %v229 = vunpack.c.l.b16 %v49
  %v230 = vunpack.c.l.b16 %v50
  %v231 = vunpack.c.l.b16 %v51
  %v232 = vunpack.c.l.b16 %v52
  %v233 = vunpack.c.l.b16 %v53
  %v234 = vunpack.c.l.b16 %v54
  %v235 = vunpack.c.l.b16 %v55
  %v236 = vunpack.c.l.b16 %v56
  %v237 = vunpack.c.l.b16 %v57
  %v238 = vunpack.c.l.b16 %v58
  %v239 = vunpack.c.l.b16 %v59
  %v240 = vunpack.c.l.b16 %v60
  %v241 = vunpack.c.l.b16 %v61
  %v242 = vunpack.c.l.b16 %v62
  %v243 = vunpack.c.l.b16 %v63
  %v244 = vunpack.c.l.b16 %v64
  %v245 = vunpack.c.l.b16 %v65
  %v246 = vunpack.c.l.b16 %v66
  %v247 = vunpack.c.l.b16 %v67
  %v248 = vunpack.c.l.b16 %v68
  %v249 = vunpack.c.l.b16 %v69
  %v250 = vunpack.c.l.b16 %v70
  %v251 = vunpack.c.l.b16 %v71
  %v252 = vunpack.c.l.b16 %v72
  %v253 = vunpack.c.l.b16 %v73
  %v254 = vunpack.c.l.b16 %v74
  %v255 = vunpack.c.l.b16 %v75
  %v256 = vunpack.c.l.b16 %v76
  %v257 = vunpack.c.l.b16 %v77
  %v258 = vunpack.c.l.b16 %v78
  %v259 = vunpack.c.l.b16 %v79
  %v260 = vunpack.c.l.b16 %v80
  %v261 = vunpack.c.l.b16 %v81
  %v262 = vunpack.c.l.b16 %v82
  %v263 = vunpack.c.l.b16 %v83
  %v264 = vunpack.c.l.b16 %v84
  %v265 = vunpack.c.l.b16 %v85
  %v266 = vunpack.c.l.b16 %v86
  %v267 = vunpack.c.l.b16 %v87
  %v268 = vunpack.c.l.b16 %v88
  %v269 = vunpack.c.l.b16 %v89
  %v270 = vpack.c.b16 %v196, %v195
  %v271 = vpack.c.b16 %v198, %v197
  %v272 = vpack.c.b16 %v200, %v199
  %v273 = vpack.c.b16 %v202, %v201
  %v274 = vpack.c.b16 %v204, %v203
  %v275 = vpack.c.b16 %v206, %v205
  %v276 = vpack.c.b16 %v208, %v207
  %v277 = vpack.c.b16 %v210, %v209
  %v278 = vpack.c.b16 %v212, %v211
  %v279 = vpack.c.b16 %v214, %v213
  %v280 = vpack.c.b16 %v216, %v215
  %v281 = vpack.c.b16 %v218, %v217
  %v282 = vpack.c.b16 %v220, %v219
  %v283 = vpack.c.b16 %v222, %v221
  %v284 = vpack.c.b16 %v224, %v223
  %v285 = vpack.c.b16 %v226, %v225
  %v286 = vpack.c.b16 %v228, %v227
  %v287 = vpack.c.b16 %v230, %v229
  %v288 = vpack.c.b16 %v232, %v231
  %v289 = vpack.c.b16 %v234, %v233
  %v290 = vpack.c.b16 %v236, %v235
  %v291 = vpack.c.b16 %v238, %v237
  %v292 = vpack.c.b16 %v240, %v239
  %v293 = vpack.c.b16 %v242, %v241
  %v294 = vpack.c.b16 %v244, %v243
  %v295 = vpack.c.b16 %v246, %v245
  %v296 = vpack.c.b16 %v248, %v247
  %v297 = vpack.c.b16 %v250, %v249
  %v298 = vpack.c.b16 %v252, %v251
  %v299 = vpack.c.b16 %v254, %v253
  %v300 = vpack.c.b16 %v256, %v255
  %v301 = vpack.c.b16 %v258, %v257
  %v302 = vpack.c.b16 %v260, %v259
  %v303 = vpack.c.b16 %v262, %v261
  %v304 = vpack.c.b16 %v264, %v263
  %v305 = vpack.c.b16 %v266, %v265
  %v306 = vpack.c.b16 %v268, %v267
  %v307 = vpack.c.b16 %v269, %v269
  %vm345 = vcmask 719872
  %v347 = vsel %vm345, %v114, 0
  %v350 = vsel %vm345, %v119, 0
  %vm352 = vcmask 1043456
  %v354 = vsel %vm352, %v307, 0
  %356 = vmatpush.bf16.msra.mxu0 %v277
  %357 = vmatpush.bf16.msra.mxu0 %v276
  %358 = vmatpush.bf16.msra.mxu0 %v275
  %359 = vmatpush.bf16.msra.mxu0 %v274
  %360 = vmatpush.bf16.msra.mxu0 %v273
  %361 = vmatpush.bf16.msra.mxu0 %v272
  %362 = vmatpush.bf16.msra.mxu0 %v271
  %363 = vmatpush.bf16.msra.mxu0 %v270
  %364 = vmatmul.bf16.gmra.mxu0 %v110
  %v365 = vpop.f32.mrf.mxu0
  %v366 = vadd.f32 0.0, %v365
  %v367 = vpop.f32.mrf.mxu0
  %v368 = vadd.f32 0.0, %v367
  %369 = vmatmul.bf16.gmra.mxu0 %v115
  %v370 = vpop.f32.mrf.mxu0
  %v371 = vadd.f32 0.0, %v370
  %v372 = vpop.f32.mrf.mxu0
  %v373 = vadd.f32 0.0, %v372
  %374 = vdwg.mxu0
  %375 = vmatpush.bf16.msra.mxu0 %v285
  %376 = vmatpush.bf16.msra.mxu0 %v284
  %377 = vmatpush.bf16.msra.mxu0 %v283
  %378 = vmatpush.bf16.msra.mxu0 %v282
  %379 = vmatpush.bf16.msra.mxu0 %v281
  %380 = vmatpush.bf16.msra.mxu0 %v280
  %381 = vmatpush.bf16.msra.mxu0 %v279
  %382 = vmatpush.bf16.msra.mxu0 %v278
  %383 = vmatmul.bf16.gmra.mxu0 %v111
  %v384 = vpop.f32.mrf.mxu0
  %v385 = vadd.f32 %v366, %v384
  %v386 = vpop.f32.mrf.mxu0
  %v387 = vadd.f32 %v368, %v386
  %388 = vmatmul.bf16.gmra.mxu0 %v116
  %v389 = vpop.f32.mrf.mxu0
  %v390 = vadd.f32 %v371, %v389
  %v391 = vpop.f32.mrf.mxu0
  %v392 = vadd.f32 %v373, %v391
  %393 = vdwg.mxu0
  %394 = vmatpush.bf16.msra.mxu0 %v293
  %395 = vmatpush.bf16.msra.mxu0 %v292
  %396 = vmatpush.bf16.msra.mxu0 %v291
  %397 = vmatpush.bf16.msra.mxu0 %v290
  %398 = vmatpush.bf16.msra.mxu0 %v289
  %399 = vmatpush.bf16.msra.mxu0 %v288
  %400 = vmatpush.bf16.msra.mxu0 %v287
  %401 = vmatpush.bf16.msra.mxu0 %v286
  %402 = vmatmul.bf16.gmra.mxu0 %v112
  %v403 = vpop.f32.mrf.mxu0
  %v404 = vadd.f32 %v385, %v403
  %v405 = vpop.f32.mrf.mxu0
  %v406 = vadd.f32 %v387, %v405
  %407 = vmatmul.bf16.gmra.mxu0 %v117
  %v408 = vpop.f32.mrf.mxu0
  %v409 = vadd.f32 %v390, %v408
  %v410 = vpop.f32.mrf.mxu0
  %v411 = vadd.f32 %v392, %v410
  %412 = vdwg.mxu0
  %413 = vmatpush.bf16.msra.mxu0 %v301
  %414 = vmatpush.bf16.msra.mxu0 %v300
  %415 = vmatpush.bf16.msra.mxu0 %v299
  %416 = vmatpush.bf16.msra.mxu0 %v298
  %417 = vmatpush.bf16.msra.mxu0 %v297
  %418 = vmatpush.bf16.msra.mxu0 %v296
  %419 = vmatpush.bf16.msra.mxu0 %v295
  %420 = vmatpush.bf16.msra.mxu0 %v294
  %421 = vmatmul.bf16.gmra.mxu0 %v113
  %v422 = vpop.f32.mrf.mxu0
  %v423 = vadd.f32 %v404, %v422
  %v424 = vpop.f32.mrf.mxu0
  %v425 = vadd.f32 %v406, %v424
  %426 = vmatmul.bf16.gmra.mxu0 %v118
  %v427 = vpop.f32.mrf.mxu0
  %v428 = vadd.f32 %v409, %v427
  %v429 = vpop.f32.mrf.mxu0
  %v430 = vadd.f32 %v411, %v429
  %431 = vdwg.mxu0
  %432 = vmatpush.bf16.msra.mxu0 0
  %433 = vmatpush.bf16.msra.mxu0 0
  %434 = vmatpush.bf16.msra.mxu0 %v354
  %435 = vmatpush.bf16.msra.mxu0 %v306
  %436 = vmatpush.bf16.msra.mxu0 %v305
  %437 = vmatpush.bf16.msra.mxu0 %v304
  %438 = vmatpush.bf16.msra.mxu0 %v303
  %439 = vmatpush.bf16.msra.mxu0 %v302
  %440 = vmatmul.bf16.gmra.mxu0 %v347
  %v441 = vpop.f32.mrf.mxu0
  %v442 = vadd.f32 %v423, %v441
  %v443 = vpop.f32.mrf.mxu0
  %v444 = vadd.f32 %v425, %v443
  %445 = vmatmul.bf16.gmra.mxu0 %v350
  %v446 = vpop.f32.mrf.mxu0
  %v447 = vadd.f32 %v428, %v446
  %v448 = vpop.f32.mrf.mxu0
  %v449 = vadd.f32 %v430, %v448
  %450 = vdwg.mxu0
  %s451 = scalar_lea.vmem %s0, 160
  %v452 = vld [vmem:[%s451] sm:$0xff]
  %v453 = vld [vmem:[%s451 + $0x8] sm:$0xff]
  %v454 = vld [vmem:[%s451 + $0x10] sm:$0xff]
  %v455 = vld [vmem:[%s451 + $0x18] sm:$0xff]
  %v456 = vld [vmem:[%s451 + $0x20] sm:$0xff]
  %v457 = vld [vmem:[%s451 + $0x28] sm:$0xff]
  %v458 = vld [vmem:[%s451 + $0x30] sm:$0xff]
  %v459 = vld [vmem:[%s451 + $0x38] sm:$0xff]
  %v460 = vld [vmem:[%s451 + $0x40] sm:$0xff]
  %v461 = vld [vmem:[%s451 + $0x48] sm:$0xff]
  %v462 = vld [vmem:[%s451 + $0x50] sm:$0xff]
  %v463 = vld [vmem:[%s451 + $0x58] sm:$0xff]
  %v464 = vld [vmem:[%s451 + $0x60] sm:$0xff]
  %v465 = vld [vmem:[%s451 + $0x68] sm:$0xff]
  %v466 = vld [vmem:[%s451 + $0x70] sm:$0xff]
  %v467 = vld [vmem:[%s451 + $0x78] sm:$0xff]
  %v468 = vld [vmem:[%s451 + $0x80] sm:$0xff]
  %v469 = vld [vmem:[%s451 + $0x88] sm:$0xff]
  %v470 = vld [vmem:[%s451 + $0x90] sm:$0xff]
  %v471 = vld [vmem:[%s451 + $0x98] sm:$0xff]
  %v472 = vpack.c.bf16 %v457, %v452
  %v473 = vpack.c.bf16 %v458, %v453
  %v474 = vpack.c.bf16 %v459, %v454
  %v475 = vpack.c.bf16 %v460, %v455
  %v476 = vpack.c.bf16 %v461, %v456
  %v477 = vpack.c.bf16 %v467, %v462
  %v478 = vpack.c.bf16 %v468, %v463
  %v479 = vpack.c.bf16 %v469, %v464
  %v480 = vpack.c.bf16 %v470, %v465
  %v481 = vpack.c.bf16 %v471, %v466
  %v483 = vsel %vm345, %v476, 0
  %v486 = vsel %vm345, %v481, 0
  %488 = vmatpush.bf16.msra.mxu0 %v277
  %489 = vmatpush.bf16.msra.mxu0 %v276
  %490 = vmatpush.bf16.msra.mxu0 %v275
  %491 = vmatpush.bf16.msra.mxu0 %v274
  %492 = vmatpush.bf16.msra.mxu0 %v273
  %493 = vmatpush.bf16.msra.mxu0 %v272
  %494 = vmatpush.bf16.msra.mxu0 %v271
  %495 = vmatpush.bf16.msra.mxu0 %v270
  %496 = vmatmul.bf16.gmra.mxu0 %v472
  %v497 = vpop.f32.mrf.mxu0
  %v498 = vadd.f32 0.0, %v497
  %v499 = vpop.f32.mrf.mxu0
  %v500 = vadd.f32 0.0, %v499
  %501 = vmatmul.bf16.gmra.mxu0 %v477
  %v502 = vpop.f32.mrf.mxu0
  %v503 = vadd.f32 0.0, %v502
  %v504 = vpop.f32.mrf.mxu0
  %v505 = vadd.f32 0.0, %v504
  %506 = vdwg.mxu0
  %507 = vmatpush.bf16.msra.mxu0 %v285
  %508 = vmatpush.bf16.msra.mxu0 %v284
  %509 = vmatpush.bf16.msra.mxu0 %v283
  %510 = vmatpush.bf16.msra.mxu0 %v282
  %511 = vmatpush.bf16.msra.mxu0 %v281
  %512 = vmatpush.bf16.msra.mxu0 %v280
  %513 = vmatpush.bf16.msra.mxu0 %v279
  %514 = vmatpush.bf16.msra.mxu0 %v278
  %515 = vmatmul.bf16.gmra.mxu0 %v473
  %v516 = vpop.f32.mrf.mxu0
  %v517 = vadd.f32 %v498, %v516
  %v518 = vpop.f32.mrf.mxu0
  %v519 = vadd.f32 %v500, %v518
  %520 = vmatmul.bf16.gmra.mxu0 %v478
  %v521 = vpop.f32.mrf.mxu0
  %v522 = vadd.f32 %v503, %v521
  %v523 = vpop.f32.mrf.mxu0
  %v524 = vadd.f32 %v505, %v523
  %525 = vdwg.mxu0
  %526 = vmatpush.bf16.msra.mxu0 %v293
  %527 = vmatpush.bf16.msra.mxu0 %v292
  %528 = vmatpush.bf16.msra.mxu0 %v291
  %529 = vmatpush.bf16.msra.mxu0 %v290
  %530 = vmatpush.bf16.msra.mxu0 %v289
  %531 = vmatpush.bf16.msra.mxu0 %v288
  %532 = vmatpush.bf16.msra.mxu0 %v287
  %533 = vmatpush.bf16.msra.mxu0 %v286
  %534 = vmatmul.bf16.gmra.mxu0 %v474
  %v535 = vpop.f32.mrf.mxu0
  %v536 = vadd.f32 %v517, %v535
  %v537 = vpop.f32.mrf.mxu0
  %v538 = vadd.f32 %v519, %v537
  %539 = vmatmul.bf16.gmra.mxu0 %v479
  %v540 = vpop.f32.mrf.mxu0
  %v541 = vadd.f32 %v522, %v540
  %v542 = vpop.f32.mrf.mxu0
  %v543 = vadd.f32 %v524, %v542
  %544 = vdwg.mxu0
  %545 = vmatpush.bf16.msra.mxu0 %v301
  %546 = vmatpush.bf16.msra.mxu0 %v300
  %547 = vmatpush.bf16.msra.mxu0 %v299
  %548 = vmatpush.bf16.msra.mxu0 %v298
  %549 = vmatpush.bf16.msra.mxu0 %v297
  %550 = vmatpush.bf16.msra.mxu0 %v296
  %551 = vmatpush.bf16.msra.mxu0 %v295
  %552 = vmatpush.bf16.msra.mxu0 %v294
  %553 = vmatmul.bf16.gmra.mxu0 %v475
  %v554 = vpop.f32.mrf.mxu0
  %v555 = vadd.f32 %v536, %v554
  %v556 = vpop.f32.mrf.mxu0
  %v557 = vadd.f32 %v538, %v556
  %558 = vmatmul.bf16.gmra.mxu0 %v480
  %v559 = vpop.f32.mrf.mxu0
  %v560 = vadd.f32 %v541, %v559
  %v561 = vpop.f32.mrf.mxu0
  %v562 = vadd.f32 %v543, %v561
  %563 = vdwg.mxu0
  %564 = vmatpush.bf16.msra.mxu0 0
  %565 = vmatpush.bf16.msra.mxu0 0
  %566 = vmatpush.bf16.msra.mxu0 %v354
  %567 = vmatpush.bf16.msra.mxu0 %v306
  %568 = vmatpush.bf16.msra.mxu0 %v305
  %569 = vmatpush.bf16.msra.mxu0 %v304
  %570 = vmatpush.bf16.msra.mxu0 %v303
  %571 = vmatpush.bf16.msra.mxu0 %v302
  %572 = vmatmul.bf16.gmra.mxu0 %v483
  %v573 = vpop.f32.mrf.mxu0
  %v574 = vadd.f32 %v555, %v573
  %v575 = vpop.f32.mrf.mxu0
  %v576 = vadd.f32 %v557, %v575
  %577 = vmatmul.bf16.gmra.mxu0 %v486
  %v578 = vpop.f32.mrf.mxu0
  %v579 = vadd.f32 %v560, %v578
  %v580 = vpop.f32.mrf.mxu0
  %v581 = vadd.f32 %v562, %v580
  %582 = vdwg.mxu0
  %v583 = vmax.f32 %v442, %v574
  %v584 = vmax.f32 %v444, %v576
  %v585 = vmax.f32 %v447, %v579
  %v586 = vmax.f32 %v449, %v581
  %s587 = scalar_lea.vmem %s0, 320
  %v588 = vld [vmem:[%s587] sm:$0xff]
  %v589 = vld [vmem:[%s587 + $0x8] sm:$0xff]
  %v590 = vld [vmem:[%s587 + $0x10] sm:$0xff]
  %v591 = vld [vmem:[%s587 + $0x18] sm:$0xff]
  %v592 = vld [vmem:[%s587 + $0x20] sm:$0xff]
  %v593 = vld [vmem:[%s587 + $0x28] sm:$0xff]
  %v594 = vld [vmem:[%s587 + $0x30] sm:$0xff]
  %v595 = vld [vmem:[%s587 + $0x38] sm:$0xff]
  %v596 = vld [vmem:[%s587 + $0x40] sm:$0xff]
  %v597 = vld [vmem:[%s587 + $0x48] sm:$0xff]
  %v598 = vld [vmem:[%s587 + $0x50] sm:$0xff]
  %v599 = vld [vmem:[%s587 + $0x58] sm:$0xff]
  %v600 = vld [vmem:[%s587 + $0x60] sm:$0xff]
  %v601 = vld [vmem:[%s587 + $0x68] sm:$0xff]
  %v602 = vld [vmem:[%s587 + $0x70] sm:$0xff]
  %v603 = vld [vmem:[%s587 + $0x78] sm:$0xff]
  %v604 = vld [vmem:[%s587 + $0x80] sm:$0xff]
  %v605 = vld [vmem:[%s587 + $0x88] sm:$0xff]
  %v606 = vld [vmem:[%s587 + $0x90] sm:$0xff]
  %v607 = vld [vmem:[%s587 + $0x98] sm:$0xff]
  %v608 = vpack.c.bf16 %v593, %v588
  %v609 = vpack.c.bf16 %v594, %v589
  %v610 = vpack.c.bf16 %v595, %v590
  %v611 = vpack.c.bf16 %v596, %v591
  %v612 = vpack.c.bf16 %v597, %v592
  %v613 = vpack.c.bf16 %v603, %v598
  %v614 = vpack.c.bf16 %v604, %v599
  %v615 = vpack.c.bf16 %v605, %v600
  %v616 = vpack.c.bf16 %v606, %v601
  %v617 = vpack.c.bf16 %v607, %v602
  %v619 = vsel %vm345, %v612, 0
  %v622 = vsel %vm345, %v617, 0
  %624 = vmatpush.bf16.msra.mxu0 %v277
  %625 = vmatpush.bf16.msra.mxu0 %v276
  %626 = vmatpush.bf16.msra.mxu0 %v275
  %627 = vmatpush.bf16.msra.mxu0 %v274
  %628 = vmatpush.bf16.msra.mxu0 %v273
  %629 = vmatpush.bf16.msra.mxu0 %v272
  %630 = vmatpush.bf16.msra.mxu0 %v271
  %631 = vmatpush.bf16.msra.mxu0 %v270
  %632 = vmatmul.bf16.gmra.mxu0 %v608
  %v633 = vpop.f32.mrf.mxu0
  %v634 = vadd.f32 0.0, %v633
  %v635 = vpop.f32.mrf.mxu0
  %v636 = vadd.f32 0.0, %v635
  %637 = vmatmul.bf16.gmra.mxu0 %v613
  %v638 = vpop.f32.mrf.mxu0
  %v639 = vadd.f32 0.0, %v638
  %v640 = vpop.f32.mrf.mxu0
  %v641 = vadd.f32 0.0, %v640
  %642 = vdwg.mxu0
  %643 = vmatpush.bf16.msra.mxu0 %v285
  %644 = vmatpush.bf16.msra.mxu0 %v284
  %645 = vmatpush.bf16.msra.mxu0 %v283
  %646 = vmatpush.bf16.msra.mxu0 %v282
  %647 = vmatpush.bf16.msra.mxu0 %v281
  %648 = vmatpush.bf16.msra.mxu0 %v280
  %649 = vmatpush.bf16.msra.mxu0 %v279
  %650 = vmatpush.bf16.msra.mxu0 %v278
  %651 = vmatmul.bf16.gmra.mxu0 %v609
  %v652 = vpop.f32.mrf.mxu0
  %v653 = vadd.f32 %v634, %v652
  %v654 = vpop.f32.mrf.mxu0
  %v655 = vadd.f32 %v636, %v654
  %656 = vmatmul.bf16.gmra.mxu0 %v614
  %v657 = vpop.f32.mrf.mxu0
  %v658 = vadd.f32 %v639, %v657
  %v659 = vpop.f32.mrf.mxu0
  %v660 = vadd.f32 %v641, %v659
  %661 = vdwg.mxu0
  %662 = vmatpush.bf16.msra.mxu0 %v293
  %663 = vmatpush.bf16.msra.mxu0 %v292
  %664 = vmatpush.bf16.msra.mxu0 %v291
  %665 = vmatpush.bf16.msra.mxu0 %v290
  %666 = vmatpush.bf16.msra.mxu0 %v289
  %667 = vmatpush.bf16.msra.mxu0 %v288
  %668 = vmatpush.bf16.msra.mxu0 %v287
  %669 = vmatpush.bf16.msra.mxu0 %v286
  %670 = vmatmul.bf16.gmra.mxu0 %v610
  %v671 = vpop.f32.mrf.mxu0
  %v672 = vadd.f32 %v653, %v671
  %v673 = vpop.f32.mrf.mxu0
  %v674 = vadd.f32 %v655, %v673
  %675 = vmatmul.bf16.gmra.mxu0 %v615
  %v676 = vpop.f32.mrf.mxu0
  %v677 = vadd.f32 %v658, %v676
  %v678 = vpop.f32.mrf.mxu0
  %v679 = vadd.f32 %v660, %v678
  %680 = vdwg.mxu0
  %681 = vmatpush.bf16.msra.mxu0 %v301
  %682 = vmatpush.bf16.msra.mxu0 %v300
  %683 = vmatpush.bf16.msra.mxu0 %v299
  %684 = vmatpush.bf16.msra.mxu0 %v298
  %685 = vmatpush.bf16.msra.mxu0 %v297
  %686 = vmatpush.bf16.msra.mxu0 %v296
  %687 = vmatpush.bf16.msra.mxu0 %v295
  %688 = vmatpush.bf16.msra.mxu0 %v294
  %689 = vmatmul.bf16.gmra.mxu0 %v611
  %v690 = vpop.f32.mrf.mxu0
  %v691 = vadd.f32 %v672, %v690
  %v692 = vpop.f32.mrf.mxu0
  %v693 = vadd.f32 %v674, %v692
  %694 = vmatmul.bf16.gmra.mxu0 %v616
  %v695 = vpop.f32.mrf.mxu0
  %v696 = vadd.f32 %v677, %v695
  %v697 = vpop.f32.mrf.mxu0
  %v698 = vadd.f32 %v679, %v697
  %699 = vdwg.mxu0
  %700 = vmatpush.bf16.msra.mxu0 0
  %701 = vmatpush.bf16.msra.mxu0 0
  %702 = vmatpush.bf16.msra.mxu0 %v354
  %703 = vmatpush.bf16.msra.mxu0 %v306
  %704 = vmatpush.bf16.msra.mxu0 %v305
  %705 = vmatpush.bf16.msra.mxu0 %v304
  %706 = vmatpush.bf16.msra.mxu0 %v303
  %707 = vmatpush.bf16.msra.mxu0 %v302
  %708 = vmatmul.bf16.gmra.mxu0 %v619
  %v709 = vpop.f32.mrf.mxu0
  %v710 = vadd.f32 %v691, %v709
  %v711 = vpop.f32.mrf.mxu0
  %v712 = vadd.f32 %v693, %v711
  %713 = vmatmul.bf16.gmra.mxu0 %v622
  %v714 = vpop.f32.mrf.mxu0
  %v715 = vadd.f32 %v696, %v714
  %v716 = vpop.f32.mrf.mxu0
  %v717 = vadd.f32 %v698, %v716
  %718 = vdwg.mxu0
  %v719 = vmax.f32 %v583, %v710
  %v720 = vmax.f32 %v584, %v712
  %v721 = vmax.f32 %v585, %v715
  %v722 = vmax.f32 %v586, %v717
  %s723 = scalar_lea.vmem %s0, 480
  %v724 = vld [vmem:[%s723] sm:$0xff]
  %v725 = vld [vmem:[%s723 + $0x8] sm:$0xff]
  %v726 = vld [vmem:[%s723 + $0x10] sm:$0xff]
  %v727 = vld [vmem:[%s723 + $0x18] sm:$0xff]
  %v728 = vld [vmem:[%s723 + $0x20] sm:$0xff]
  %v729 = vld [vmem:[%s723 + $0x28] sm:$0xff]
  %v730 = vld [vmem:[%s723 + $0x30] sm:$0xff]
  %v731 = vld [vmem:[%s723 + $0x38] sm:$0xff]
  %v732 = vld [vmem:[%s723 + $0x40] sm:$0xff]
  %v733 = vld [vmem:[%s723 + $0x48] sm:$0xff]
  %v734 = vld [vmem:[%s723 + $0x50] sm:$0xff]
  %v735 = vld [vmem:[%s723 + $0x58] sm:$0xff]
  %v736 = vld [vmem:[%s723 + $0x60] sm:$0xff]
  %v737 = vld [vmem:[%s723 + $0x68] sm:$0xff]
  %v738 = vld [vmem:[%s723 + $0x70] sm:$0xff]
  %v739 = vld [vmem:[%s723 + $0x78] sm:$0xff]
  %v740 = vld [vmem:[%s723 + $0x80] sm:$0xff]
  %v741 = vld [vmem:[%s723 + $0x88] sm:$0xff]
  %v742 = vld [vmem:[%s723 + $0x90] sm:$0xff]
  %v743 = vld [vmem:[%s723 + $0x98] sm:$0xff]
  %v744 = vpack.c.bf16 %v729, %v724
  %v745 = vpack.c.bf16 %v730, %v725
  %v746 = vpack.c.bf16 %v731, %v726
  %v747 = vpack.c.bf16 %v732, %v727
  %v748 = vpack.c.bf16 %v733, %v728
  %v749 = vpack.c.bf16 %v739, %v734
  %v750 = vpack.c.bf16 %v740, %v735
  %v751 = vpack.c.bf16 %v741, %v736
  %v752 = vpack.c.bf16 %v742, %v737
  %v753 = vpack.c.bf16 %v743, %v738
  %v755 = vsel %vm345, %v748, 0
  %v758 = vsel %vm345, %v753, 0
  %760 = vmatpush.bf16.msra.mxu0 %v277
  %761 = vmatpush.bf16.msra.mxu0 %v276
  %762 = vmatpush.bf16.msra.mxu0 %v275
  %763 = vmatpush.bf16.msra.mxu0 %v274
  %764 = vmatpush.bf16.msra.mxu0 %v273
  %765 = vmatpush.bf16.msra.mxu0 %v272
  %766 = vmatpush.bf16.msra.mxu0 %v271
  %767 = vmatpush.bf16.msra.mxu0 %v270
  %768 = vmatmul.bf16.gmra.mxu0 %v744
  %v769 = vpop.f32.mrf.mxu0
  %v770 = vadd.f32 0.0, %v769
  %v771 = vpop.f32.mrf.mxu0
  %v772 = vadd.f32 0.0, %v771
  %773 = vmatmul.bf16.gmra.mxu0 %v749
  %v774 = vpop.f32.mrf.mxu0
  %v775 = vadd.f32 0.0, %v774
  %v776 = vpop.f32.mrf.mxu0
  %v777 = vadd.f32 0.0, %v776
  %778 = vdwg.mxu0
  %779 = vmatpush.bf16.msra.mxu0 %v285
  %780 = vmatpush.bf16.msra.mxu0 %v284
  %781 = vmatpush.bf16.msra.mxu0 %v283
  %782 = vmatpush.bf16.msra.mxu0 %v282
  %783 = vmatpush.bf16.msra.mxu0 %v281
  %784 = vmatpush.bf16.msra.mxu0 %v280
  %785 = vmatpush.bf16.msra.mxu0 %v279
  %786 = vmatpush.bf16.msra.mxu0 %v278
  %787 = vmatmul.bf16.gmra.mxu0 %v745
  %v788 = vpop.f32.mrf.mxu0
  %v789 = vadd.f32 %v770, %v788
  %v790 = vpop.f32.mrf.mxu0
  %v791 = vadd.f32 %v772, %v790
  %792 = vmatmul.bf16.gmra.mxu0 %v750
  %v793 = vpop.f32.mrf.mxu0
  %v794 = vadd.f32 %v775, %v793
  %v795 = vpop.f32.mrf.mxu0
  %v796 = vadd.f32 %v777, %v795
  %797 = vdwg.mxu0
  %798 = vmatpush.bf16.msra.mxu0 %v293
  %799 = vmatpush.bf16.msra.mxu0 %v292
  %800 = vmatpush.bf16.msra.mxu0 %v291
  %801 = vmatpush.bf16.msra.mxu0 %v290
  %802 = vmatpush.bf16.msra.mxu0 %v289
  %803 = vmatpush.bf16.msra.mxu0 %v288
  %804 = vmatpush.bf16.msra.mxu0 %v287
  %805 = vmatpush.bf16.msra.mxu0 %v286
  %806 = vmatmul.bf16.gmra.mxu0 %v746
  %v807 = vpop.f32.mrf.mxu0
  %v808 = vadd.f32 %v789, %v807
  %v809 = vpop.f32.mrf.mxu0
  %v810 = vadd.f32 %v791, %v809
  %811 = vmatmul.bf16.gmra.mxu0 %v751
  %v812 = vpop.f32.mrf.mxu0
  %v813 = vadd.f32 %v794, %v812
  %v814 = vpop.f32.mrf.mxu0
  %v815 = vadd.f32 %v796, %v814
  %816 = vdwg.mxu0
  %817 = vmatpush.bf16.msra.mxu0 %v301
  %818 = vmatpush.bf16.msra.mxu0 %v300
  %819 = vmatpush.bf16.msra.mxu0 %v299
  %820 = vmatpush.bf16.msra.mxu0 %v298
  %821 = vmatpush.bf16.msra.mxu0 %v297
  %822 = vmatpush.bf16.msra.mxu0 %v296
  %823 = vmatpush.bf16.msra.mxu0 %v295
  %824 = vmatpush.bf16.msra.mxu0 %v294
  %825 = vmatmul.bf16.gmra.mxu0 %v747
  %v826 = vpop.f32.mrf.mxu0
  %v827 = vadd.f32 %v808, %v826
  %v828 = vpop.f32.mrf.mxu0
  %v829 = vadd.f32 %v810, %v828
  %830 = vmatmul.bf16.gmra.mxu0 %v752
  %v831 = vpop.f32.mrf.mxu0
  %v832 = vadd.f32 %v813, %v831
  %v833 = vpop.f32.mrf.mxu0
  %v834 = vadd.f32 %v815, %v833
  %835 = vdwg.mxu0
  %836 = vmatpush.bf16.msra.mxu0 0
  %837 = vmatpush.bf16.msra.mxu0 0
  %838 = vmatpush.bf16.msra.mxu0 %v354
  %839 = vmatpush.bf16.msra.mxu0 %v306
  %840 = vmatpush.bf16.msra.mxu0 %v305
  %841 = vmatpush.bf16.msra.mxu0 %v304
  %842 = vmatpush.bf16.msra.mxu0 %v303
  %843 = vmatpush.bf16.msra.mxu0 %v302
  %844 = vmatmul.bf16.gmra.mxu0 %v755
  %v845 = vpop.f32.mrf.mxu0
  %v846 = vadd.f32 %v827, %v845
  %v847 = vpop.f32.mrf.mxu0
  %v848 = vadd.f32 %v829, %v847
  %849 = vmatmul.bf16.gmra.mxu0 %v758
  %v850 = vpop.f32.mrf.mxu0
  %v851 = vadd.f32 %v832, %v850
  %v852 = vpop.f32.mrf.mxu0
  %v853 = vadd.f32 %v834, %v852
  %854 = vdwg.mxu0
  %v855 = vmax.f32 %v719, %v846
  %v856 = vmax.f32 %v720, %v848
  %v857 = vmax.f32 %v721, %v851
  %v858 = vmax.f32 %v722, %v853
  %v859 = vld [vmem:[%s2] sm:$0x1]
  %v861 = vperm.slane %v859, 0
  %v863 = vadd.f32 %v855, %v861
  %v864 = vadd.f32 %v856, %v861
  %v865 = vadd.f32 %v857, %v861
  %v866 = vadd.f32 %v858, %v861
  %v867 = vmax.f32 %v863, 0.0
  %v868 = vmax.f32 %v864, 0.0
  %v869 = vmax.f32 %v865, 0.0
  %v870 = vmax.f32 %v866, 0.0
  %871 = vst [vmem:[%s3] sm:$0xff] %v867
  %872 = vst [vmem:[%s3 + $0x8] sm:$0xff] %v868
  %873 = vst [vmem:[%s3 + $0x10] sm:$0xff] %v869
  %874 = vst [vmem:[%s3 + $0x18] sm:$0xff] %v870
  // Predicated region
  $region14: #{lenet_forward.4} parent=0 // pred_check
    _
  $region15: #{lenet_forward.4} parent=0 // pred_check_branch
    %876 = sbr.rel (0) target = $region17
  $region16: #{lenet_forward.4} parent=0 // pred_region
    _
  $region17: #{lenet_forward.4} parent=0 // pred_fallthru
    _
  // Predicated region
  $region18: #{lenet_forward.4} parent=0 // pred_check
    _
  $region19: #{lenet_forward.4} parent=0 // pred_check_branch
    %878 = sbr.rel (0) target = $region21
  $region20: #{lenet_forward.4} parent=0 // pred_region
    _
  $region21: #{lenet_forward.4} parent=0 // pred_fallthru
    _

// kernel: lenet_forward.5
$region0: #{lenet_forward.5}
  #allocation0 [shape = 'u32[]', space=smem, size = 0x4, offset = 0x4, fixed_abs, tag = 'smem constant byte address 0x4 - core index']
  #allocation1 [shape = 'u32[72,128]{1,0:T(1,128)}', space=vmem, size = 0x9000, scoped, tag = 'internal scratch']
  %s0 = inlined_call_operand.vmem [shape: f32[2,2048], index: 0, kind: input, shape index: {}]
  %s1 = inlined_call_operand.vmem [shape: bf16[2048,512], index: 1, kind: input, shape index: {}]
  %s2 = inlined_call_operand.vmem [shape: f32[1,512], index: 2, kind: input, shape index: {}]
  %s3 = inlined_call_operand.vmem [shape: bf16[512,128], index: 3, kind: input, shape index: {}]
  %s4 = inlined_call_operand.vmem [shape: f32[1,128], index: 4, kind: input, shape index: {}]
  %s5 = inlined_call_operand.hbm [shape: f32[2,128], index: 5, kind: output, shape index: {}]
  %s6 = sld [smem:[#allocation0]]
  $region30: #{lenet_forward.5} parent=0
    _
  %s8 = ssub.s32 1, %s6
  %s9 = scalar_select 0, %s8, %s6
  $region1: #{lenet_forward.5} parent=0
    #allocation2 [shape = 'u8[1024]{0}', space=vmem, size = 0x400, scoped, tag = 'output window, operand 0, single buffered']
    #allocation3 [shape = 's32[1]{0}', space=sflag, size = 0x4, scoped, tag = 'scoped memory for lenet_forward.5']
    %10 = vsyncpa [#allocation3], 0
    // Predicated region
    $region2: #{lenet_forward.5} parent=1 // pred_check
      _
    $region3: #{lenet_forward.5} parent=1 // pred_check_branch
      %12 = sbr.rel (0) target = $region5
    $region4: #{lenet_forward.5} parent=1 // pred_region
      _
    $region5: #{lenet_forward.5} parent=1 // pred_fallthru
      _
    // Predicated region
    $region6: #{lenet_forward.5} parent=1 // pred_check
      _
    $region7: #{lenet_forward.5} parent=1 // pred_check_branch
      %14 = sbr.rel (0) target = $region9
    $region8: #{lenet_forward.5} parent=1 // pred_region
      _
    $region9: #{lenet_forward.5} parent=1 // pred_fallthru
      _
    // Predicated region
    $region10: #{lenet_forward.5} parent=1 // pred_check
      _
    $region11: #{lenet_forward.5} parent=1 // pred_check_branch
      %16 = sbr.rel (0) target = $region13
    $region12: #{lenet_forward.5} parent=1 // pred_region
      _
    $region13: #{lenet_forward.5} parent=1 // pred_fallthru
      _
    // Predicated region
    $region14: #{lenet_forward.5} parent=1 // pred_check
      _
    $region15: #{lenet_forward.5} parent=1 // pred_check_branch
      %18 = sbr.rel (0) target = $region17
    $region16: #{lenet_forward.5} parent=1 // pred_region
      _
    $region17: #{lenet_forward.5} parent=1 // pred_fallthru
      _
    // Predicated region
    $region18: #{lenet_forward.5} parent=1 // pred_check
      _
    $region19: #{lenet_forward.5} parent=1 // pred_check_branch
      %20 = sbr.rel (0) target = $region21
    $region20: #{lenet_forward.5} parent=1 // pred_region
      _
    $region21: #{lenet_forward.5} parent=1 // pred_fallthru
      _
    %v21 = vld [vmem:[%s0] sm:$0xff]
    %v22 = vld [vmem:[%s0 + $0x8] sm:$0xff]
    %v23 = vld [vmem:[%s0 + $0x10] sm:$0xff]
    %v24 = vld [vmem:[%s0 + $0x18] sm:$0xff]
    %29 = vst [vmem:[#allocation1] ss:$4 sm:$0xff] %v21
    %s30 = scalar_lea.vmem [#allocation1], 32
    %31 = vst [vmem:[%s30] ss:$4 sm:$0xff] %v22
    %v32 = vld.sshfl [vmem:[#allocation1] sm:$0xff pattern:$0x73625140]
    %v33 = vld.sshfl [vmem:[#allocation1 + $0x8] sm:$0xff pattern:$0x73625140]
    %v34 = vld.sshfl [vmem:[#allocation1 + $0x10] sm:$0xff pattern:$0x73625140]
    %v35 = vld.sshfl [vmem:[#allocation1 + $0x18] sm:$0xff pattern:$0x73625140]
    %v36 = vld.sshfl [vmem:[#allocation1 + $0x20] sm:$0xff pattern:$0x73625140]
    %v37 = vld.sshfl [vmem:[#allocation1 + $0x28] sm:$0xff pattern:$0x73625140]
    %v38 = vld.sshfl [vmem:[#allocation1 + $0x30] sm:$0xff pattern:$0x73625140]
    %v39 = vld.sshfl [vmem:[#allocation1 + $0x38] sm:$0xff pattern:$0x73625140]
    %40 = vst [vmem:[#allocation1] ss:$4 sm:$0xff] %v23
    %41 = vst [vmem:[%s30] ss:$4 sm:$0xff] %v24
    %v42 = vld.sshfl [vmem:[#allocation1] sm:$0xff pattern:$0x73625140]
    %v43 = vld.sshfl [vmem:[#allocation1 + $0x8] sm:$0xff pattern:$0x73625140]
    %v44 = vld.sshfl [vmem:[#allocation1 + $0x10] sm:$0xff pattern:$0x73625140]
    %v45 = vld.sshfl [vmem:[#allocation1 + $0x18] sm:$0xff pattern:$0x73625140]
    %v46 = vld.sshfl [vmem:[#allocation1 + $0x20] sm:$0xff pattern:$0x73625140]
    %v47 = vld.sshfl [vmem:[#allocation1 + $0x28] sm:$0xff pattern:$0x73625140]
    %v48 = vld.sshfl [vmem:[#allocation1 + $0x30] sm:$0xff pattern:$0x73625140]
    %v49 = vld.sshfl [vmem:[#allocation1 + $0x38] sm:$0xff pattern:$0x73625140]
    %v66 = vpack.c.bf16 %v32, %v32
    %v67 = vpack.c.bf16 %v33, %v33
    %v68 = vpack.c.bf16 %v34, %v34
    %v69 = vpack.c.bf16 %v35, %v35
    %v70 = vpack.c.bf16 %v36, %v36
    %v71 = vpack.c.bf16 %v37, %v37
    %v72 = vpack.c.bf16 %v38, %v38
    %v73 = vpack.c.bf16 %v39, %v39
    %v74 = vpack.c.bf16 %v42, %v42
    %v75 = vpack.c.bf16 %v43, %v43
    %v76 = vpack.c.bf16 %v44, %v44
    %v77 = vpack.c.bf16 %v45, %v45
    %v78 = vpack.c.bf16 %v46, %v46
    %v79 = vpack.c.bf16 %v47, %v47
    %v80 = vpack.c.bf16 %v48, %v48
    %v81 = vpack.c.bf16 %v49, %v49
    %v82 = vld [vmem:[%s1] sm:$0xff]
    %v83 = vld [vmem:[%s1 + $0x8] sm:$0xff]
    %v84 = vld [vmem:[%s1 + $0x10] sm:$0xff]
    %v85 = vld [vmem:[%s1 + $0x18] sm:$0xff]
    %v86 = vld [vmem:[%s1 + $0x20] sm:$0xff]
    %v87 = vld [vmem:[%s1 + $0x28] sm:$0xff]
    %v88 = vld [vmem:[%s1 + $0x30] sm:$0xff]
    %v89 = vld [vmem:[%s1 + $0x38] sm:$0xff]
    %v90 = vld [vmem:[%s1 + $0x40] sm:$0xff]
    %v91 = vld [vmem:[%s1 + $0x48] sm:$0xff]
    %v92 = vld [vmem:[%s1 + $0x50] sm:$0xff]
    %v93 = vld [vmem:[%s1 + $0x58] sm:$0xff]
    %v94 = vld [vmem:[%s1 + $0x60] sm:$0xff]
    %v95 = vld [vmem:[%s1 + $0x68] sm:$0xff]
    %v96 = vld [vmem:[%s1 + $0x70] sm:$0xff]
    %v97 = vld [vmem:[%s1 + $0x78] sm:$0xff]
    %v98 = vld [vmem:[%s1 + $0x80] sm:$0xff]
    %v99 = vld [vmem:[%s1 + $0x88] sm:$0xff]
    %v100 = vld [vmem:[%s1 + $0x90] sm:$0xff]
    %v101 = vld [vmem:[%s1 + $0x98] sm:$0xff]
    %v102 = vld [vmem:[%s1 + $0xa0] sm:$0xff]
    %v103 = vld [vmem:[%s1 + $0xa8] sm:$0xff]
    %v104 = vld [vmem:[%s1 + $0xb0] sm:$0xff]
    %v105 = vld [vmem:[%s1 + $0xb8] sm:$0xff]
    %v106 = vld [vmem:[%s1 + $0xc0] sm:$0xff]
    %v107 = vld [vmem:[%s1 + $0xc8] sm:$0xff]
    %v108 = vld [vmem:[%s1 + $0xd0] sm:$0xff]
    %v109 = vld [vmem:[%s1 + $0xd8] sm:$0xff]
    %v110 = vld [vmem:[%s1 + $0xe0] sm:$0xff]
    %v111 = vld [vmem:[%s1 + $0xe8] sm:$0xff]
    %v112 = vld [vmem:[%s1 + $0xf0] sm:$0xff]
    %v113 = vld [vmem:[%s1 + $0xf8] sm:$0xff]
    %v114 = vld [vmem:[%s1 + $0x100] sm:$0xff]
    %v115 = vld [vmem:[%s1 + $0x108] sm:$0xff]
    %v116 = vld [vmem:[%s1 + $0x110] sm:$0xff]
    %v117 = vld [vmem:[%s1 + $0x118] sm:$0xff]
    %v118 = vld [vmem:[%s1 + $0x120] sm:$0xff]
    %v119 = vld [vmem:[%s1 + $0x128] sm:$0xff]
    %v120 = vld [vmem:[%s1 + $0x130] sm:$0xff]
    %v121 = vld [vmem:[%s1 + $0x138] sm:$0xff]
    %v122 = vld [vmem:[%s1 + $0x140] sm:$0xff]
    %v123 = vld [vmem:[%s1 + $0x148] sm:$0xff]
    %v124 = vld [vmem:[%s1 + $0x150] sm:$0xff]
    %v125 = vld [vmem:[%s1 + $0x158] sm:$0xff]
    %v126 = vld [vmem:[%s1 + $0x160] sm:$0xff]
    %v127 = vld [vmem:[%s1 + $0x168] sm:$0xff]
    %v128 = vld [vmem:[%s1 + $0x170] sm:$0xff]
    %v129 = vld [vmem:[%s1 + $0x178] sm:$0xff]
    %v130 = vld [vmem:[%s1 + $0x180] sm:$0xff]
    %v131 = vld [vmem:[%s1 + $0x188] sm:$0xff]
    %v132 = vld [vmem:[%s1 + $0x190] sm:$0xff]
    %v133 = vld [vmem:[%s1 + $0x198] sm:$0xff]
    %v134 = vld [vmem:[%s1 + $0x1a0] sm:$0xff]
    %v135 = vld [vmem:[%s1 + $0x1a8] sm:$0xff]
    %v136 = vld [vmem:[%s1 + $0x1b0] sm:$0xff]
    %v137 = vld [vmem:[%s1 + $0x1b8] sm:$0xff]
    %v138 = vld [vmem:[%s1 + $0x1c0] sm:$0xff]
    %v139 = vld [vmem:[%s1 + $0x1c8] sm:$0xff]
    %v140 = vld [vmem:[%s1 + $0x1d0] sm:$0xff]
    %v141 = vld [vmem:[%s1 + $0x1d8] sm:$0xff]
    %v142 = vld [vmem:[%s1 + $0x1e0] sm:$0xff]
    %v143 = vld [vmem:[%s1 + $0x1e8] sm:$0xff]
    %v144 = vld [vmem:[%s1 + $0x1f0] sm:$0xff]
    %v145 = vld [vmem:[%s1 + $0x1f8] sm:$0xff]
    %v146 = vld [vmem:[%s1 + $0x200] sm:$0xff]
    %v147 = vld [vmem:[%s1 + $0x208] sm:$0xff]
    %v148 = vld [vmem:[%s1 + $0x210] sm:$0xff]
    %v149 = vld [vmem:[%s1 + $0x218] sm:$0xff]
    %v150 = vld [vmem:[%s1 + $0x220] sm:$0xff]
    %v151 = vld [vmem:[%s1 + $0x228] sm:$0xff]
    %v152 = vld [vmem:[%s1 + $0x230] sm:$0xff]
    %v153 = vld [vmem:[%s1 + $0x238] sm:$0xff]
    %v154 = vld [vmem:[%s1 + $0x240] sm:$0xff]
    %v155 = vld [vmem:[%s1 + $0x248] sm:$0xff]
    %v156 = vld [vmem:[%s1 + $0x250] sm:$0xff]
    %v157 = vld [vmem:[%s1 + $0x258] sm:$0xff]
    %v158 = vld [vmem:[%s1 + $0x260] sm:$0xff]
    %v159 = vld [vmem:[%s1 + $0x268] sm:$0xff]
    %v160 = vld [vmem:[%s1 + $0x270] sm:$0xff]
    %v161 = vld [vmem:[%s1 + $0x278] sm:$0xff]
    %v162 = vld [vmem:[%s1 + $0x280] sm:$0xff]
    %v163 = vld [vmem:[%s1 + $0x288] sm:$0xff]
    %v164 = vld [vmem:[%s1 + $0x290] sm:$0xff]
    %v165 = vld [vmem:[%s1 + $0x298] sm:$0xff]
    %v166 = vld [vmem:[%s1 + $0x2a0] sm:$0xff]
    %v167 = vld [vmem:[%s1 + $0x2a8] sm:$0xff]
    %v168 = vld [vmem:[%s1 + $0x2b0] sm:$0xff]
    %v169 = vld [vmem:[%s1 + $0x2b8] sm:$0xff]
    %v170 = vld [vmem:[%s1 + $0x2c0] sm:$0xff]
    %v171 = vld [vmem:[%s1 + $0x2c8] sm:$0xff]
    %v172 = vld [vmem:[%s1 + $0x2d0] sm:$0xff]
    %v173 = vld [vmem:[%s1 + $0x2d8] sm:$0xff]
    %v174 = vld [vmem:[%s1 + $0x2e0] sm:$0xff]
    %v175 = vld [vmem:[%s1 + $0x2e8] sm:$0xff]
    %v176 = vld [vmem:[%s1 + $0x2f0] sm:$0xff]
    %v177 = vld [vmem:[%s1 + $0x2f8] sm:$0xff]
    %v178 = vld [vmem:[%s1 + $0x300] sm:$0xff]
    %v179 = vld [vmem:[%s1 + $0x308] sm:$0xff]
    %v180 = vld [vmem:[%s1 + $0x310] sm:$0xff]
    %v181 = vld [vmem:[%s1 + $0x318] sm:$0xff]
    %v182 = vld [vmem:[%s1 + $0x320] sm:$0xff]
    %v183 = vld [vmem:[%s1 + $0x328] sm:$0xff]
    %v184 = vld [vmem:[%s1 + $0x330] sm:$0xff]
    %v185 = vld [vmem:[%s1 + $0x338] sm:$0xff]
    %v186 = vld [vmem:[%s1 + $0x340] sm:$0xff]
    %v187 = vld [vmem:[%s1 + $0x348] sm:$0xff]
    %v188 = vld [vmem:[%s1 + $0x350] sm:$0xff]
    %v189 = vld [vmem:[%s1 + $0x358] sm:$0xff]
    %v190 = vld [vmem:[%s1 + $0x360] sm:$0xff]
    %v191 = vld [vmem:[%s1 + $0x368] sm:$0xff]
    %v192 = vld [vmem:[%s1 + $0x370] sm:$0xff]
    %v193 = vld [vmem:[%s1 + $0x378] sm:$0xff]
    %v194 = vld [vmem:[%s1 + $0x380] sm:$0xff]
    %v195 = vld [vmem:[%s1 + $0x388] sm:$0xff]
    %v196 = vld [vmem:[%s1 + $0x390] sm:$0xff]
    %v197 = vld [vmem:[%s1 + $0x398] sm:$0xff]
    %v198 = vld [vmem:[%s1 + $0x3a0] sm:$0xff]
    %v199 = vld [vmem:[%s1 + $0x3a8] sm:$0xff]
    %v200 = vld [vmem:[%s1 + $0x3b0] sm:$0xff]
    %v201 = vld [vmem:[%s1 + $0x3b8] sm:$0xff]
    %v202 = vld [vmem:[%s1 + $0x3c0] sm:$0xff]
    %v203 = vld [vmem:[%s1 + $0x3c8] sm:$0xff]
    %v204 = vld [vmem:[%s1 + $0x3d0] sm:$0xff]
    %v205 = vld [vmem:[%s1 + $0x3d8] sm:$0xff]
    %v206 = vld [vmem:[%s1 + $0x3e0] sm:$0xff]
    %v207 = vld [vmem:[%s1 + $0x3e8] sm:$0xff]
    %v208 = vld [vmem:[%s1 + $0x3f0] sm:$0xff]
    %v209 = vld [vmem:[%s1 + $0x3f8] sm:$0xff]
    %v210 = vld [vmem:[%s1 + $0x400] sm:$0xff]
    %v211 = vld [vmem:[%s1 + $0x408] sm:$0xff]
    %v212 = vld [vmem:[%s1 + $0x410] sm:$0xff]
    %v213 = vld [vmem:[%s1 + $0x418] sm:$0xff]
    %v214 = vld [vmem:[%s1 + $0x420] sm:$0xff]
    %v215 = vld [vmem:[%s1 + $0x428] sm:$0xff]
    %v216 = vld [vmem:[%s1 + $0x430] sm:$0xff]
    %v217 = vld [vmem:[%s1 + $0x438] sm:$0xff]
    %v218 = vld [vmem:[%s1 + $0x440] sm:$0xff]
    %v219 = vld [vmem:[%s1 + $0x448] sm:$0xff]
    %v220 = vld [vmem:[%s1 + $0x450] sm:$0xff]
    %v221 = vld [vmem:[%s1 + $0x458] sm:$0xff]
    %v222 = vld [vmem:[%s1 + $0x460] sm:$0xff]
    %v223 = vld [vmem:[%s1 + $0x468] sm:$0xff]
    %v224 = vld [vmem:[%s1 + $0x470] sm:$0xff]
    %v225 = vld [vmem:[%s1 + $0x478] sm:$0xff]
    %v226 = vld [vmem:[%s1 + $0x480] sm:$0xff]
    %v227 = vld [vmem:[%s1 + $0x488] sm:$0xff]
    %v228 = vld [vmem:[%s1 + $0x490] sm:$0xff]
    %v229 = vld [vmem:[%s1 + $0x498] sm:$0xff]
    %v230 = vld [vmem:[%s1 + $0x4a0] sm:$0xff]
    %v231 = vld [vmem:[%s1 + $0x4a8] sm:$0xff]
    %v232 = vld [vmem:[%s1 + $0x4b0] sm:$0xff]
    %v233 = vld [vmem:[%s1 + $0x4b8] sm:$0xff]
    %v234 = vld [vmem:[%s1 + $0x4c0] sm:$0xff]
    %v235 = vld [vmem:[%s1 + $0x4c8] sm:$0xff]
    %v236 = vld [vmem:[%s1 + $0x4d0] sm:$0xff]
    %v237 = vld [vmem:[%s1 + $0x4d8] sm:$0xff]
    %v238 = vld [vmem:[%s1 + $0x4e0] sm:$0xff]
    %v239 = vld [vmem:[%s1 + $0x4e8] sm:$0xff]
    %v240 = vld [vmem:[%s1 + $0x4f0] sm:$0xff]
    %v241 = vld [vmem:[%s1 + $0x4f8] sm:$0xff]
    %v242 = vld [vmem:[%s1 + $0x500] sm:$0xff]
    %v243 = vld [vmem:[%s1 + $0x508] sm:$0xff]
    %v244 = vld [vmem:[%s1 + $0x510] sm:$0xff]
    %v245 = vld [vmem:[%s1 + $0x518] sm:$0xff]
    %v246 = vld [vmem:[%s1 + $0x520] sm:$0xff]
    %v247 = vld [vmem:[%s1 + $0x528] sm:$0xff]
    %v248 = vld [vmem:[%s1 + $0x530] sm:$0xff]
    %v249 = vld [vmem:[%s1 + $0x538] sm:$0xff]
    %v250 = vld [vmem:[%s1 + $0x540] sm:$0xff]
    %v251 = vld [vmem:[%s1 + $0x548] sm:$0xff]
    %v252 = vld [vmem:[%s1 + $0x550] sm:$0xff]
    %v253 = vld [vmem:[%s1 + $0x558] sm:$0xff]
    %v254 = vld [vmem:[%s1 + $0x560] sm:$0xff]
    %v255 = vld [vmem:[%s1 + $0x568] sm:$0xff]
    %v256 = vld [vmem:[%s1 + $0x570] sm:$0xff]
    %v257 = vld [vmem:[%s1 + $0x578] sm:$0xff]
    %v258 = vld [vmem:[%s1 + $0x580] sm:$0xff]
    %v259 = vld [vmem:[%s1 + $0x588] sm:$0xff]
    %v260 = vld [vmem:[%s1 + $0x590] sm:$0xff]
    %v261 = vld [vmem:[%s1 + $0x598] sm:$0xff]
    %v262 = vld [vmem:[%s1 + $0x5a0] sm:$0xff]
    %v263 = vld [vmem:[%s1 + $0x5a8] sm:$0xff]
    %v264 = vld [vmem:[%s1 + $0x5b0] sm:$0xff]
    %v265 = vld [vmem:[%s1 + $0x5b8] sm:$0xff]
    %v266 = vld [vmem:[%s1 + $0x5c0] sm:$0xff]
    %v267 = vld [vmem:[%s1 + $0x5c8] sm:$0xff]
    %v268 = vld [vmem:[%s1 + $0x5d0] sm:$0xff]
    %v269 = vld [vmem:[%s1 + $0x5d8] sm:$0xff]
    %v270 = vld [vmem:[%s1 + $0x5e0] sm:$0xff]
    %v271 = vld [vmem:[%s1 + $0x5e8] sm:$0xff]
    %v272 = vld [vmem:[%s1 + $0x5f0] sm:$0xff]
    %v273 = vld [vmem:[%s1 + $0x5f8] sm:$0xff]
    %v274 = vld [vmem:[%s1 + $0x600] sm:$0xff]
    %v275 = vld [vmem:[%s1 + $0x608] sm:$0xff]
    %v276 = vld [vmem:[%s1 + $0x610] sm:$0xff]
    %v277 = vld [vmem:[%s1 + $0x618] sm:$0xff]
    %v278 = vld [vmem:[%s1 + $0x620] sm:$0xff]
    %v279 = vld [vmem:[%s1 + $0x628] sm:$0xff]
    %v280 = vld [vmem:[%s1 + $0x630] sm:$0xff]
    %v281 = vld [vmem:[%s1 + $0x638] sm:$0xff]
    %v282 = vld [vmem:[%s1 + $0x640] sm:$0xff]
    %v283 = vld [vmem:[%s1 + $0x648] sm:$0xff]
    %v284 = vld [vmem:[%s1 + $0x650] sm:$0xff]
    %v285 = vld [vmem:[%s1 + $0x658] sm:$0xff]
    %v286 = vld [vmem:[%s1 + $0x660] sm:$0xff]
    %v287 = vld [vmem:[%s1 + $0x668] sm:$0xff]
    %v288 = vld [vmem:[%s1 + $0x670] sm:$0xff]
    %v289 = vld [vmem:[%s1 + $0x678] sm:$0xff]
    %v290 = vld [vmem:[%s1 + $0x680] sm:$0xff]
    %v291 = vld [vmem:[%s1 + $0x688] sm:$0xff]
    %v292 = vld [vmem:[%s1 + $0x690] sm:$0xff]
    %v293 = vld [vmem:[%s1 + $0x698] sm:$0xff]
    %v294 = vld [vmem:[%s1 + $0x6a0] sm:$0xff]
    %v295 = vld [vmem:[%s1 + $0x6a8] sm:$0xff]
    %v296 = vld [vmem:[%s1 + $0x6b0] sm:$0xff]
    %v297 = vld [vmem:[%s1 + $0x6b8] sm:$0xff]
    %v298 = vld [vmem:[%s1 + $0x6c0] sm:$0xff]
    %v299 = vld [vmem:[%s1 + $0x6c8] sm:$0xff]
    %v300 = vld [vmem:[%s1 + $0x6d0] sm:$0xff]
    %v301 = vld [vmem:[%s1 + $0x6d8] sm:$0xff]
    %v302 = vld [vmem:[%s1 + $0x6e0] sm:$0xff]
    %v303 = vld [vmem:[%s1 + $0x6e8] sm:$0xff]
    %v304 = vld [vmem:[%s1 + $0x6f0] sm:$0xff]
    %v305 = vld [vmem:[%s1 + $0x6f8] sm:$0xff]
    %v306 = vld [vmem:[%s1 + $0x700] sm:$0xff]
    %v307 = vld [vmem:[%s1 + $0x708] sm:$0xff]
    %v308 = vld [vmem:[%s1 + $0x710] sm:$0xff]
    %v309 = vld [vmem:[%s1 + $0x718] sm:$0xff]
    %v310 = vld [vmem:[%s1 + $0x720] sm:$0xff]
    %v311 = vld [vmem:[%s1 + $0x728] sm:$0xff]
    %v312 = vld [vmem:[%s1 + $0x730] sm:$0xff]
    %v313 = vld [vmem:[%s1 + $0x738] sm:$0xff]
    %v314 = vld [vmem:[%s1 + $0x740] sm:$0xff]
    %v315 = vld [vmem:[%s1 + $0x748] sm:$0xff]
    %v316 = vld [vmem:[%s1 + $0x750] sm:$0xff]
    %v317 = vld [vmem:[%s1 + $0x758] sm:$0xff]
    %v318 = vld [vmem:[%s1 + $0x760] sm:$0xff]
    %v319 = vld [vmem:[%s1 + $0x768] sm:$0xff]
    %v320 = vld [vmem:[%s1 + $0x770] sm:$0xff]
    %v321 = vld [vmem:[%s1 + $0x778] sm:$0xff]
    %v322 = vld [vmem:[%s1 + $0x780] sm:$0xff]
    %v323 = vld [vmem:[%s1 + $0x788] sm:$0xff]
    %v324 = vld [vmem:[%s1 + $0x790] sm:$0xff]
    %v325 = vld [vmem:[%s1 + $0x798] sm:$0xff]
    %v326 = vld [vmem:[%s1 + $0x7a0] sm:$0xff]
    %v327 = vld [vmem:[%s1 + $0x7a8] sm:$0xff]
    %v328 = vld [vmem:[%s1 + $0x7b0] sm:$0xff]
    %v329 = vld [vmem:[%s1 + $0x7b8] sm:$0xff]
    %v330 = vld [vmem:[%s1 + $0x7c0] sm:$0xff]
    %v331 = vld [vmem:[%s1 + $0x7c8] sm:$0xff]
    %v332 = vld [vmem:[%s1 + $0x7d0] sm:$0xff]
    %v333 = vld [vmem:[%s1 + $0x7d8] sm:$0xff]
    %v334 = vld [vmem:[%s1 + $0x7e0] sm:$0xff]
    %v335 = vld [vmem:[%s1 + $0x7e8] sm:$0xff]
    %v336 = vld [vmem:[%s1 + $0x7f0] sm:$0xff]
    %v337 = vld [vmem:[%s1 + $0x7f8] sm:$0xff]
    %v338 = vld [vmem:[%s1 + $0x800] sm:$0xff]
    %v339 = vld [vmem:[%s1 + $0x808] sm:$0xff]
    %v340 = vld [vmem:[%s1 + $0x810] sm:$0xff]
    %v341 = vld [vmem:[%s1 + $0x818] sm:$0xff]
    %v342 = vld [vmem:[%s1 + $0x820] sm:$0xff]
    %v343 = vld [vmem:[%s1 + $0x828] sm:$0xff]
    %v344 = vld [vmem:[%s1 + $0x830] sm:$0xff]
    %v345 = vld [vmem:[%s1 + $0x838] sm:$0xff]
    %v346 = vld [vmem:[%s1 + $0x840] sm:$0xff]
    %v347 = vld [vmem:[%s1 + $0x848] sm:$0xff]
    %v348 = vld [vmem:[%s1 + $0x850] sm:$0xff]
    %v349 = vld [vmem:[%s1 + $0x858] sm:$0xff]
    %v350 = vld [vmem:[%s1 + $0x860] sm:$0xff]
    %v351 = vld [vmem:[%s1 + $0x868] sm:$0xff]
    %v352 = vld [vmem:[%s1 + $0x870] sm:$0xff]
    %v353 = vld [vmem:[%s1 + $0x878] sm:$0xff]
    %v354 = vld [vmem:[%s1 + $0x880] sm:$0xff]
    %v355 = vld [vmem:[%s1 + $0x888] sm:$0xff]
    %v356 = vld [vmem:[%s1 + $0x890] sm:$0xff]
    %v357 = vld [vmem:[%s1 + $0x898] sm:$0xff]
    %v358 = vld [vmem:[%s1 + $0x8a0] sm:$0xff]
    %v359 = vld [vmem:[%s1 + $0x8a8] sm:$0xff]
    %v360 = vld [vmem:[%s1 + $0x8b0] sm:$0xff]
    %v361 = vld [vmem:[%s1 + $0x8b8] sm:$0xff]
    %v362 = vld [vmem:[%s1 + $0x8c0] sm:$0xff]
    %v363 = vld [vmem:[%s1 + $0x8c8] sm:$0xff]
    %v364 = vld [vmem:[%s1 + $0x8d0] sm:$0xff]
    %v365 = vld [vmem:[%s1 + $0x8d8] sm:$0xff]
    %v366 = vld [vmem:[%s1 + $0x8e0] sm:$0xff]
    %v367 = vld [vmem:[%s1 + $0x8e8] sm:$0xff]
    %v368 = vld [vmem:[%s1 + $0x8f0] sm:$0xff]
    %v369 = vld [vmem:[%s1 + $0x8f8] sm:$0xff]
    %v370 = vld [vmem:[%s1 + $0x900] sm:$0xff]
    %v371 = vld [vmem:[%s1 + $0x908] sm:$0xff]
    %v372 = vld [vmem:[%s1 + $0x910] sm:$0xff]
    %v373 = vld [vmem:[%s1 + $0x918] sm:$0xff]
    %v374 = vld [vmem:[%s1 + $0x920] sm:$0xff]
    %v375 = vld [vmem:[%s1 + $0x928] sm:$0xff]
    %v376 = vld [vmem:[%s1 + $0x930] sm:$0xff]
    %v377 = vld [vmem:[%s1 + $0x938] sm:$0xff]
    %v378 = vld [vmem:[%s1 + $0x940] sm:$0xff]
    %v379 = vld [vmem:[%s1 + $0x948] sm:$0xff]
    %v380 = vld [vmem:[%s1 + $0x950] sm:$0xff]
    %v381 = vld [vmem:[%s1 + $0x958] sm:$0xff]
    %v382 = vld [vmem:[%s1 + $0x960] sm:$0xff]
    %v383 = vld [vmem:[%s1 + $0x968] sm:$0xff]
    %v384 = vld [vmem:[%s1 + $0x970] sm:$0xff]
    %v385 = vld [vmem:[%s1 + $0x978] sm:$0xff]
    %v386 = vld [vmem:[%s1 + $0x980] sm:$0xff]
    %v387 = vld [vmem:[%s1 + $0x988] sm:$0xff]
    %v388 = vld [vmem:[%s1 + $0x990] sm:$0xff]
    %v389 = vld [vmem:[%s1 + $0x998] sm:$0xff]
    %v390 = vld [vmem:[%s1 + $0x9a0] sm:$0xff]
    %v391 = vld [vmem:[%s1 + $0x9a8] sm:$0xff]
    %v392 = vld [vmem:[%s1 + $0x9b0] sm:$0xff]
    %v393 = vld [vmem:[%s1 + $0x9b8] sm:$0xff]
    %v394 = vld [vmem:[%s1 + $0x9c0] sm:$0xff]
    %v395 = vld [vmem:[%s1 + $0x9c8] sm:$0xff]
    %v396 = vld [vmem:[%s1 + $0x9d0] sm:$0xff]
    %v397 = vld [vmem:[%s1 + $0x9d8] sm:$0xff]
    %v398 = vld [vmem:[%s1 + $0x9e0] sm:$0xff]
    %v399 = vld [vmem:[%s1 + $0x9e8] sm:$0xff]
    %v400 = vld [vmem:[%s1 + $0x9f0] sm:$0xff]
    %v401 = vld [vmem:[%s1 + $0x9f8] sm:$0xff]
    %v402 = vld [vmem:[%s1 + $0xa00] sm:$0xff]
    %v403 = vld [vmem:[%s1 + $0xa08] sm:$0xff]
    %v404 = vld [vmem:[%s1 + $0xa10] sm:$0xff]
    %v405 = vld [vmem:[%s1 + $0xa18] sm:$0xff]
    %v406 = vld [vmem:[%s1 + $0xa20] sm:$0xff]
    %v407 = vld [vmem:[%s1 + $0xa28] sm:$0xff]
    %v408 = vld [vmem:[%s1 + $0xa30] sm:$0xff]
    %v409 = vld [vmem:[%s1 + $0xa38] sm:$0xff]
    %v410 = vld [vmem:[%s1 + $0xa40] sm:$0xff]
    %v411 = vld [vmem:[%s1 + $0xa48] sm:$0xff]
    %v412 = vld [vmem:[%s1 + $0xa50] sm:$0xff]
    %v413 = vld [vmem:[%s1 + $0xa58] sm:$0xff]
    %v414 = vld [vmem:[%s1 + $0xa60] sm:$0xff]
    %v415 = vld [vmem:[%s1 + $0xa68] sm:$0xff]
    %v416 = vld [vmem:[%s1 + $0xa70] sm:$0xff]
    %v417 = vld [vmem:[%s1 + $0xa78] sm:$0xff]
    %v418 = vld [vmem:[%s1 + $0xa80] sm:$0xff]
    %v419 = vld [vmem:[%s1 + $0xa88] sm:$0xff]
    %v420 = vld [vmem:[%s1 + $0xa90] sm:$0xff]
    %v421 = vld [vmem:[%s1 + $0xa98] sm:$0xff]
    %v422 = vld [vmem:[%s1 + $0xaa0] sm:$0xff]
    %v423 = vld [vmem:[%s1 + $0xaa8] sm:$0xff]
    %v424 = vld [vmem:[%s1 + $0xab0] sm:$0xff]
    %v425 = vld [vmem:[%s1 + $0xab8] sm:$0xff]
    %v426 = vld [vmem:[%s1 + $0xac0] sm:$0xff]
    %v427 = vld [vmem:[%s1 + $0xac8] sm:$0xff]
    %v428 = vld [vmem:[%s1 + $0xad0] sm:$0xff]
    %v429 = vld [vmem:[%s1 + $0xad8] sm:$0xff]
    %v430 = vld [vmem:[%s1 + $0xae0] sm:$0xff]
    %v431 = vld [vmem:[%s1 + $0xae8] sm:$0xff]
    %v432 = vld [vmem:[%s1 + $0xaf0] sm:$0xff]
    %v433 = vld [vmem:[%s1 + $0xaf8] sm:$0xff]
    %v434 = vld [vmem:[%s1 + $0xb00] sm:$0xff]
    %v435 = vld [vmem:[%s1 + $0xb08] sm:$0xff]
    %v436 = vld [vmem:[%s1 + $0xb10] sm:$0xff]
    %v437 = vld [vmem:[%s1 + $0xb18] sm:$0xff]
    %v438 = vld [vmem:[%s1 + $0xb20] sm:$0xff]
    %v439 = vld [vmem:[%s1 + $0xb28] sm:$0xff]
    %v440 = vld [vmem:[%s1 + $0xb30] sm:$0xff]
    %v441 = vld [vmem:[%s1 + $0xb38] sm:$0xff]
    %v442 = vld [vmem:[%s1 + $0xb40] sm:$0xff]
    %v443 = vld [vmem:[%s1 + $0xb48] sm:$0xff]
    %v444 = vld [vmem:[%s1 + $0xb50] sm:$0xff]
    %v445 = vld [vmem:[%s1 + $0xb58] sm:$0xff]
    %v446 = vld [vmem:[%s1 + $0xb60] sm:$0xff]
    %v447 = vld [vmem:[%s1 + $0xb68] sm:$0xff]
    %v448 = vld [vmem:[%s1 + $0xb70] sm:$0xff]
    %v449 = vld [vmem:[%s1 + $0xb78] sm:$0xff]
    %v450 = vld [vmem:[%s1 + $0xb80] sm:$0xff]
    %v451 = vld [vmem:[%s1 + $0xb88] sm:$0xff]
    %v452 = vld [vmem:[%s1 + $0xb90] sm:$0xff]
    %v453 = vld [vmem:[%s1 + $0xb98] sm:$0xff]
    %v454 = vld [vmem:[%s1 + $0xba0] sm:$0xff]
    %v455 = vld [vmem:[%s1 + $0xba8] sm:$0xff]
    %v456 = vld [vmem:[%s1 + $0xbb0] sm:$0xff]
    %v457 = vld [vmem:[%s1 + $0xbb8] sm:$0xff]
    %v458 = vld [vmem:[%s1 + $0xbc0] sm:$0xff]
    %v459 = vld [vmem:[%s1 + $0xbc8] sm:$0xff]
    %v460 = vld [vmem:[%s1 + $0xbd0] sm:$0xff]
    %v461 = vld [vmem:[%s1 + $0xbd8] sm:$0xff]
    %v462 = vld [vmem:[%s1 + $0xbe0] sm:$0xff]
    %v463 = vld [vmem:[%s1 + $0xbe8] sm:$0xff]
    %v464 = vld [vmem:[%s1 + $0xbf0] sm:$0xff]
    %v465 = vld [vmem:[%s1 + $0xbf8] sm:$0xff]
    %v466 = vld [vmem:[%s1 + $0xc00] sm:$0xff]
    %v467 = vld [vmem:[%s1 + $0xc08] sm:$0xff]
    %v468 = vld [vmem:[%s1 + $0xc10] sm:$0xff]
    %v469 = vld [vmem:[%s1 + $0xc18] sm:$0xff]
    %v470 = vld [vmem:[%s1 + $0xc20] sm:$0xff]
    %v471 = vld [vmem:[%s1 + $0xc28] sm:$0xff]
    %v472 = vld [vmem:[%s1 + $0xc30] sm:$0xff]
    %v473 = vld [vmem:[%s1 + $0xc38] sm:$0xff]
    %v474 = vld [vmem:[%s1 + $0xc40] sm:$0xff]
    %v475 = vld [vmem:[%s1 + $0xc48] sm:$0xff]
    %v476 = vld [vmem:[%s1 + $0xc50] sm:$0xff]
    %v477 = vld [vmem:[%s1 + $0xc58] sm:$0xff]
    %v478 = vld [vmem:[%s1 + $0xc60] sm:$0xff]
    %v479 = vld [vmem:[%s1 + $0xc68] sm:$0xff]
    %v480 = vld [vmem:[%s1 + $0xc70] sm:$0xff]
    %v481 = vld [vmem:[%s1 + $0xc78] sm:$0xff]
    %v482 = vld [vmem:[%s1 + $0xc80] sm:$0xff]
    %v483 = vld [vmem:[%s1 + $0xc88] sm:$0xff]
    %v484 = vld [vmem:[%s1 + $0xc90] sm:$0xff]
    %v485 = vld [vmem:[%s1 + $0xc98] sm:$0xff]
    %v486 = vld [vmem:[%s1 + $0xca0] sm:$0xff]
    %v487 = vld [vmem:[%s1 + $0xca8] sm:$0xff]
    %v488 = vld [vmem:[%s1 + $0xcb0] sm:$0xff]
    %v489 = vld [vmem:[%s1 + $0xcb8] sm:$0xff]
    %v490 = vld [vmem:[%s1 + $0xcc0] sm:$0xff]
    %v491 = vld [vmem:[%s1 + $0xcc8] sm:$0xff]
    %v492 = vld [vmem:[%s1 + $0xcd0] sm:$0xff]
    %v493 = vld [vmem:[%s1 + $0xcd8] sm:$0xff]
    %v494 = vld [vmem:[%s1 + $0xce0] sm:$0xff]
    %v495 = vld [vmem:[%s1 + $0xce8] sm:$0xff]
    %v496 = vld [vmem:[%s1 + $0xcf0] sm:$0xff]
    %v497 = vld [vmem:[%s1 + $0xcf8] sm:$0xff]
    %v498 = vld [vmem:[%s1 + $0xd00] sm:$0xff]
    %v499 = vld [vmem:[%s1 + $0xd08] sm:$0xff]
    %v500 = vld [vmem:[%s1 + $0xd10] sm:$0xff]
    %v501 = vld [vmem:[%s1 + $0xd18] sm:$0xff]
    %v502 = vld [vmem:[%s1 + $0xd20] sm:$0xff]
    %v503 = vld [vmem:[%s1 + $0xd28] sm:$0xff]
    %v504 = vld [vmem:[%s1 + $0xd30] sm:$0xff]
    %v505 = vld [vmem:[%s1 + $0xd38] sm:$0xff]
    %v506 = vld [vmem:[%s1 + $0xd40] sm:$0xff]
    %v507 = vld [vmem:[%s1 + $0xd48] sm:$0xff]
    %v508 = vld [vmem:[%s1 + $0xd50] sm:$0xff]
    %v509 = vld [vmem:[%s1 + $0xd58] sm:$0xff]
    %v510 = vld [vmem:[%s1 + $0xd60] sm:$0xff]
    %v511 = vld [vmem:[%s1 + $0xd68] sm:$0xff]
    %v512 = vld [vmem:[%s1 + $0xd70] sm:$0xff]
    %v513 = vld [vmem:[%s1 + $0xd78] sm:$0xff]
    %v514 = vld [vmem:[%s1 + $0xd80] sm:$0xff]
    %v515 = vld [vmem:[%s1 + $0xd88] sm:$0xff]
    %v516 = vld [vmem:[%s1 + $0xd90] sm:$0xff]
    %v517 = vld [vmem:[%s1 + $0xd98] sm:$0xff]
    %v518 = vld [vmem:[%s1 + $0xda0] sm:$0xff]
    %v519 = vld [vmem:[%s1 + $0xda8] sm:$0xff]
    %v520 = vld [vmem:[%s1 + $0xdb0] sm:$0xff]
    %v521 = vld [vmem:[%s1 + $0xdb8] sm:$0xff]
    %v522 = vld [vmem:[%s1 + $0xdc0] sm:$0xff]
    %v523 = vld [vmem:[%s1 + $0xdc8] sm:$0xff]
    %v524 = vld [vmem:[%s1 + $0xdd0] sm:$0xff]
    %v525 = vld [vmem:[%s1 + $0xdd8] sm:$0xff]
    %v526 = vld [vmem:[%s1 + $0xde0] sm:$0xff]
    %v527 = vld [vmem:[%s1 + $0xde8] sm:$0xff]
    %v528 = vld [vmem:[%s1 + $0xdf0] sm:$0xff]
    %v529 = vld [vmem:[%s1 + $0xdf8] sm:$0xff]
    %v530 = vld [vmem:[%s1 + $0xe00] sm:$0xff]
    %v531 = vld [vmem:[%s1 + $0xe08] sm:$0xff]
    %v532 = vld [vmem:[%s1 + $0xe10] sm:$0xff]
    %v533 = vld [vmem:[%s1 + $0xe18] sm:$0xff]
    %v534 = vld [vmem:[%s1 + $0xe20] sm:$0xff]
    %v535 = vld [vmem:[%s1 + $0xe28] sm:$0xff]
    %v536 = vld [vmem:[%s1 + $0xe30] sm:$0xff]
    %v537 = vld [vmem:[%s1 + $0xe38] sm:$0xff]
    %v538 = vld [vmem:[%s1 + $0xe40] sm:$0xff]
    %v539 = vld [vmem:[%s1 + $0xe48] sm:$0xff]
    %v540 = vld [vmem:[%s1 + $0xe50] sm:$0xff]
    %v541 = vld [vmem:[%s1 + $0xe58] sm:$0xff]
    %v542 = vld [vmem:[%s1 + $0xe60] sm:$0xff]
    %v543 = vld [vmem:[%s1 + $0xe68] sm:$0xff]
    %v544 = vld [vmem:[%s1 + $0xe70] sm:$0xff]
    %v545 = vld [vmem:[%s1 + $0xe78] sm:$0xff]
    %v546 = vld [vmem:[%s1 + $0xe80] sm:$0xff]
    %v547 = vld [vmem:[%s1 + $0xe88] sm:$0xff]
    %v548 = vld [vmem:[%s1 + $0xe90] sm:$0xff]
    %v549 = vld [vmem:[%s1 + $0xe98] sm:$0xff]
    %v550 = vld [vmem:[%s1 + $0xea0] sm:$0xff]
    %v551 = vld [vmem:[%s1 + $0xea8] sm:$0xff]
    %v552 = vld [vmem:[%s1 + $0xeb0] sm:$0xff]
    %v553 = vld [vmem:[%s1 + $0xeb8] sm:$0xff]
    %v554 = vld [vmem:[%s1 + $0xec0] sm:$0xff]
    %v555 = vld [vmem:[%s1 + $0xec8] sm:$0xff]
    %v556 = vld [vmem:[%s1 + $0xed0] sm:$0xff]
    %v557 = vld [vmem:[%s1 + $0xed8] sm:$0xff]
    %v558 = vld [vmem:[%s1 + $0xee0] sm:$0xff]
    %v559 = vld [vmem:[%s1 + $0xee8] sm:$0xff]
    %v560 = vld [vmem:[%s1 + $0xef0] sm:$0xff]
    %v561 = vld [vmem:[%s1 + $0xef8] sm:$0xff]
    %v562 = vld [vmem:[%s1 + $0xf00] sm:$0xff]
    %v563 = vld [vmem:[%s1 + $0xf08] sm:$0xff]
    %v564 = vld [vmem:[%s1 + $0xf10] sm:$0xff]
    %v565 = vld [vmem:[%s1 + $0xf18] sm:$0xff]
    %v566 = vld [vmem:[%s1 + $0xf20] sm:$0xff]
    %v567 = vld [vmem:[%s1 + $0xf28] sm:$0xff]
    %v568 = vld [vmem:[%s1 + $0xf30] sm:$0xff]
    %v569 = vld [vmem:[%s1 + $0xf38] sm:$0xff]
    %v570 = vld [vmem:[%s1 + $0xf40] sm:$0xff]
    %v571 = vld [vmem:[%s1 + $0xf48] sm:$0xff]
    %v572 = vld [vmem:[%s1 + $0xf50] sm:$0xff]
    %v573 = vld [vmem:[%s1 + $0xf58] sm:$0xff]
    %v574 = vld [vmem:[%s1 + $0xf60] sm:$0xff]
    %v575 = vld [vmem:[%s1 + $0xf68] sm:$0xff]
    %v576 = vld [vmem:[%s1 + $0xf70] sm:$0xff]
    %v577 = vld [vmem:[%s1 + $0xf78] sm:$0xff]
    %v578 = vld [vmem:[%s1 + $0xf80] sm:$0xff]
    %v579 = vld [vmem:[%s1 + $0xf88] sm:$0xff]
    %v580 = vld [vmem:[%s1 + $0xf90] sm:$0xff]
    %v581 = vld [vmem:[%s1 + $0xf98] sm:$0xff]
    %v582 = vld [vmem:[%s1 + $0xfa0] sm:$0xff]
    %v583 = vld [vmem:[%s1 + $0xfa8] sm:$0xff]
    %v584 = vld [vmem:[%s1 + $0xfb0] sm:$0xff]
    %v585 = vld [vmem:[%s1 + $0xfb8] sm:$0xff]
    %v586 = vld [vmem:[%s1 + $0xfc0] sm:$0xff]
    %v587 = vld [vmem:[%s1 + $0xfc8] sm:$0xff]
    %v588 = vld [vmem:[%s1 + $0xfd0] sm:$0xff]
    %v589 = vld [vmem:[%s1 + $0xfd8] sm:$0xff]
    %v590 = vld [vmem:[%s1 + $0xfe0] sm:$0xff]
    %v591 = vld [vmem:[%s1 + $0xfe8] sm:$0xff]
    %v592 = vld [vmem:[%s1 + $0xff0] sm:$0xff]
    %v593 = vld [vmem:[%s1 + $0xff8] sm:$0xff]
    %v594 = vld [vmem:[%s2] sm:$0xf]
    %v596 = vperm.slane %v594, 0
    %v597 = vperm.slane %v594, 1
    %v598 = vperm.slane %v594, 2
    %v599 = vperm.slane %v594, 3
    %v1116 = vunpack.c.l.b16 %v82
    %v1117 = vunpack.c.h.b16 %v82
    %v1118 = vunpack.c.l.b16 %v83
    %v1119 = vunpack.c.h.b16 %v83
    %v1120 = vunpack.c.l.b16 %v84
    %v1121 = vunpack.c.h.b16 %v84
    %v1122 = vunpack.c.l.b16 %v85
    %v1123 = vunpack.c.h.b16 %v85
    %v1124 = vunpack.c.l.b16 %v86
    %v1125 = vunpack.c.h.b16 %v86
    %v1126 = vunpack.c.l.b16 %v87
    %v1127 = vunpack.c.h.b16 %v87
    %v1128 = vunpack.c.l.b16 %v88
    %v1129 = vunpack.c.h.b16 %v88
    %v1130 = vunpack.c.l.b16 %v89
    %v1131 = vunpack.c.h.b16 %v89
    %v1132 = vunpack.c.l.b16 %v90
    %v1133 = vunpack.c.h.b16 %v90
    %v1134 = vunpack.c.l.b16 %v91
    %v1135 = vunpack.c.h.b16 %v91
    %v1136 = vunpack.c.l.b16 %v92
    %v1137 = vunpack.c.h.b16 %v92
    %v1138 = vunpack.c.l.b16 %v93
    %v1139 = vunpack.c.h.b16 %v93
    %v1140 = vunpack.c.l.b16 %v94
    %v1141 = vunpack.c.h.b16 %v94
    %v1142 = vunpack.c.l.b16 %v95
    %v1143 = vunpack.c.h.b16 %v95
    %v1144 = vunpack.c.l.b16 %v96
    %v1145 = vunpack.c.h.b16 %v96
    %v1146 = vunpack.c.l.b16 %v97
    %v1147 = vunpack.c.h.b16 %v97
    %v1148 = vunpack.c.l.b16 %v98
    %v1149 = vunpack.c.h.b16 %v98
    %v1150 = vunpack.c.l.b16 %v99
    %v1151 = vunpack.c.h.b16 %v99
    %v1152 = vunpack.c.l.b16 %v100
    %v1153 = vunpack.c.h.b16 %v100
    %v1154 = vunpack.c.l.b16 %v101
    %v1155 = vunpack.c.h.b16 %v101
    %v1156 = vunpack.c.l.b16 %v102
    %v1157 = vunpack.c.h.b16 %v102
    %v1158 = vunpack.c.l.b16 %v103
    %v1159 = vunpack.c.h.b16 %v103
    %v1160 = vunpack.c.l.b16 %v104
    %v1161 = vunpack.c.h.b16 %v104
    %v1162 = vunpack.c.l.b16 %v105
    %v1163 = vunpack.c.h.b16 %v105
    %v1164 = vunpack.c.l.b16 %v106
    %v1165 = vunpack.c.h.b16 %v106
    %v1166 = vunpack.c.l.b16 %v107
    %v1167 = vunpack.c.h.b16 %v107
    %v1168 = vunpack.c.l.b16 %v108
    %v1169 = vunpack.c.h.b16 %v108
    %v1170 = vunpack.c.l.b16 %v109
    %v1171 = vunpack.c.h.b16 %v109
    %v1172 = vunpack.c.l.b16 %v110
    %v1173 = vunpack.c.h.b16 %v110
    %v1174 = vunpack.c.l.b16 %v111
    %v1175 = vunpack.c.h.b16 %v111
    %v1176 = vunpack.c.l.b16 %v112
    %v1177 = vunpack.c.h.b16 %v112
    %v1178 = vunpack.c.l.b16 %v113
    %v1179 = vunpack.c.h.b16 %v113
    %v1180 = vunpack.c.l.b16 %v114
    %v1181 = vunpack.c.h.b16 %v114
    %v1182 = vunpack.c.l.b16 %v115
    %v1183 = vunpack.c.h.b16 %v115
    %v1184 = vunpack.c.l.b16 %v116
    %v1185 = vunpack.c.h.b16 %v116
    %v1186 = vunpack.c.l.b16 %v117
    %v1187 = vunpack.c.h.b16 %v117
    %v1188 = vunpack.c.l.b16 %v118
    %v1189 = vunpack.c.h.b16 %v118
    %v1190 = vunpack.c.l.b16 %v119
    %v1191 = vunpack.c.h.b16 %v119
    %v1192 = vunpack.c.l.b16 %v120
    %v1193 = vunpack.c.h.b16 %v120
    %v1194 = vunpack.c.l.b16 %v121
    %v1195 = vunpack.c.h.b16 %v121
    %v1196 = vunpack.c.l.b16 %v122
    %v1197 = vunpack.c.h.b16 %v122
    %v1198 = vunpack.c.l.b16 %v123
    %v1199 = vunpack.c.h.b16 %v123
    %v1200 = vunpack.c.l.b16 %v124
    %v1201 = vunpack.c.h.b16 %v124
    %v1202 = vunpack.c.l.b16 %v125
    %v1203 = vunpack.c.h.b16 %v125
    %v1204 = vunpack.c.l.b16 %v126
    %v1205 = vunpack.c.h.b16 %v126
    %v1206 = vunpack.c.l.b16 %v127
    %v1207 = vunpack.c.h.b16 %v127
    %v1208 = vunpack.c.l.b16 %v128
    %v1209 = vunpack.c.h.b16 %v128
    %v1210 = vunpack.c.l.b16 %v129
    %v1211 = vunpack.c.h.b16 %v129
    %v1212 = vunpack.c.l.b16 %v130
    %v1213 = vunpack.c.h.b16 %v130
    %v1214 = vunpack.c.l.b16 %v131
    %v1215 = vunpack.c.h.b16 %v131
    %v1216 = vunpack.c.l.b16 %v132
    %v1217 = vunpack.c.h.b16 %v132
    %v1218 = vunpack.c.l.b16 %v133
    %v1219 = vunpack.c.h.b16 %v133
    %v1220 = vunpack.c.l.b16 %v134
    %v1221 = vunpack.c.h.b16 %v134
    %v1222 = vunpack.c.l.b16 %v135
    %v1223 = vunpack.c.h.b16 %v135
    %v1224 = vunpack.c.l.b16 %v136
    %v1225 = vunpack.c.h.b16 %v136
    %v1226 = vunpack.c.l.b16 %v137
    %v1227 = vunpack.c.h.b16 %v137
    %v1228 = vunpack.c.l.b16 %v138
    %v1229 = vunpack.c.h.b16 %v138
    %v1230 = vunpack.c.l.b16 %v139
    %v1231 = vunpack.c.h.b16 %v139
    %v1232 = vunpack.c.l.b16 %v140
    %v1233 = vunpack.c.h.b16 %v140
    %v1234 = vunpack.c.l.b16 %v141
    %v1235 = vunpack.c.h.b16 %v141
    %v1236 = vunpack.c.l.b16 %v142
    %v1237 = vunpack.c.h.b16 %v142
    %v1238 = vunpack.c.l.b16 %v143
    %v1239 = vunpack.c.h.b16 %v143
    %v1240 = vunpack.c.l.b16 %v144
    %v1241 = vunpack.c.h.b16 %v144
    %v1242 = vunpack.c.l.b16 %v145
    %v1243 = vunpack.c.h.b16 %v145
    %v1244 = vunpack.c.l.b16 %v146
    %v1245 = vunpack.c.h.b16 %v146
    %v1246 = vunpack.c.l.b16 %v147
    %v1247 = vunpack.c.h.b16 %v147
    %v1248 = vunpack.c.l.b16 %v148
    %v1249 = vunpack.c.h.b16 %v148
    %v1250 = vunpack.c.l.b16 %v149
    %v1251 = vunpack.c.h.b16 %v149
    %v1252 = vunpack.c.l.b16 %v150
    %v1253 = vunpack.c.h.b16 %v150
    %v1254 = vunpack.c.l.b16 %v151
    %v1255 = vunpack.c.h.b16 %v151
    %v1256 = vunpack.c.l.b16 %v152
    %v1257 = vunpack.c.h.b16 %v152
    %v1258 = vunpack.c.l.b16 %v153
    %v1259 = vunpack.c.h.b16 %v153
    %v1260 = vunpack.c.l.b16 %v154
    %v1261 = vunpack.c.h.b16 %v154
    %v1262 = vunpack.c.l.b16 %v155
    %v1263 = vunpack.c.h.b16 %v155
    %v1264 = vunpack.c.l.b16 %v156
    %v1265 = vunpack.c.h.b16 %v156
    %v1266 = vunpack.c.l.b16 %v157
    %v1267 = vunpack.c.h.b16 %v157
    %v1268 = vunpack.c.l.b16 %v158
    %v1269 = vunpack.c.h.b16 %v158
    %v1270 = vunpack.c.l.b16 %v159
    %v1271 = vunpack.c.h.b16 %v159
    %v1272 = vunpack.c.l.b16 %v160
    %v1273 = vunpack.c.h.b16 %v160
    %v1274 = vunpack.c.l.b16 %v161
    %v1275 = vunpack.c.h.b16 %v161
    %v1276 = vunpack.c.l.b16 %v162
    %v1277 = vunpack.c.h.b16 %v162
    %v1278 = vunpack.c.l.b16 %v163
    %v1279 = vunpack.c.h.b16 %v163
    %v1280 = vunpack.c.l.b16 %v164
    %v1281 = vunpack.c.h.b16 %v164
    %v1282 = vunpack.c.l.b16 %v165
    %v1283 = vunpack.c.h.b16 %v165
    %v1284 = vunpack.c.l.b16 %v166
    %v1285 = vunpack.c.h.b16 %v166
    %v1286 = vunpack.c.l.b16 %v167
    %v1287 = vunpack.c.h.b16 %v167
    %v1288 = vunpack.c.l.b16 %v168
    %v1289 = vunpack.c.h.b16 %v168
    %v1290 = vunpack.c.l.b16 %v169
    %v1291 = vunpack.c.h.b16 %v169
    %v1292 = vunpack.c.l.b16 %v170
    %v1293 = vunpack.c.h.b16 %v170
    %v1294 = vunpack.c.l.b16 %v171
    %v1295 = vunpack.c.h.b16 %v171
    %v1296 = vunpack.c.l.b16 %v172
    %v1297 = vunpack.c.h.b16 %v172
    %v1298 = vunpack.c.l.b16 %v173
    %v1299 = vunpack.c.h.b16 %v173
    %v1300 = vunpack.c.l.b16 %v174
    %v1301 = vunpack.c.h.b16 %v174
    %v1302 = vunpack.c.l.b16 %v175
    %v1303 = vunpack.c.h.b16 %v175
    %v1304 = vunpack.c.l.b16 %v176
    %v1305 = vunpack.c.h.b16 %v176
    %v1306 = vunpack.c.l.b16 %v177
    %v1307 = vunpack.c.h.b16 %v177
    %v1308 = vunpack.c.l.b16 %v178
    %v1309 = vunpack.c.h.b16 %v178
    %v1310 = vunpack.c.l.b16 %v179
    %v1311 = vunpack.c.h.b16 %v179
    %v1312 = vunpack.c.l.b16 %v180
    %v1313 = vunpack.c.h.b16 %v180
    %v1314 = vunpack.c.l.b16 %v181
    %v1315 = vunpack.c.h.b16 %v181
    %v1316 = vunpack.c.l.b16 %v182
    %v1317 = vunpack.c.h.b16 %v182
    %v1318 = vunpack.c.l.b16 %v183
    %v1319 = vunpack.c.h.b16 %v183
    %v1320 = vunpack.c.l.b16 %v184
    %v1321 = vunpack.c.h.b16 %v184
    %v1322 = vunpack.c.l.b16 %v185
    %v1323 = vunpack.c.h.b16 %v185
    %v1324 = vunpack.c.l.b16 %v186
    %v1325 = vunpack.c.h.b16 %v186
    %v1326 = vunpack.c.l.b16 %v187
    %v1327 = vunpack.c.h.b16 %v187
    %v1328 = vunpack.c.l.b16 %v188
    %v1329 = vunpack.c.h.b16 %v188
    %v1330 = vunpack.c.l.b16 %v189
    %v1331 = vunpack.c.h.b16 %v189
    %v1332 = vunpack.c.l.b16 %v190
    %v1333 = vunpack.c.h.b16 %v190
    %v1334 = vunpack.c.l.b16 %v191
    %v1335 = vunpack.c.h.b16 %v191
    %v1336 = vunpack.c.l.b16 %v192
    %v1337 = vunpack.c.h.b16 %v192
    %v1338 = vunpack.c.l.b16 %v193
    %v1339 = vunpack.c.h.b16 %v193
    %v1340 = vunpack.c.l.b16 %v194
    %v1341 = vunpack.c.h.b16 %v194
    %v1342 = vunpack.c.l.b16 %v195
    %v1343 = vunpack.c.h.b16 %v195
    %v1344 = vunpack.c.l.b16 %v196
    %v1345 = vunpack.c.h.b16 %v196
    %v1346 = vunpack.c.l.b16 %v197
    %v1347 = vunpack.c.h.b16 %v197
    %v1348 = vunpack.c.l.b16 %v198
    %v1349 = vunpack.c.h.b16 %v198
    %v1350 = vunpack.c.l.b16 %v199
    %v1351 = vunpack.c.h.b16 %v199
    %v1352 = vunpack.c.l.b16 %v200
    %v1353 = vunpack.c.h.b16 %v200
    %v1354 = vunpack.c.l.b16 %v201
    %v1355 = vunpack.c.h.b16 %v201
    %v1356 = vunpack.c.l.b16 %v202
    %v1357 = vunpack.c.h.b16 %v202
    %v1358 = vunpack.c.l.b16 %v203
    %v1359 = vunpack.c.h.b16 %v203
    %v1360 = vunpack.c.l.b16 %v204
    %v1361 = vunpack.c.h.b16 %v204
    %v1362 = vunpack.c.l.b16 %v205
    %v1363 = vunpack.c.h.b16 %v205
    %v1364 = vunpack.c.l.b16 %v206
    %v1365 = vunpack.c.h.b16 %v206
    %v1366 = vunpack.c.l.b16 %v207
    %v1367 = vunpack.c.h.b16 %v207
    %v1368 = vunpack.c.l.b16 %v208
    %v1369 = vunpack.c.h.b16 %v208
    %v1370 = vunpack.c.l.b16 %v209
    %v1371 = vunpack.c.h.b16 %v209
    %v1372 = vunpack.c.l.b16 %v210
    %v1373 = vunpack.c.h.b16 %v210
    %v1374 = vunpack.c.l.b16 %v211
    %v1375 = vunpack.c.h.b16 %v211
    %v1376 = vunpack.c.l.b16 %v212
    %v1377 = vunpack.c.h.b16 %v212
    %v1378 = vunpack.c.l.b16 %v213
    %v1379 = vunpack.c.h.b16 %v213
    %v1380 = vunpack.c.l.b16 %v214
    %v1381 = vunpack.c.h.b16 %v214
    %v1382 = vunpack.c.l.b16 %v215
    %v1383 = vunpack.c.h.b16 %v215
    %v1384 = vunpack.c.l.b16 %v216
    %v1385 = vunpack.c.h.b16 %v216
    %v1386 = vunpack.c.l.b16 %v217
    %v1387 = vunpack.c.h.b16 %v217
    %v1388 = vunpack.c.l.b16 %v218
    %v1389 = vunpack.c.h.b16 %v218
    %v1390 = vunpack.c.l.b16 %v219
    %v1391 = vunpack.c.h.b16 %v219
    %v1392 = vunpack.c.l.b16 %v220
    %v1393 = vunpack.c.h.b16 %v220
    %v1394 = vunpack.c.l.b16 %v221
    %v1395 = vunpack.c.h.b16 %v221
    %v1396 = vunpack.c.l.b16 %v222
    %v1397 = vunpack.c.h.b16 %v222
    %v1398 = vunpack.c.l.b16 %v223
    %v1399 = vunpack.c.h.b16 %v223
    %v1400 = vunpack.c.l.b16 %v224
    %v1401 = vunpack.c.h.b16 %v224
    %v1402 = vunpack.c.l.b16 %v225
    %v1403 = vunpack.c.h.b16 %v225
    %v1404 = vunpack.c.l.b16 %v226
    %v1405 = vunpack.c.h.b16 %v226
    %v1406 = vunpack.c.l.b16 %v227
    %v1407 = vunpack.c.h.b16 %v227
    %v1408 = vunpack.c.l.b16 %v228
    %v1409 = vunpack.c.h.b16 %v228
    %v1410 = vunpack.c.l.b16 %v229
    %v1411 = vunpack.c.h.b16 %v229
    %v1412 = vunpack.c.l.b16 %v230
    %v1413 = vunpack.c.h.b16 %v230
    %v1414 = vunpack.c.l.b16 %v231
    %v1415 = vunpack.c.h.b16 %v231
    %v1416 = vunpack.c.l.b16 %v232
    %v1417 = vunpack.c.h.b16 %v232
    %v1418 = vunpack.c.l.b16 %v233
    %v1419 = vunpack.c.h.b16 %v233
    %v1420 = vunpack.c.l.b16 %v234
    %v1421 = vunpack.c.h.b16 %v234
    %v1422 = vunpack.c.l.b16 %v235
    %v1423 = vunpack.c.h.b16 %v235
    %v1424 = vunpack.c.l.b16 %v236
    %v1425 = vunpack.c.h.b16 %v236
    %v1426 = vunpack.c.l.b16 %v237
    %v1427 = vunpack.c.h.b16 %v237
    %v1428 = vunpack.c.l.b16 %v238
    %v1429 = vunpack.c.h.b16 %v238
    %v1430 = vunpack.c.l.b16 %v239
    %v1431 = vunpack.c.h.b16 %v239
    %v1432 = vunpack.c.l.b16 %v240
    %v1433 = vunpack.c.h.b16 %v240
    %v1434 = vunpack.c.l.b16 %v241
    %v1435 = vunpack.c.h.b16 %v241
    %v1436 = vunpack.c.l.b16 %v242
    %v1437 = vunpack.c.h.b16 %v242
    %v1438 = vunpack.c.l.b16 %v243
    %v1439 = vunpack.c.h.b16 %v243
    %v1440 = vunpack.c.l.b16 %v244
    %v1441 = vunpack.c.h.b16 %v244
    %v1442 = vunpack.c.l.b16 %v245
    %v1443 = vunpack.c.h.b16 %v245
    %v1444 = vunpack.c.l.b16 %v246
    %v1445 = vunpack.c.h.b16 %v246
    %v1446 = vunpack.c.l.b16 %v247
    %v1447 = vunpack.c.h.b16 %v247
    %v1448 = vunpack.c.l.b16 %v248
    %v1449 = vunpack.c.h.b16 %v248
    %v1450 = vunpack.c.l.b16 %v249
    %v1451 = vunpack.c.h.b16 %v249
    %v1452 = vunpack.c.l.b16 %v250
    %v1453 = vunpack.c.h.b16 %v250
    %v1454 = vunpack.c.l.b16 %v251
    %v1455 = vunpack.c.h.b16 %v251
    %v1456 = vunpack.c.l.b16 %v252
    %v1457 = vunpack.c.h.b16 %v252
    %v1458 = vunpack.c.l.b16 %v253
    %v1459 = vunpack.c.h.b16 %v253
    %v1460 = vunpack.c.l.b16 %v254
    %v1461 = vunpack.c.h.b16 %v254
    %v1462 = vunpack.c.l.b16 %v255
    %v1463 = vunpack.c.h.b16 %v255
    %v1464 = vunpack.c.l.b16 %v256
    %v1465 = vunpack.c.h.b16 %v256
    %v1466 = vunpack.c.l.b16 %v257
    %v1467 = vunpack.c.h.b16 %v257
    %v1468 = vunpack.c.l.b16 %v258
    %v1469 = vunpack.c.h.b16 %v258
    %v1470 = vunpack.c.l.b16 %v259
    %v1471 = vunpack.c.h.b16 %v259
    %v1472 = vunpack.c.l.b16 %v260
    %v1473 = vunpack.c.h.b16 %v260
    %v1474 = vunpack.c.l.b16 %v261
    %v1475 = vunpack.c.h.b16 %v261
    %v1476 = vunpack.c.l.b16 %v262
    %v1477 = vunpack.c.h.b16 %v262
    %v1478 = vunpack.c.l.b16 %v263
    %v1479 = vunpack.c.h.b16 %v263
    %v1480 = vunpack.c.l.b16 %v264
    %v1481 = vunpack.c.h.b16 %v264
    %v1482 = vunpack.c.l.b16 %v265
    %v1483 = vunpack.c.h.b16 %v265
    %v1484 = vunpack.c.l.b16 %v266
    %v1485 = vunpack.c.h.b16 %v266
    %v1486 = vunpack.c.l.b16 %v267
    %v1487 = vunpack.c.h.b16 %v267
    %v1488 = vunpack.c.l.b16 %v268
    %v1489 = vunpack.c.h.b16 %v268
    %v1490 = vunpack.c.l.b16 %v269
    %v1491 = vunpack.c.h.b16 %v269
    %v1492 = vunpack.c.l.b16 %v270
    %v1493 = vunpack.c.h.b16 %v270
    %v1494 = vunpack.c.l.b16 %v271
    %v1495 = vunpack.c.h.b16 %v271
    %v1496 = vunpack.c.l.b16 %v272
    %v1497 = vunpack.c.h.b16 %v272
    %v1498 = vunpack.c.l.b16 %v273
    %v1499 = vunpack.c.h.b16 %v273
    %v1500 = vunpack.c.l.b16 %v274
    %v1501 = vunpack.c.h.b16 %v274
    %v1502 = vunpack.c.l.b16 %v275
    %v1503 = vunpack.c.h.b16 %v275
    %v1504 = vunpack.c.l.b16 %v276
    %v1505 = vunpack.c.h.b16 %v276
    %v1506 = vunpack.c.l.b16 %v277
    %v1507 = vunpack.c.h.b16 %v277
    %v1508 = vunpack.c.l.b16 %v278
    %v1509 = vunpack.c.h.b16 %v278
    %v1510 = vunpack.c.l.b16 %v279
    %v1511 = vunpack.c.h.b16 %v279
    %v1512 = vunpack.c.l.b16 %v280
    %v1513 = vunpack.c.h.b16 %v280
    %v1514 = vunpack.c.l.b16 %v281
    %v1515 = vunpack.c.h.b16 %v281
    %v1516 = vunpack.c.l.b16 %v282
    %v1517 = vunpack.c.h.b16 %v282
    %v1518 = vunpack.c.l.b16 %v283
    %v1519 = vunpack.c.h.b16 %v283
    %v1520 = vunpack.c.l.b16 %v284
    %v1521 = vunpack.c.h.b16 %v284
    %v1522 = vunpack.c.l.b16 %v285
    %v1523 = vunpack.c.h.b16 %v285
    %v1524 = vunpack.c.l.b16 %v286
    %v1525 = vunpack.c.h.b16 %v286
    %v1526 = vunpack.c.l.b16 %v287
    %v1527 = vunpack.c.h.b16 %v287
    %v1528 = vunpack.c.l.b16 %v288
    %v1529 = vunpack.c.h.b16 %v288
    %v1530 = vunpack.c.l.b16 %v289
    %v1531 = vunpack.c.h.b16 %v289
    %v1532 = vunpack.c.l.b16 %v290
    %v1533 = vunpack.c.h.b16 %v290
    %v1534 = vunpack.c.l.b16 %v291
    %v1535 = vunpack.c.h.b16 %v291
    %v1536 = vunpack.c.l.b16 %v292
    %v1537 = vunpack.c.h.b16 %v292
    %v1538 = vunpack.c.l.b16 %v293
    %v1539 = vunpack.c.h.b16 %v293
    %v1540 = vunpack.c.l.b16 %v294
    %v1541 = vunpack.c.h.b16 %v294
    %v1542 = vunpack.c.l.b16 %v295
    %v1543 = vunpack.c.h.b16 %v295
    %v1544 = vunpack.c.l.b16 %v296
    %v1545 = vunpack.c.h.b16 %v296
    %v1546 = vunpack.c.l.b16 %v297
    %v1547 = vunpack.c.h.b16 %v297
    %v1548 = vunpack.c.l.b16 %v298
    %v1549 = vunpack.c.h.b16 %v298
    %v1550 = vunpack.c.l.b16 %v299
    %v1551 = vunpack.c.h.b16 %v299
    %v1552 = vunpack.c.l.b16 %v300
    %v1553 = vunpack.c.h.b16 %v300
    %v1554 = vunpack.c.l.b16 %v301
    %v1555 = vunpack.c.h.b16 %v301
    %v1556 = vunpack.c.l.b16 %v302
    %v1557 = vunpack.c.h.b16 %v302
    %v1558 = vunpack.c.l.b16 %v303
    %v1559 = vunpack.c.h.b16 %v303
    %v1560 = vunpack.c.l.b16 %v304
    %v1561 = vunpack.c.h.b16 %v304
    %v1562 = vunpack.c.l.b16 %v305
    %v1563 = vunpack.c.h.b16 %v305
    %v1564 = vunpack.c.l.b16 %v306
    %v1565 = vunpack.c.h.b16 %v306
    %v1566 = vunpack.c.l.b16 %v307
    %v1567 = vunpack.c.h.b16 %v307
    %v1568 = vunpack.c.l.b16 %v308
    %v1569 = vunpack.c.h.b16 %v308
    %v1570 = vunpack.c.l.b16 %v309
    %v1571 = vunpack.c.h.b16 %v309
    %v1572 = vunpack.c.l.b16 %v310
    %v1573 = vunpack.c.h.b16 %v310
    %v1574 = vunpack.c.l.b16 %v311
    %v1575 = vunpack.c.h.b16 %v311
    %v1576 = vunpack.c.l.b16 %v312
    %v1577 = vunpack.c.h.b16 %v312
    %v1578 = vunpack.c.l.b16 %v313
    %v1579 = vunpack.c.h.b16 %v313
    %v1580 = vunpack.c.l.b16 %v314
    %v1581 = vunpack.c.h.b16 %v314
    %v1582 = vunpack.c.l.b16 %v315
    %v1583 = vunpack.c.h.b16 %v315
    %v1584 = vunpack.c.l.b16 %v316
    %v1585 = vunpack.c.h.b16 %v316
    %v1586 = vunpack.c.l.b16 %v317
    %v1587 = vunpack.c.h.b16 %v317
    %v1588 = vunpack.c.l.b16 %v318
    %v1589 = vunpack.c.h.b16 %v318
    %v1590 = vunpack.c.l.b16 %v319
    %v1591 = vunpack.c.h.b16 %v319
    %v1592 = vunpack.c.l.b16 %v320
    %v1593 = vunpack.c.h.b16 %v320
    %v1594 = vunpack.c.l.b16 %v321
    %v1595 = vunpack.c.h.b16 %v321
    %v1596 = vunpack.c.l.b16 %v322
    %v1597 = vunpack.c.h.b16 %v322
    %v1598 = vunpack.c.l.b16 %v323
    %v1599 = vunpack.c.h.b16 %v323
    %v1600 = vunpack.c.l.b16 %v324
    %v1601 = vunpack.c.h.b16 %v324
    %v1602 = vunpack.c.l.b16 %v325
    %v1603 = vunpack.c.h.b16 %v325
    %v1604 = vunpack.c.l.b16 %v326
    %v1605 = vunpack.c.h.b16 %v326
    %v1606 = vunpack.c.l.b16 %v327
    %v1607 = vunpack.c.h.b16 %v327
    %v1608 = vunpack.c.l.b16 %v328
    %v1609 = vunpack.c.h.b16 %v328
    %v1610 = vunpack.c.l.b16 %v329
    %v1611 = vunpack.c.h.b16 %v329
    %v1612 = vunpack.c.l.b16 %v330
    %v1613 = vunpack.c.h.b16 %v330
    %v1614 = vunpack.c.l.b16 %v331
    %v1615 = vunpack.c.h.b16 %v331
    %v1616 = vunpack.c.l.b16 %v332
    %v1617 = vunpack.c.h.b16 %v332
    %v1618 = vunpack.c.l.b16 %v333
    %v1619 = vunpack.c.h.b16 %v333
    %v1620 = vunpack.c.l.b16 %v334
    %v1621 = vunpack.c.h.b16 %v334
    %v1622 = vunpack.c.l.b16 %v335
    %v1623 = vunpack.c.h.b16 %v335
    %v1624 = vunpack.c.l.b16 %v336
    %v1625 = vunpack.c.h.b16 %v336
    %v1626 = vunpack.c.l.b16 %v337
    %v1627 = vunpack.c.h.b16 %v337
    %v1628 = vunpack.c.l.b16 %v338
    %v1629 = vunpack.c.h.b16 %v338
    %v1630 = vunpack.c.l.b16 %v339
    %v1631 = vunpack.c.h.b16 %v339
    %v1632 = vunpack.c.l.b16 %v340
    %v1633 = vunpack.c.h.b16 %v340
    %v1634 = vunpack.c.l.b16 %v341
    %v1635 = vunpack.c.h.b16 %v341
    %v1636 = vunpack.c.l.b16 %v342
    %v1637 = vunpack.c.h.b16 %v342
    %v1638 = vunpack.c.l.b16 %v343
    %v1639 = vunpack.c.h.b16 %v343
    %v1640 = vunpack.c.l.b16 %v344
    %v1641 = vunpack.c.h.b16 %v344
    %v1642 = vunpack.c.l.b16 %v345
    %v1643 = vunpack.c.h.b16 %v345
    %v1644 = vunpack.c.l.b16 %v346
    %v1645 = vunpack.c.h.b16 %v346
    %v1646 = vunpack.c.l.b16 %v347
    %v1647 = vunpack.c.h.b16 %v347
    %v1648 = vunpack.c.l.b16 %v348
    %v1649 = vunpack.c.h.b16 %v348
    %v1650 = vunpack.c.l.b16 %v349
    %v1651 = vunpack.c.h.b16 %v349
    %v1652 = vunpack.c.l.b16 %v350
    %v1653 = vunpack.c.h.b16 %v350
    %v1654 = vunpack.c.l.b16 %v351
    %v1655 = vunpack.c.h.b16 %v351
    %v1656 = vunpack.c.l.b16 %v352
    %v1657 = vunpack.c.h.b16 %v352
    %v1658 = vunpack.c.l.b16 %v353
    %v1659 = vunpack.c.h.b16 %v353
    %v1660 = vunpack.c.l.b16 %v354
    %v1661 = vunpack.c.h.b16 %v354
    %v1662 = vunpack.c.l.b16 %v355
    %v1663 = vunpack.c.h.b16 %v355
    %v1664 = vunpack.c.l.b16 %v356
    %v1665 = vunpack.c.h.b16 %v356
    %v1666 = vunpack.c.l.b16 %v357
    %v1667 = vunpack.c.h.b16 %v357
    %v1668 = vunpack.c.l.b16 %v358
    %v1669 = vunpack.c.h.b16 %v358
    %v1670 = vunpack.c.l.b16 %v359
    %v1671 = vunpack.c.h.b16 %v359
    %v1672 = vunpack.c.l.b16 %v360
    %v1673 = vunpack.c.h.b16 %v360
    %v1674 = vunpack.c.l.b16 %v361
    %v1675 = vunpack.c.h.b16 %v361
    %v1676 = vunpack.c.l.b16 %v362
    %v1677 = vunpack.c.h.b16 %v362
    %v1678 = vunpack.c.l.b16 %v363
    %v1679 = vunpack.c.h.b16 %v363
    %v1680 = vunpack.c.l.b16 %v364
    %v1681 = vunpack.c.h.b16 %v364
    %v1682 = vunpack.c.l.b16 %v365
    %v1683 = vunpack.c.h.b16 %v365
    %v1684 = vunpack.c.l.b16 %v366
    %v1685 = vunpack.c.h.b16 %v366
    %v1686 = vunpack.c.l.b16 %v367
    %v1687 = vunpack.c.h.b16 %v367
    %v1688 = vunpack.c.l.b16 %v368
    %v1689 = vunpack.c.h.b16 %v368
    %v1690 = vunpack.c.l.b16 %v369
    %v1691 = vunpack.c.h.b16 %v369
    %v1692 = vunpack.c.l.b16 %v370
    %v1693 = vunpack.c.h.b16 %v370
    %v1694 = vunpack.c.l.b16 %v371
    %v1695 = vunpack.c.h.b16 %v371
    %v1696 = vunpack.c.l.b16 %v372
    %v1697 = vunpack.c.h.b16 %v372
    %v1698 = vunpack.c.l.b16 %v373
    %v1699 = vunpack.c.h.b16 %v373
    %v1700 = vunpack.c.l.b16 %v374
    %v1701 = vunpack.c.h.b16 %v374
    %v1702 = vunpack.c.l.b16 %v375
    %v1703 = vunpack.c.h.b16 %v375
    %v1704 = vunpack.c.l.b16 %v376
    %v1705 = vunpack.c.h.b16 %v376
    %v1706 = vunpack.c.l.b16 %v377
    %v1707 = vunpack.c.h.b16 %v377
    %v1708 = vunpack.c.l.b16 %v378
    %v1709 = vunpack.c.h.b16 %v378
    %v1710 = vunpack.c.l.b16 %v379
    %v1711 = vunpack.c.h.b16 %v379
    %v1712 = vunpack.c.l.b16 %v380
    %v1713 = vunpack.c.h.b16 %v380
    %v1714 = vunpack.c.l.b16 %v381
    %v1715 = vunpack.c.h.b16 %v381
    %v1716 = vunpack.c.l.b16 %v382
    %v1717 = vunpack.c.h.b16 %v382
    %v1718 = vunpack.c.l.b16 %v383
    %v1719 = vunpack.c.h.b16 %v383
    %v1720 = vunpack.c.l.b16 %v384
    %v1721 = vunpack.c.h.b16 %v384
    %v1722 = vunpack.c.l.b16 %v385
    %v1723 = vunpack.c.h.b16 %v385
    %v1724 = vunpack.c.l.b16 %v386
    %v1725 = vunpack.c.h.b16 %v386
    %v1726 = vunpack.c.l.b16 %v387
    %v1727 = vunpack.c.h.b16 %v387
    %v1728 = vunpack.c.l.b16 %v388
    %v1729 = vunpack.c.h.b16 %v388
    %v1730 = vunpack.c.l.b16 %v389
    %v1731 = vunpack.c.h.b16 %v389
    %v1732 = vunpack.c.l.b16 %v390
    %v1733 = vunpack.c.h.b16 %v390
    %v1734 = vunpack.c.l.b16 %v391
    %v1735 = vunpack.c.h.b16 %v391
    %v1736 = vunpack.c.l.b16 %v392
    %v1737 = vunpack.c.h.b16 %v392
    %v1738 = vunpack.c.l.b16 %v393
    %v1739 = vunpack.c.h.b16 %v393
    %v1740 = vunpack.c.l.b16 %v394
    %v1741 = vunpack.c.h.b16 %v394
    %v1742 = vunpack.c.l.b16 %v395
    %v1743 = vunpack.c.h.b16 %v395
    %v1744 = vunpack.c.l.b16 %v396
    %v1745 = vunpack.c.h.b16 %v396
    %v1746 = vunpack.c.l.b16 %v397
    %v1747 = vunpack.c.h.b16 %v397
    %v1748 = vunpack.c.l.b16 %v398
    %v1749 = vunpack.c.h.b16 %v398
    %v1750 = vunpack.c.l.b16 %v399
    %v1751 = vunpack.c.h.b16 %v399
    %v1752 = vunpack.c.l.b16 %v400
    %v1753 = vunpack.c.h.b16 %v400
    %v1754 = vunpack.c.l.b16 %v401
    %v1755 = vunpack.c.h.b16 %v401
    %v1756 = vunpack.c.l.b16 %v402
    %v1757 = vunpack.c.h.b16 %v402
    %v1758 = vunpack.c.l.b16 %v403
    %v1759 = vunpack.c.h.b16 %v403
    %v1760 = vunpack.c.l.b16 %v404
    %v1761 = vunpack.c.h.b16 %v404
    %v1762 = vunpack.c.l.b16 %v405
    %v1763 = vunpack.c.h.b16 %v405
    %v1764 = vunpack.c.l.b16 %v406
    %v1765 = vunpack.c.h.b16 %v406
    %v1766 = vunpack.c.l.b16 %v407
    %v1767 = vunpack.c.h.b16 %v407
    %v1768 = vunpack.c.l.b16 %v408
    %v1769 = vunpack.c.h.b16 %v408
    %v1770 = vunpack.c.l.b16 %v409
    %v1771 = vunpack.c.h.b16 %v409
    %v1772 = vunpack.c.l.b16 %v410
    %v1773 = vunpack.c.h.b16 %v410
    %v1774 = vunpack.c.l.b16 %v411
    %v1775 = vunpack.c.h.b16 %v411
    %v1776 = vunpack.c.l.b16 %v412
    %v1777 = vunpack.c.h.b16 %v412
    %v1778 = vunpack.c.l.b16 %v413
    %v1779 = vunpack.c.h.b16 %v413
    %v1780 = vunpack.c.l.b16 %v414
    %v1781 = vunpack.c.h.b16 %v414
    %v1782 = vunpack.c.l.b16 %v415
    %v1783 = vunpack.c.h.b16 %v415
    %v1784 = vunpack.c.l.b16 %v416
    %v1785 = vunpack.c.h.b16 %v416
    %v1786 = vunpack.c.l.b16 %v417
    %v1787 = vunpack.c.h.b16 %v417
    %v1788 = vunpack.c.l.b16 %v418
    %v1789 = vunpack.c.h.b16 %v418
    %v1790 = vunpack.c.l.b16 %v419
    %v1791 = vunpack.c.h.b16 %v419
    %v1792 = vunpack.c.l.b16 %v420
    %v1793 = vunpack.c.h.b16 %v420
    %v1794 = vunpack.c.l.b16 %v421
    %v1795 = vunpack.c.h.b16 %v421
    %v1796 = vunpack.c.l.b16 %v422
    %v1797 = vunpack.c.h.b16 %v422
    %v1798 = vunpack.c.l.b16 %v423
    %v1799 = vunpack.c.h.b16 %v423
    %v1800 = vunpack.c.l.b16 %v424
    %v1801 = vunpack.c.h.b16 %v424
    %v1802 = vunpack.c.l.b16 %v425
    %v1803 = vunpack.c.h.b16 %v425
    %v1804 = vunpack.c.l.b16 %v426
    %v1805 = vunpack.c.h.b16 %v426
    %v1806 = vunpack.c.l.b16 %v427
    %v1807 = vunpack.c.h.b16 %v427
    %v1808 = vunpack.c.l.b16 %v428
    %v1809 = vunpack.c.h.b16 %v428
    %v1810 = vunpack.c.l.b16 %v429
    %v1811 = vunpack.c.h.b16 %v429
    %v1812 = vunpack.c.l.b16 %v430
    %v1813 = vunpack.c.h.b16 %v430
    %v1814 = vunpack.c.l.b16 %v431
    %v1815 = vunpack.c.h.b16 %v431
    %v1816 = vunpack.c.l.b16 %v432
    %v1817 = vunpack.c.h.b16 %v432
    %v1818 = vunpack.c.l.b16 %v433
    %v1819 = vunpack.c.h.b16 %v433
    %v1820 = vunpack.c.l.b16 %v434
    %v1821 = vunpack.c.h.b16 %v434
    %v1822 = vunpack.c.l.b16 %v435
    %v1823 = vunpack.c.h.b16 %v435
    %v1824 = vunpack.c.l.b16 %v436
    %v1825 = vunpack.c.h.b16 %v436
    %v1826 = vunpack.c.l.b16 %v437
    %v1827 = vunpack.c.h.b16 %v437
    %v1828 = vunpack.c.l.b16 %v438
    %v1829 = vunpack.c.h.b16 %v438
    %v1830 = vunpack.c.l.b16 %v439
    %v1831 = vunpack.c.h.b16 %v439
    %v1832 = vunpack.c.l.b16 %v440
    %v1833 = vunpack.c.h.b16 %v440
    %v1834 = vunpack.c.l.b16 %v441
    %v1835 = vunpack.c.h.b16 %v441
    %v1836 = vunpack.c.l.b16 %v442
    %v1837 = vunpack.c.h.b16 %v442
    %v1838 = vunpack.c.l.b16 %v443
    %v1839 = vunpack.c.h.b16 %v443
    %v1840 = vunpack.c.l.b16 %v444
    %v1841 = vunpack.c.h.b16 %v444
    %v1842 = vunpack.c.l.b16 %v445
    %v1843 = vunpack.c.h.b16 %v445
    %v1844 = vunpack.c.l.b16 %v446
    %v1845 = vunpack.c.h.b16 %v446
    %v1846 = vunpack.c.l.b16 %v447
    %v1847 = vunpack.c.h.b16 %v447
    %v1848 = vunpack.c.l.b16 %v448
    %v1849 = vunpack.c.h.b16 %v448
    %v1850 = vunpack.c.l.b16 %v449
    %v1851 = vunpack.c.h.b16 %v449
    %v1852 = vunpack.c.l.b16 %v450
    %v1853 = vunpack.c.h.b16 %v450
    %v1854 = vunpack.c.l.b16 %v451
    %v1855 = vunpack.c.h.b16 %v451
    %v1856 = vunpack.c.l.b16 %v452
    %v1857 = vunpack.c.h.b16 %v452
    %v1858 = vunpack.c.l.b16 %v453
    %v1859 = vunpack.c.h.b16 %v453
    %v1860 = vunpack.c.l.b16 %v454
    %v1861 = vunpack.c.h.b16 %v454
    %v1862 = vunpack.c.l.b16 %v455
    %v1863 = vunpack.c.h.b16 %v455
    %v1864 = vunpack.c.l.b16 %v456
    %v1865 = vunpack.c.h.b16 %v456
    %v1866 = vunpack.c.l.b16 %v457
    %v1867 = vunpack.c.h.b16 %v457
    %v1868 = vunpack.c.l.b16 %v458
    %v1869 = vunpack.c.h.b16 %v458
    %v1870 = vunpack.c.l.b16 %v459
    %v1871 = vunpack.c.h.b16 %v459
    %v1872 = vunpack.c.l.b16 %v460
    %v1873 = vunpack.c.h.b16 %v460
    %v1874 = vunpack.c.l.b16 %v461
    %v1875 = vunpack.c.h.b16 %v461
    %v1876 = vunpack.c.l.b16 %v462
    %v1877 = vunpack.c.h.b16 %v462
    %v1878 = vunpack.c.l.b16 %v463
    %v1879 = vunpack.c.h.b16 %v463
    %v1880 = vunpack.c.l.b16 %v464
    %v1881 = vunpack.c.h.b16 %v464
    %v1882 = vunpack.c.l.b16 %v465
    %v1883 = vunpack.c.h.b16 %v465
    %v1884 = vunpack.c.l.b16 %v466
    %v1885 = vunpack.c.h.b16 %v466
    %v1886 = vunpack.c.l.b16 %v467
    %v1887 = vunpack.c.h.b16 %v467
    %v1888 = vunpack.c.l.b16 %v468
    %v1889 = vunpack.c.h.b16 %v468
    %v1890 = vunpack.c.l.b16 %v469
    %v1891 = vunpack.c.h.b16 %v469
    %v1892 = vunpack.c.l.b16 %v470
    %v1893 = vunpack.c.h.b16 %v470
    %v1894 = vunpack.c.l.b16 %v471
    %v1895 = vunpack.c.h.b16 %v471
    %v1896 = vunpack.c.l.b16 %v472
    %v1897 = vunpack.c.h.b16 %v472
    %v1898 = vunpack.c.l.b16 %v473
    %v1899 = vunpack.c.h.b16 %v473
    %v1900 = vunpack.c.l.b16 %v474
    %v1901 = vunpack.c.h.b16 %v474
    %v1902 = vunpack.c.l.b16 %v475
    %v1903 = vunpack.c.h.b16 %v475
    %v1904 = vunpack.c.l.b16 %v476
    %v1905 = vunpack.c.h.b16 %v476
    %v1906 = vunpack.c.l.b16 %v477
    %v1907 = vunpack.c.h.b16 %v477
    %v1908 = vunpack.c.l.b16 %v478
    %v1909 = vunpack.c.h.b16 %v478
    %v1910 = vunpack.c.l.b16 %v479
    %v1911 = vunpack.c.h.b16 %v479
    %v1912 = vunpack.c.l.b16 %v480
    %v1913 = vunpack.c.h.b16 %v480
    %v1914 = vunpack.c.l.b16 %v481
    %v1915 = vunpack.c.h.b16 %v481
    %v1916 = vunpack.c.l.b16 %v482
    %v1917 = vunpack.c.h.b16 %v482
    %v1918 = vunpack.c.l.b16 %v483
    %v1919 = vunpack.c.h.b16 %v483
    %v1920 = vunpack.c.l.b16 %v484
    %v1921 = vunpack.c.h.b16 %v484
    %v1922 = vunpack.c.l.b16 %v485
    %v1923 = vunpack.c.h.b16 %v485
    %v1924 = vunpack.c.l.b16 %v486
    %v1925 = vunpack.c.h.b16 %v486
    %v1926 = vunpack.c.l.b16 %v487
    %v1927 = vunpack.c.h.b16 %v487
    %v1928 = vunpack.c.l.b16 %v488
    %v1929 = vunpack.c.h.b16 %v488
    %v1930 = vunpack.c.l.b16 %v489
    %v1931 = vunpack.c.h.b16 %v489
    %v1932 = vunpack.c.l.b16 %v490
    %v1933 = vunpack.c.h.b16 %v490
    %v1934 = vunpack.c.l.b16 %v491
    %v1935 = vunpack.c.h.b16 %v491
    %v1936 = vunpack.c.l.b16 %v492
    %v1937 = vunpack.c.h.b16 %v492
    %v1938 = vunpack.c.l.b16 %v493
    %v1939 = vunpack.c.h.b16 %v493
    %v1940 = vunpack.c.l.b16 %v494
    %v1941 = vunpack.c.h.b16 %v494
    %v1942 = vunpack.c.l.b16 %v495
    %v1943 = vunpack.c.h.b16 %v495
    %v1944 = vunpack.c.l.b16 %v496
    %v1945 = vunpack.c.h.b16 %v496
    %v1946 = vunpack.c.l.b16 %v497
    %v1947 = vunpack.c.h.b16 %v497
    %v1948 = vunpack.c.l.b16 %v498
    %v1949 = vunpack.c.h.b16 %v498
    %v1950 = vunpack.c.l.b16 %v499
    %v1951 = vunpack.c.h.b16 %v499
    %v1952 = vunpack.c.l.b16 %v500
    %v1953 = vunpack.c.h.b16 %v500
    %v1954 = vunpack.c.l.b16 %v501
    %v1955 = vunpack.c.h.b16 %v501
    %v1956 = vunpack.c.l.b16 %v502
    %v1957 = vunpack.c.h.b16 %v502
    %v1958 = vunpack.c.l.b16 %v503
    %v1959 = vunpack.c.h.b16 %v503
    %v1960 = vunpack.c.l.b16 %v504
    %v1961 = vunpack.c.h.b16 %v504
    %v1962 = vunpack.c.l.b16 %v505
    %v1963 = vunpack.c.h.b16 %v505
    %v1964 = vunpack.c.l.b16 %v506
    %v1965 = vunpack.c.h.b16 %v506
    %v1966 = vunpack.c.l.b16 %v507
    %v1967 = vunpack.c.h.b16 %v507
    %v1968 = vunpack.c.l.b16 %v508
    %v1969 = vunpack.c.h.b16 %v508
    %v1970 = vunpack.c.l.b16 %v509
    %v1971 = vunpack.c.h.b16 %v509
    %v1972 = vunpack.c.l.b16 %v510
    %v1973 = vunpack.c.h.b16 %v510
    %v1974 = vunpack.c.l.b16 %v511
    %v1975 = vunpack.c.h.b16 %v511
    %v1976 = vunpack.c.l.b16 %v512
    %v1977 = vunpack.c.h.b16 %v512
    %v1978 = vunpack.c.l.b16 %v513
    %v1979 = vunpack.c.h.b16 %v513
    %v1980 = vunpack.c.l.b16 %v514
    %v1981 = vunpack.c.h.b16 %v514
    %v1982 = vunpack.c.l.b16 %v515
    %v1983 = vunpack.c.h.b16 %v515
    %v1984 = vunpack.c.l.b16 %v516
    %v1985 = vunpack.c.h.b16 %v516
    %v1986 = vunpack.c.l.b16 %v517
    %v1987 = vunpack.c.h.b16 %v517
    %v1988 = vunpack.c.l.b16 %v518
    %v1989 = vunpack.c.h.b16 %v518
    %v1990 = vunpack.c.l.b16 %v519
    %v1991 = vunpack.c.h.b16 %v519
    %v1992 = vunpack.c.l.b16 %v520
    %v1993 = vunpack.c.h.b16 %v520
    %v1994 = vunpack.c.l.b16 %v521
    %v1995 = vunpack.c.h.b16 %v521
    %v1996 = vunpack.c.l.b16 %v522
    %v1997 = vunpack.c.h.b16 %v522
    %v1998 = vunpack.c.l.b16 %v523
    %v1999 = vunpack.c.h.b16 %v523
    %v2000 = vunpack.c.l.b16 %v524
    %v2001 = vunpack.c.h.b16 %v524
    %v2002 = vunpack.c.l.b16 %v525
    %v2003 = vunpack.c.h.b16 %v525
    %v2004 = vunpack.c.l.b16 %v526
    %v2005 = vunpack.c.h.b16 %v526
    %v2006 = vunpack.c.l.b16 %v527
    %v2007 = vunpack.c.h.b16 %v527
    %v2008 = vunpack.c.l.b16 %v528
    %v2009 = vunpack.c.h.b16 %v528
    %v2010 = vunpack.c.l.b16 %v529
    %v2011 = vunpack.c.h.b16 %v529
    %v2012 = vunpack.c.l.b16 %v530
    %v2013 = vunpack.c.h.b16 %v530
    %v2014 = vunpack.c.l.b16 %v531
    %v2015 = vunpack.c.h.b16 %v531
    %v2016 = vunpack.c.l.b16 %v532
    %v2017 = vunpack.c.h.b16 %v532
    %v2018 = vunpack.c.l.b16 %v533
    %v2019 = vunpack.c.h.b16 %v533
    %v2020 = vunpack.c.l.b16 %v534
    %v2021 = vunpack.c.h.b16 %v534
    %v2022 = vunpack.c.l.b16 %v535
    %v2023 = vunpack.c.h.b16 %v535
    %v2024 = vunpack.c.l.b16 %v536
    %v2025 = vunpack.c.h.b16 %v536
    %v2026 = vunpack.c.l.b16 %v537
    %v2027 = vunpack.c.h.b16 %v537
    %v2028 = vunpack.c.l.b16 %v538
    %v2029 = vunpack.c.h.b16 %v538
    %v2030 = vunpack.c.l.b16 %v539
    %v2031 = vunpack.c.h.b16 %v539
    %v2032 = vunpack.c.l.b16 %v540
    %v2033 = vunpack.c.h.b16 %v540
    %v2034 = vunpack.c.l.b16 %v541
    %v2035 = vunpack.c.h.b16 %v541
    %v2036 = vunpack.c.l.b16 %v542
    %v2037 = vunpack.c.h.b16 %v542
    %v2038 = vunpack.c.l.b16 %v543
    %v2039 = vunpack.c.h.b16 %v543
    %v2040 = vunpack.c.l.b16 %v544
    %v2041 = vunpack.c.h.b16 %v544
    %v2042 = vunpack.c.l.b16 %v545
    %v2043 = vunpack.c.h.b16 %v545
    %v2044 = vunpack.c.l.b16 %v546
    %v2045 = vunpack.c.h.b16 %v546
    %v2046 = vunpack.c.l.b16 %v547
    %v2047 = vunpack.c.h.b16 %v547
    %v2048 = vunpack.c.l.b16 %v548
    %v2049 = vunpack.c.h.b16 %v548
    %v2050 = vunpack.c.l.b16 %v549
    %v2051 = vunpack.c.h.b16 %v549
    %v2052 = vunpack.c.l.b16 %v550
    %v2053 = vunpack.c.h.b16 %v550
    %v2054 = vunpack.c.l.b16 %v551
    %v2055 = vunpack.c.h.b16 %v551
    %v2056 = vunpack.c.l.b16 %v552
    %v2057 = vunpack.c.h.b16 %v552
    %v2058 = vunpack.c.l.b16 %v553
    %v2059 = vunpack.c.h.b16 %v553
    %v2060 = vunpack.c.l.b16 %v554
    %v2061 = vunpack.c.h.b16 %v554
    %v2062 = vunpack.c.l.b16 %v555
    %v2063 = vunpack.c.h.b16 %v555
    %v2064 = vunpack.c.l.b16 %v556
    %v2065 = vunpack.c.h.b16 %v556
    %v2066 = vunpack.c.l.b16 %v557
    %v2067 = vunpack.c.h.b16 %v557
    %v2068 = vunpack.c.l.b16 %v558
    %v2069 = vunpack.c.h.b16 %v558
    %v2070 = vunpack.c.l.b16 %v559
    %v2071 = vunpack.c.h.b16 %v559
    %v2072 = vunpack.c.l.b16 %v560
    %v2073 = vunpack.c.h.b16 %v560
    %v2074 = vunpack.c.l.b16 %v561
    %v2075 = vunpack.c.h.b16 %v561
    %v2076 = vunpack.c.l.b16 %v562
    %v2077 = vunpack.c.h.b16 %v562
    %v2078 = vunpack.c.l.b16 %v563
    %v2079 = vunpack.c.h.b16 %v563
    %v2080 = vunpack.c.l.b16 %v564
    %v2081 = vunpack.c.h.b16 %v564
    %v2082 = vunpack.c.l.b16 %v565
    %v2083 = vunpack.c.h.b16 %v565
    %v2084 = vunpack.c.l.b16 %v566
    %v2085 = vunpack.c.h.b16 %v566
    %v2086 = vunpack.c.l.b16 %v567
    %v2087 = vunpack.c.h.b16 %v567
    %v2088 = vunpack.c.l.b16 %v568
    %v2089 = vunpack.c.h.b16 %v568
    %v2090 = vunpack.c.l.b16 %v569
    %v2091 = vunpack.c.h.b16 %v569
    %v2092 = vunpack.c.l.b16 %v570
    %v2093 = vunpack.c.h.b16 %v570
    %v2094 = vunpack.c.l.b16 %v571
    %v2095 = vunpack.c.h.b16 %v571
    %v2096 = vunpack.c.l.b16 %v572
    %v2097 = vunpack.c.h.b16 %v572
    %v2098 = vunpack.c.l.b16 %v573
    %v2099 = vunpack.c.h.b16 %v573
    %v2100 = vunpack.c.l.b16 %v574
    %v2101 = vunpack.c.h.b16 %v574
    %v2102 = vunpack.c.l.b16 %v575
    %v2103 = vunpack.c.h.b16 %v575
    %v2104 = vunpack.c.l.b16 %v576
    %v2105 = vunpack.c.h.b16 %v576
    %v2106 = vunpack.c.l.b16 %v577
    %v2107 = vunpack.c.h.b16 %v577
    %v2108 = vunpack.c.l.b16 %v578
    %v2109 = vunpack.c.h.b16 %v578
    %v2110 = vunpack.c.l.b16 %v579
    %v2111 = vunpack.c.h.b16 %v579
    %v2112 = vunpack.c.l.b16 %v580
    %v2113 = vunpack.c.h.b16 %v580
    %v2114 = vunpack.c.l.b16 %v581
    %v2115 = vunpack.c.h.b16 %v581
    %v2116 = vunpack.c.l.b16 %v582
    %v2117 = vunpack.c.h.b16 %v582
    %v2118 = vunpack.c.l.b16 %v583
    %v2119 = vunpack.c.h.b16 %v583
    %v2120 = vunpack.c.l.b16 %v584
    %v2121 = vunpack.c.h.b16 %v584
    %v2122 = vunpack.c.l.b16 %v585
    %v2123 = vunpack.c.h.b16 %v585
    %v2124 = vunpack.c.l.b16 %v586
    %v2125 = vunpack.c.h.b16 %v586
    %v2126 = vunpack.c.l.b16 %v587
    %v2127 = vunpack.c.h.b16 %v587
    %v2128 = vunpack.c.l.b16 %v588
    %v2129 = vunpack.c.h.b16 %v588
    %v2130 = vunpack.c.l.b16 %v589
    %v2131 = vunpack.c.h.b16 %v589
    %v2132 = vunpack.c.l.b16 %v590
    %v2133 = vunpack.c.h.b16 %v590
    %v2134 = vunpack.c.l.b16 %v591
    %v2135 = vunpack.c.h.b16 %v591
    %v2136 = vunpack.c.l.b16 %v592
    %v2137 = vunpack.c.h.b16 %v592
    %v2138 = vunpack.c.l.b16 %v593
    %v2139 = vunpack.c.h.b16 %v593
    %v2140 = vpack.c.b16 %v1120, %v1116
    %v2141 = vpack.c.b16 %v1121, %v1117
    %v2142 = vpack.c.b16 %v1122, %v1118
    %v2143 = vpack.c.b16 %v1123, %v1119
    %v2144 = vpack.c.b16 %v1128, %v1124
    %v2145 = vpack.c.b16 %v1129, %v1125
    %v2146 = vpack.c.b16 %v1130, %v1126
    %v2147 = vpack.c.b16 %v1131, %v1127
    %v2148 = vpack.c.b16 %v1136, %v1132
    %v2149 = vpack.c.b16 %v1137, %v1133
    %v2150 = vpack.c.b16 %v1138, %v1134
    %v2151 = vpack.c.b16 %v1139, %v1135
    %v2152 = vpack.c.b16 %v1144, %v1140
    %v2153 = vpack.c.b16 %v1145, %v1141
    %v2154 = vpack.c.b16 %v1146, %v1142
    %v2155 = vpack.c.b16 %v1147, %v1143
    %v2156 = vpack.c.b16 %v1152, %v1148
    %v2157 = vpack.c.b16 %v1153, %v1149
    %v2158 = vpack.c.b16 %v1154, %v1150
    %v2159 = vpack.c.b16 %v1155, %v1151
    %v2160 = vpack.c.b16 %v1160, %v1156
    %v2161 = vpack.c.b16 %v1161, %v1157
    %v2162 = vpack.c.b16 %v1162, %v1158
    %v2163 = vpack.c.b16 %v1163, %v1159
    %v2164 = vpack.c.b16 %v1168, %v1164
    %v2165 = vpack.c.b16 %v1169, %v1165
    %v2166 = vpack.c.b16 %v1170, %v1166
    %v2167 = vpack.c.b16 %v1171, %v1167
    %v2168 = vpack.c.b16 %v1176, %v1172
    %v2169 = vpack.c.b16 %v1177, %v1173
    %v2170 = vpack.c.b16 %v1178, %v1174
    %v2171 = vpack.c.b16 %v1179, %v1175
    %v2172 = vpack.c.b16 %v1184, %v1180
    %v2173 = vpack.c.b16 %v1185, %v1181
    %v2174 = vpack.c.b16 %v1186, %v1182
    %v2175 = vpack.c.b16 %v1187, %v1183
    %v2176 = vpack.c.b16 %v1192, %v1188
    %v2177 = vpack.c.b16 %v1193, %v1189
    %v2178 = vpack.c.b16 %v1194, %v1190
    %v2179 = vpack.c.b16 %v1195, %v1191
    %v2180 = vpack.c.b16 %v1200, %v1196
    %v2181 = vpack.c.b16 %v1201, %v1197
    %v2182 = vpack.c.b16 %v1202, %v1198
    %v2183 = vpack.c.b16 %v1203, %v1199
    %v2184 = vpack.c.b16 %v1208, %v1204
    %v2185 = vpack.c.b16 %v1209, %v1205
    %v2186 = vpack.c.b16 %v1210, %v1206
    %v2187 = vpack.c.b16 %v1211, %v1207
    %v2188 = vpack.c.b16 %v1216, %v1212
    %v2189 = vpack.c.b16 %v1217, %v1213
    %v2190 = vpack.c.b16 %v1218, %v1214
    %v2191 = vpack.c.b16 %v1219, %v1215
    %v2192 = vpack.c.b16 %v1224, %v1220
    %v2193 = vpack.c.b16 %v1225, %v1221
    %v2194 = vpack.c.b16 %v1226, %v1222
    %v2195 = vpack.c.b16 %v1227, %v1223
    %v2196 = vpack.c.b16 %v1232, %v1228
    %v2197 = vpack.c.b16 %v1233, %v1229
    %v2198 = vpack.c.b16 %v1234, %v1230
    %v2199 = vpack.c.b16 %v1235, %v1231
    %v2200 = vpack.c.b16 %v1240, %v1236
    %v2201 = vpack.c.b16 %v1241, %v1237
    %v2202 = vpack.c.b16 %v1242, %v1238
    %v2203 = vpack.c.b16 %v1243, %v1239
    %v2204 = vpack.c.b16 %v1248, %v1244
    %v2205 = vpack.c.b16 %v1249, %v1245
    %v2206 = vpack.c.b16 %v1250, %v1246
    %v2207 = vpack.c.b16 %v1251, %v1247
    %v2208 = vpack.c.b16 %v1256, %v1252
    %v2209 = vpack.c.b16 %v1257, %v1253
    %v2210 = vpack.c.b16 %v1258, %v1254
    %v2211 = vpack.c.b16 %v1259, %v1255
    %v2212 = vpack.c.b16 %v1264, %v1260
    %v2213 = vpack.c.b16 %v1265, %v1261
    %v2214 = vpack.c.b16 %v1266, %v1262
    %v2215 = vpack.c.b16 %v1267, %v1263
    %v2216 = vpack.c.b16 %v1272, %v1268
    %v2217 = vpack.c.b16 %v1273, %v1269
    %v2218 = vpack.c.b16 %v1274, %v1270
    %v2219 = vpack.c.b16 %v1275, %v1271
    %v2220 = vpack.c.b16 %v1280, %v1276
    %v2221 = vpack.c.b16 %v1281, %v1277
    %v2222 = vpack.c.b16 %v1282, %v1278
    %v2223 = vpack.c.b16 %v1283, %v1279
    %v2224 = vpack.c.b16 %v1288, %v1284
    %v2225 = vpack.c.b16 %v1289, %v1285
    %v2226 = vpack.c.b16 %v1290, %v1286
    %v2227 = vpack.c.b16 %v1291, %v1287
    %v2228 = vpack.c.b16 %v1296, %v1292
    %v2229 = vpack.c.b16 %v1297, %v1293
    %v2230 = vpack.c.b16 %v1298, %v1294
    %v2231 = vpack.c.b16 %v1299, %v1295
    %v2232 = vpack.c.b16 %v1304, %v1300
    %v2233 = vpack.c.b16 %v1305, %v1301
    %v2234 = vpack.c.b16 %v1306, %v1302
    %v2235 = vpack.c.b16 %v1307, %v1303
    %v2236 = vpack.c.b16 %v1312, %v1308
    %v2237 = vpack.c.b16 %v1313, %v1309
    %v2238 = vpack.c.b16 %v1314, %v1310
    %v2239 = vpack.c.b16 %v1315, %v1311
    %v2240 = vpack.c.b16 %v1320, %v1316
    %v2241 = vpack.c.b16 %v1321, %v1317
    %v2242 = vpack.c.b16 %v1322, %v1318
    %v2243 = vpack.c.b16 %v1323, %v1319
    %v2244 = vpack.c.b16 %v1328, %v1324
    %v2245 = vpack.c.b16 %v1329, %v1325
    %v2246 = vpack.c.b16 %v1330, %v1326
    %v2247 = vpack.c.b16 %v1331, %v1327
    %v2248 = vpack.c.b16 %v1336, %v1332
    %v2249 = vpack.c.b16 %v1337, %v1333
    %v2250 = vpack.c.b16 %v1338, %v1334
    %v2251 = vpack.c.b16 %v1339, %v1335
    %v2252 = vpack.c.b16 %v1344, %v1340
    %v2253 = vpack.c.b16 %v1345, %v1341
    %v2254 = vpack.c.b16 %v1346, %v1342
    %v2255 = vpack.c.b16 %v1347, %v1343
    %v2256 = vpack.c.b16 %v1352, %v1348
    %v2257 = vpack.c.b16 %v1353, %v1349
    %v2258 = vpack.c.b16 %v1354, %v1350
    %v2259 = vpack.c.b16 %v1355, %v1351
    %v2260 = vpack.c.b16 %v1360, %v1356
    %v2261 = vpack.c.b16 %v1361, %v1357
    %v2262 = vpack.c.b16 %v1362, %v1358
    %v2263 = vpack.c.b16 %v1363, %v1359
    %v2264 = vpack.c.b16 %v1368, %v1364
    %v2265 = vpack.c.b16 %v1369, %v1365
    %v2266 = vpack.c.b16 %v1370, %v1366
    %v2267 = vpack.c.b16 %v1371, %v1367
    %v2268 = vpack.c.b16 %v1376, %v1372
    %v2269 = vpack.c.b16 %v1377, %v1373
    %v2270 = vpack.c.b16 %v1378, %v1374
    %v2271 = vpack.c.b16 %v1379, %v1375
    %v2272 = vpack.c.b16 %v1384, %v1380
    %v2273 = vpack.c.b16 %v1385, %v1381
    %v2274 = vpack.c.b16 %v1386, %v1382
    %v2275 = vpack.c.b16 %v1387, %v1383
    %v2276 = vpack.c.b16 %v1392, %v1388
    %v2277 = vpack.c.b16 %v1393, %v1389
    %v2278 = vpack.c.b16 %v1394, %v1390
    %v2279 = vpack.c.b16 %v1395, %v1391
    %v2280 = vpack.c.b16 %v1400, %v1396
    %v2281 = vpack.c.b16 %v1401, %v1397
    %v2282 = vpack.c.b16 %v1402, %v1398
    %v2283 = vpack.c.b16 %v1403, %v1399
    %v2284 = vpack.c.b16 %v1408, %v1404
    %v2285 = vpack.c.b16 %v1409, %v1405
    %v2286 = vpack.c.b16 %v1410, %v1406
    %v2287 = vpack.c.b16 %v1411, %v1407
    %v2288 = vpack.c.b16 %v1416, %v1412
    %v2289 = vpack.c.b16 %v1417, %v1413
    %v2290 = vpack.c.b16 %v1418, %v1414
    %v2291 = vpack.c.b16 %v1419, %v1415
    %v2292 = vpack.c.b16 %v1424, %v1420
    %v2293 = vpack.c.b16 %v1425, %v1421
    %v2294 = vpack.c.b16 %v1426, %v1422
    %v2295 = vpack.c.b16 %v1427, %v1423
    %v2296 = vpack.c.b16 %v1432, %v1428
    %v2297 = vpack.c.b16 %v1433, %v1429
    %v2298 = vpack.c.b16 %v1434, %v1430
    %v2299 = vpack.c.b16 %v1435, %v1431
    %v2300 = vpack.c.b16 %v1440, %v1436
    %v2301 = vpack.c.b16 %v1441, %v1437
    %v2302 = vpack.c.b16 %v1442, %v1438
    %v2303 = vpack.c.b16 %v1443, %v1439
    %v2304 = vpack.c.b16 %v1448, %v1444
    %v2305 = vpack.c.b16 %v1449, %v1445
    %v2306 = vpack.c.b16 %v1450, %v1446
    %v2307 = vpack.c.b16 %v1451, %v1447
    %v2308 = vpack.c.b16 %v1456, %v1452
    %v2309 = vpack.c.b16 %v1457, %v1453
    %v2310 = vpack.c.b16 %v1458, %v1454
    %v2311 = vpack.c.b16 %v1459, %v1455
    %v2312 = vpack.c.b16 %v1464, %v1460
    %v2313 = vpack.c.b16 %v1465, %v1461
    %v2314 = vpack.c.b16 %v1466, %v1462
    %v2315 = vpack.c.b16 %v1467, %v1463
    %v2316 = vpack.c.b16 %v1472, %v1468
    %v2317 = vpack.c.b16 %v1473, %v1469
    %v2318 = vpack.c.b16 %v1474, %v1470
    %v2319 = vpack.c.b16 %v1475, %v1471
    %v2320 = vpack.c.b16 %v1480, %v1476
    %v2321 = vpack.c.b16 %v1481, %v1477
    %v2322 = vpack.c.b16 %v1482, %v1478
    %v2323 = vpack.c.b16 %v1483, %v1479
    %v2324 = vpack.c.b16 %v1488, %v1484
    %v2325 = vpack.c.b16 %v1489, %v1485
    %v2326 = vpack.c.b16 %v1490, %v1486
    %v2327 = vpack.c.b16 %v1491, %v1487
    %v2328 = vpack.c.b16 %v1496, %v1492
    %v2329 = vpack.c.b16 %v1497, %v1493
    %v2330 = vpack.c.b16 %v1498, %v1494
    %v2331 = vpack.c.b16 %v1499, %v1495
    %v2332 = vpack.c.b16 %v1504, %v1500
    %v2333 = vpack.c.b16 %v1505, %v1501
    %v2334 = vpack.c.b16 %v1506, %v1502
    %v2335 = vpack.c.b16 %v1507, %v1503
    %v2336 = vpack.c.b16 %v1512, %v1508
    %v2337 = vpack.c.b16 %v1513, %v1509
    %v2338 = vpack.c.b16 %v1514, %v1510
    %v2339 = vpack.c.b16 %v1515, %v1511
    %v2340 = vpack.c.b16 %v1520, %v1516
    %v2341 = vpack.c.b16 %v1521, %v1517
    %v2342 = vpack.c.b16 %v1522, %v1518
    %v2343 = vpack.c.b16 %v1523, %v1519
    %v2344 = vpack.c.b16 %v1528, %v1524
    %v2345 = vpack.c.b16 %v1529, %v1525
    %v2346 = vpack.c.b16 %v1530, %v1526
    %v2347 = vpack.c.b16 %v1531, %v1527
    %v2348 = vpack.c.b16 %v1536, %v1532
    %v2349 = vpack.c.b16 %v1537, %v1533
    %v2350 = vpack.c.b16 %v1538, %v1534
    %v2351 = vpack.c.b16 %v1539, %v1535
    %v2352 = vpack.c.b16 %v1544, %v1540
    %v2353 = vpack.c.b16 %v1545, %v1541
    %v2354 = vpack.c.b16 %v1546, %v1542
    %v2355 = vpack.c.b16 %v1547, %v1543
    %v2356 = vpack.c.b16 %v1552, %v1548
    %v2357 = vpack.c.b16 %v1553, %v1549
    %v2358 = vpack.c.b16 %v1554, %v1550
    %v2359 = vpack.c.b16 %v1555, %v1551
    %v2360 = vpack.c.b16 %v1560, %v1556
    %v2361 = vpack.c.b16 %v1561, %v1557
    %v2362 = vpack.c.b16 %v1562, %v1558
    %v2363 = vpack.c.b16 %v1563, %v1559
    %v2364 = vpack.c.b16 %v1568, %v1564
    %v2365 = vpack.c.b16 %v1569, %v1565
    %v2366 = vpack.c.b16 %v1570, %v1566
    %v2367 = vpack.c.b16 %v1571, %v1567
    %v2368 = vpack.c.b16 %v1576, %v1572
    %v2369 = vpack.c.b16 %v1577, %v1573
    %v2370 = vpack.c.b16 %v1578, %v1574
    %v2371 = vpack.c.b16 %v1579, %v1575
    %v2372 = vpack.c.b16 %v1584, %v1580
    %v2373 = vpack.c.b16 %v1585, %v1581
    %v2374 = vpack.c.b16 %v1586, %v1582
    %v2375 = vpack.c.b16 %v1587, %v1583
    %v2376 = vpack.c.b16 %v1592, %v1588
    %v2377 = vpack.c.b16 %v1593, %v1589
    %v2378 = vpack.c.b16 %v1594, %v1590
    %v2379 = vpack.c.b16 %v1595, %v1591
    %v2380 = vpack.c.b16 %v1600, %v1596
    %v2381 = vpack.c.b16 %v1601, %v1597
    %v2382 = vpack.c.b16 %v1602, %v1598
    %v2383 = vpack.c.b16 %v1603, %v1599
    %v2384 = vpack.c.b16 %v1608, %v1604
    %v2385 = vpack.c.b16 %v1609, %v1605
    %v2386 = vpack.c.b16 %v1610, %v1606
    %v2387 = vpack.c.b16 %v1611, %v1607
    %v2388 = vpack.c.b16 %v1616, %v1612
    %v2389 = vpack.c.b16 %v1617, %v1613
    %v2390 = vpack.c.b16 %v1618, %v1614
    %v2391 = vpack.c.b16 %v1619, %v1615
    %v2392 = vpack.c.b16 %v1624, %v1620
    %v2393 = vpack.c.b16 %v1625, %v1621
    %v2394 = vpack.c.b16 %v1626, %v1622
    %v2395 = vpack.c.b16 %v1627, %v1623
    %v2396 = vpack.c.b16 %v1632, %v1628
    %v2397 = vpack.c.b16 %v1633, %v1629
    %v2398 = vpack.c.b16 %v1634, %v1630
    %v2399 = vpack.c.b16 %v1635, %v1631
    %v2400 = vpack.c.b16 %v1640, %v1636
    %v2401 = vpack.c.b16 %v1641, %v1637
    %v2402 = vpack.c.b16 %v1642, %v1638
    %v2403 = vpack.c.b16 %v1643, %v1639
    %v2404 = vpack.c.b16 %v1648, %v1644
    %v2405 = vpack.c.b16 %v1649, %v1645
    %v2406 = vpack.c.b16 %v1650, %v1646
    %v2407 = vpack.c.b16 %v1651, %v1647
    %v2408 = vpack.c.b16 %v1656, %v1652
    %v2409 = vpack.c.b16 %v1657, %v1653
    %v2410 = vpack.c.b16 %v1658, %v1654
    %v2411 = vpack.c.b16 %v1659, %v1655
    %v2412 = vpack.c.b16 %v1664, %v1660
    %v2413 = vpack.c.b16 %v1665, %v1661
    %v2414 = vpack.c.b16 %v1666, %v1662
    %v2415 = vpack.c.b16 %v1667, %v1663
    %v2416 = vpack.c.b16 %v1672, %v1668
    %v2417 = vpack.c.b16 %v1673, %v1669
    %v2418 = vpack.c.b16 %v1674, %v1670
    %v2419 = vpack.c.b16 %v1675, %v1671
    %v2420 = vpack.c.b16 %v1680, %v1676
    %v2421 = vpack.c.b16 %v1681, %v1677
    %v2422 = vpack.c.b16 %v1682, %v1678
    %v2423 = vpack.c.b16 %v1683, %v1679
    %v2424 = vpack.c.b16 %v1688, %v1684
    %v2425 = vpack.c.b16 %v1689, %v1685
    %v2426 = vpack.c.b16 %v1690, %v1686
    %v2427 = vpack.c.b16 %v1691, %v1687
    %v2428 = vpack.c.b16 %v1696, %v1692
    %v2429 = vpack.c.b16 %v1697, %v1693
    %v2430 = vpack.c.b16 %v1698, %v1694
    %v2431 = vpack.c.b16 %v1699, %v1695
    %v2432 = vpack.c.b16 %v1704, %v1700
    %v2433 = vpack.c.b16 %v1705, %v1701
    %v2434 = vpack.c.b16 %v1706, %v1702
    %v2435 = vpack.c.b16 %v1707, %v1703
    %v2436 = vpack.c.b16 %v1712, %v1708
    %v2437 = vpack.c.b16 %v1713, %v1709
    %v2438 = vpack.c.b16 %v1714, %v1710
    %v2439 = vpack.c.b16 %v1715, %v1711
    %v2440 = vpack.c.b16 %v1720, %v1716
    %v2441 = vpack.c.b16 %v1721, %v1717
    %v2442 = vpack.c.b16 %v1722, %v1718
    %v2443 = vpack.c.b16 %v1723, %v1719
    %v2444 = vpack.c.b16 %v1728, %v1724
    %v2445 = vpack.c.b16 %v1729, %v1725
    %v2446 = vpack.c.b16 %v1730, %v1726
    %v2447 = vpack.c.b16 %v1731, %v1727
    %v2448 = vpack.c.b16 %v1736, %v1732
    %v2449 = vpack.c.b16 %v1737, %v1733
    %v2450 = vpack.c.b16 %v1738, %v1734
    %v2451 = vpack.c.b16 %v1739, %v1735
    %v2452 = vpack.c.b16 %v1744, %v1740
    %v2453 = vpack.c.b16 %v1745, %v1741
    %v2454 = vpack.c.b16 %v1746, %v1742
    %v2455 = vpack.c.b16 %v1747, %v1743
    %v2456 = vpack.c.b16 %v1752, %v1748
    %v2457 = vpack.c.b16 %v1753, %v1749
    %v2458 = vpack.c.b16 %v1754, %v1750
    %v2459 = vpack.c.b16 %v1755, %v1751
    %v2460 = vpack.c.b16 %v1760, %v1756
    %v2461 = vpack.c.b16 %v1761, %v1757
    %v2462 = vpack.c.b16 %v1762, %v1758
    %v2463 = vpack.c.b16 %v1763, %v1759
    %v2464 = vpack.c.b16 %v1768, %v1764
    %v2465 = vpack.c.b16 %v1769, %v1765
    %v2466 = vpack.c.b16 %v1770, %v1766
    %v2467 = vpack.c.b16 %v1771, %v1767
    %v2468 = vpack.c.b16 %v1776, %v1772
    %v2469 = vpack.c.b16 %v1777, %v1773
    %v2470 = vpack.c.b16 %v1778, %v1774
    %v2471 = vpack.c.b16 %v1779, %v1775
    %v2472 = vpack.c.b16 %v1784, %v1780
    %v2473 = vpack.c.b16 %v1785, %v1781
    %v2474 = vpack.c.b16 %v1786, %v1782
    %v2475 = vpack.c.b16 %v1787, %v1783
    %v2476 = vpack.c.b16 %v1792, %v1788
    %v2477 = vpack.c.b16 %v1793, %v1789
    %v2478 = vpack.c.b16 %v1794, %v1790
    %v2479 = vpack.c.b16 %v1795, %v1791
    %v2480 = vpack.c.b16 %v1800, %v1796
    %v2481 = vpack.c.b16 %v1801, %v1797
    %v2482 = vpack.c.b16 %v1802, %v1798
    %v2483 = vpack.c.b16 %v1803, %v1799
    %v2484 = vpack.c.b16 %v1808, %v1804
    %v2485 = vpack.c.b16 %v1809, %v1805
    %v2486 = vpack.c.b16 %v1810, %v1806
    %v2487 = vpack.c.b16 %v1811, %v1807
    %v2488 = vpack.c.b16 %v1816, %v1812
    %v2489 = vpack.c.b16 %v1817, %v1813
    %v2490 = vpack.c.b16 %v1818, %v1814
    %v2491 = vpack.c.b16 %v1819, %v1815
    %v2492 = vpack.c.b16 %v1824, %v1820
    %v2493 = vpack.c.b16 %v1825, %v1821
    %v2494 = vpack.c.b16 %v1826, %v1822
    %v2495 = vpack.c.b16 %v1827, %v1823
    %v2496 = vpack.c.b16 %v1832, %v1828
    %v2497 = vpack.c.b16 %v1833, %v1829
    %v2498 = vpack.c.b16 %v1834, %v1830
    %v2499 = vpack.c.b16 %v1835, %v1831
    %v2500 = vpack.c.b16 %v1840, %v1836
    %v2501 = vpack.c.b16 %v1841, %v1837
    %v2502 = vpack.c.b16 %v1842, %v1838
    %v2503 = vpack.c.b16 %v1843, %v1839
    %v2504 = vpack.c.b16 %v1848, %v1844
    %v2505 = vpack.c.b16 %v1849, %v1845
    %v2506 = vpack.c.b16 %v1850, %v1846
    %v2507 = vpack.c.b16 %v1851, %v1847
    %v2508 = vpack.c.b16 %v1856, %v1852
    %v2509 = vpack.c.b16 %v1857, %v1853
    %v2510 = vpack.c.b16 %v1858, %v1854
    %v2511 = vpack.c.b16 %v1859, %v1855
    %v2512 = vpack.c.b16 %v1864, %v1860
    %v2513 = vpack.c.b16 %v1865, %v1861
    %v2514 = vpack.c.b16 %v1866, %v1862
    %v2515 = vpack.c.b16 %v1867, %v1863
    %v2516 = vpack.c.b16 %v1872, %v1868
    %v2517 = vpack.c.b16 %v1873, %v1869
    %v2518 = vpack.c.b16 %v1874, %v1870
    %v2519 = vpack.c.b16 %v1875, %v1871
    %v2520 = vpack.c.b16 %v1880, %v1876
    %v2521 = vpack.c.b16 %v1881, %v1877
    %v2522 = vpack.c.b16 %v1882, %v1878
    %v2523 = vpack.c.b16 %v1883, %v1879
    %v2524 = vpack.c.b16 %v1888, %v1884
    %v2525 = vpack.c.b16 %v1889, %v1885
    %v2526 = vpack.c.b16 %v1890, %v1886
    %v2527 = vpack.c.b16 %v1891, %v1887
    %v2528 = vpack.c.b16 %v1896, %v1892
    %v2529 = vpack.c.b16 %v1897, %v1893
    %v2530 = vpack.c.b16 %v1898, %v1894
    %v2531 = vpack.c.b16 %v1899, %v1895
    %v2532 = vpack.c.b16 %v1904, %v1900
    %v2533 = vpack.c.b16 %v1905, %v1901
    %v2534 = vpack.c.b16 %v1906, %v1902
    %v2535 = vpack.c.b16 %v1907, %v1903
    %v2536 = vpack.c.b16 %v1912, %v1908
    %v2537 = vpack.c.b16 %v1913, %v1909
    %v2538 = vpack.c.b16 %v1914, %v1910
    %v2539 = vpack.c.b16 %v1915, %v1911
    %v2540 = vpack.c.b16 %v1920, %v1916
    %v2541 = vpack.c.b16 %v1921, %v1917
    %v2542 = vpack.c.b16 %v1922, %v1918
    %v2543 = vpack.c.b16 %v1923, %v1919
    %v2544 = vpack.c.b16 %v1928, %v1924
    %v2545 = vpack.c.b16 %v1929, %v1925
    %v2546 = vpack.c.b16 %v1930, %v1926
    %v2547 = vpack.c.b16 %v1931, %v1927
    %v2548 = vpack.c.b16 %v1936, %v1932
    %v2549 = vpack.c.b16 %v1937, %v1933
    %v2550 = vpack.c.b16 %v1938, %v1934
    %v2551 = vpack.c.b16 %v1939, %v1935
    %v2552 = vpack.c.b16 %v1944, %v1940
    %v2553 = vpack.c.b16 %v1945, %v1941
    %v2554 = vpack.c.b16 %v1946, %v1942
    %v2555 = vpack.c.b16 %v1947, %v1943
    %v2556 = vpack.c.b16 %v1952, %v1948
    %v2557 = vpack.c.b16 %v1953, %v1949
    %v2558 = vpack.c.b16 %v1954, %v1950
    %v2559 = vpack.c.b16 %v1955, %v1951
    %v2560 = vpack.c.b16 %v1960, %v1956
    %v2561 = vpack.c.b16 %v1961, %v1957
    %v2562 = vpack.c.b16 %v1962, %v1958
    %v2563 = vpack.c.b16 %v1963, %v1959
    %v2564 = vpack.c.b16 %v1968, %v1964
    %v2565 = vpack.c.b16 %v1969, %v1965
    %v2566 = vpack.c.b16 %v1970, %v1966
    %v2567 = vpack.c.b16 %v1971, %v1967
    %v2568 = vpack.c.b16 %v1976, %v1972
    %v2569 = vpack.c.b16 %v1977, %v1973
    %v2570 = vpack.c.b16 %v1978, %v1974
    %v2571 = vpack.c.b16 %v1979, %v1975
    %v2572 = vpack.c.b16 %v1984, %v1980
    %v2573 = vpack.c.b16 %v1985, %v1981
    %v2574 = vpack.c.b16 %v1986, %v1982
    %v2575 = vpack.c.b16 %v1987, %v1983
    %v2576 = vpack.c.b16 %v1992, %v1988
    %v2577 = vpack.c.b16 %v1993, %v1989
    %v2578 = vpack.c.b16 %v1994, %v1990
    %v2579 = vpack.c.b16 %v1995, %v1991
    %v2580 = vpack.c.b16 %v2000, %v1996
    %v2581 = vpack.c.b16 %v2001, %v1997
    %v2582 = vpack.c.b16 %v2002, %v1998
    %v2583 = vpack.c.b16 %v2003, %v1999
    %v2584 = vpack.c.b16 %v2008, %v2004
    %v2585 = vpack.c.b16 %v2009, %v2005
    %v2586 = vpack.c.b16 %v2010, %v2006
    %v2587 = vpack.c.b16 %v2011, %v2007
    %v2588 = vpack.c.b16 %v2016, %v2012
    %v2589 = vpack.c.b16 %v2017, %v2013
    %v2590 = vpack.c.b16 %v2018, %v2014
    %v2591 = vpack.c.b16 %v2019, %v2015
    %v2592 = vpack.c.b16 %v2024, %v2020
    %v2593 = vpack.c.b16 %v2025, %v2021
    %v2594 = vpack.c.b16 %v2026, %v2022
    %v2595 = vpack.c.b16 %v2027, %v2023
    %v2596 = vpack.c.b16 %v2032, %v2028
    %v2597 = vpack.c.b16 %v2033, %v2029
    %v2598 = vpack.c.b16 %v2034, %v2030
    %v2599 = vpack.c.b16 %v2035, %v2031
    %v2600 = vpack.c.b16 %v2040, %v2036
    %v2601 = vpack.c.b16 %v2041, %v2037
    %v2602 = vpack.c.b16 %v2042, %v2038
    %v2603 = vpack.c.b16 %v2043, %v2039
    %v2604 = vpack.c.b16 %v2048, %v2044
    %v2605 = vpack.c.b16 %v2049, %v2045
    %v2606 = vpack.c.b16 %v2050, %v2046
    %v2607 = vpack.c.b16 %v2051, %v2047
    %v2608 = vpack.c.b16 %v2056, %v2052
    %v2609 = vpack.c.b16 %v2057, %v2053
    %v2610 = vpack.c.b16 %v2058, %v2054
    %v2611 = vpack.c.b16 %v2059, %v2055
    %v2612 = vpack.c.b16 %v2064, %v2060
    %v2613 = vpack.c.b16 %v2065, %v2061
    %v2614 = vpack.c.b16 %v2066, %v2062
    %v2615 = vpack.c.b16 %v2067, %v2063
    %v2616 = vpack.c.b16 %v2072, %v2068
    %v2617 = vpack.c.b16 %v2073, %v2069
    %v2618 = vpack.c.b16 %v2074, %v2070
    %v2619 = vpack.c.b16 %v2075, %v2071
    %v2620 = vpack.c.b16 %v2080, %v2076
    %v2621 = vpack.c.b16 %v2081, %v2077
    %v2622 = vpack.c.b16 %v2082, %v2078
    %v2623 = vpack.c.b16 %v2083, %v2079
    %v2624 = vpack.c.b16 %v2088, %v2084
    %v2625 = vpack.c.b16 %v2089, %v2085
    %v2626 = vpack.c.b16 %v2090, %v2086
    %v2627 = vpack.c.b16 %v2091, %v2087
    %v2628 = vpack.c.b16 %v2096, %v2092
    %v2629 = vpack.c.b16 %v2097, %v2093
    %v2630 = vpack.c.b16 %v2098, %v2094
    %v2631 = vpack.c.b16 %v2099, %v2095
    %v2632 = vpack.c.b16 %v2104, %v2100
    %v2633 = vpack.c.b16 %v2105, %v2101
    %v2634 = vpack.c.b16 %v2106, %v2102
    %v2635 = vpack.c.b16 %v2107, %v2103
    %v2636 = vpack.c.b16 %v2112, %v2108
    %v2637 = vpack.c.b16 %v2113, %v2109
    %v2638 = vpack.c.b16 %v2114, %v2110
    %v2639 = vpack.c.b16 %v2115, %v2111
    %v2640 = vpack.c.b16 %v2120, %v2116
    %v2641 = vpack.c.b16 %v2121, %v2117
    %v2642 = vpack.c.b16 %v2122, %v2118
    %v2643 = vpack.c.b16 %v2123, %v2119
    %v2644 = vpack.c.b16 %v2128, %v2124
    %v2645 = vpack.c.b16 %v2129, %v2125
    %v2646 = vpack.c.b16 %v2130, %v2126
    %v2647 = vpack.c.b16 %v2131, %v2127
    %v2648 = vpack.c.b16 %v2136, %v2132
    %v2649 = vpack.c.b16 %v2137, %v2133
    %v2650 = vpack.c.b16 %v2138, %v2134
    %v2651 = vpack.c.b16 %v2139, %v2135
    %3164 = vmatpush.bf16.msra.mxu0 %v2168
    %3165 = vmatpush.bf16.msra.mxu0 %v2164
    %3166 = vmatpush.bf16.msra.mxu0 %v2160
    %3167 = vmatpush.bf16.msra.mxu0 %v2156
    %3168 = vmatpush.bf16.msra.mxu0 %v2152
    %3169 = vmatpush.bf16.msra.mxu0 %v2148
    %3170 = vmatpush.bf16.msra.mxu0 %v2144
    %3171 = vmatpush.bf16.msra.mxu0 %v2140
    %3172 = vmatmul.bf16.gmra.mxu0 %v66
    %v3173 = vpop.f32.mrf.mxu0
    %v3174 = vadd.f32 %v596, %v3173
    %v3175 = vpop.f32.mrf.mxu0
    %3176 = vdwg.mxu0
    %3177 = vmatpush.bf16.msra.mxu0 %v2200
    %3178 = vmatpush.bf16.msra.mxu0 %v2196
    %3179 = vmatpush.bf16.msra.mxu0 %v2192
    %3180 = vmatpush.bf16.msra.mxu0 %v2188
    %3181 = vmatpush.bf16.msra.mxu0 %v2184
    %3182 = vmatpush.bf16.msra.mxu0 %v2180
    %3183 = vmatpush.bf16.msra.mxu0 %v2176
    %3184 = vmatpush.bf16.msra.mxu0 %v2172
    %3185 = vmatmul.bf16.gmra.mxu0 %v67
    %v3186 = vpop.f32.mrf.mxu0
    %v3187 = vadd.f32 %v3174, %v3186
    %v3188 = vpop.f32.mrf.mxu0
    %3189 = vdwg.mxu0
    %3190 = vmatpush.bf16.msra.mxu0 %v2232
    %3191 = vmatpush.bf16.msra.mxu0 %v2228
    %3192 = vmatpush.bf16.msra.mxu0 %v2224
    %3193 = vmatpush.bf16.msra.mxu0 %v2220
    %3194 = vmatpush.bf16.msra.mxu0 %v2216
    %3195 = vmatpush.bf16.msra.mxu0 %v2212
    %3196 = vmatpush.bf16.msra.mxu0 %v2208
    %3197 = vmatpush.bf16.msra.mxu0 %v2204
    %3198 = vmatmul.bf16.gmra.mxu0 %v68
    %v3199 = vpop.f32.mrf.mxu0
    %v3200 = vadd.f32 %v3187, %v3199
    %v3201 = vpop.f32.mrf.mxu0
    %3202 = vdwg.mxu0
    %3203 = vmatpush.bf16.msra.mxu0 %v2264
    %3204 = vmatpush.bf16.msra.mxu0 %v2260
    %3205 = vmatpush.bf16.msra.mxu0 %v2256
    %3206 = vmatpush.bf16.msra.mxu0 %v2252
    %3207 = vmatpush.bf16.msra.mxu0 %v2248
    %3208 = vmatpush.bf16.msra.mxu0 %v2244
    %3209 = vmatpush.bf16.msra.mxu0 %v2240
    %3210 = vmatpush.bf16.msra.mxu0 %v2236
    %3211 = vmatmul.bf16.gmra.mxu0 %v69
    %v3212 = vpop.f32.mrf.mxu0
    %v3213 = vadd.f32 %v3200, %v3212
    %v3214 = vpop.f32.mrf.mxu0
    %3215 = vdwg.mxu0
    %3216 = vmatpush.bf16.msra.mxu0 %v2296
    %3217 = vmatpush.bf16.msra.mxu0 %v2292
    %3218 = vmatpush.bf16.msra.mxu0 %v2288
    %3219 = vmatpush.bf16.msra.mxu0 %v2284
    %3220 = vmatpush.bf16.msra.mxu0 %v2280
    %3221 = vmatpush.bf16.msra.mxu0 %v2276
    %3222 = vmatpush.bf16.msra.mxu0 %v2272
    %3223 = vmatpush.bf16.msra.mxu0 %v2268
    %3224 = vmatmul.bf16.gmra.mxu0 %v70
    %v3225 = vpop.f32.mrf.mxu0
    %v3226 = vadd.f32 %v3213, %v3225
    %v3227 = vpop.f32.mrf.mxu0
    %3228 = vdwg.mxu0
    %3229 = vmatpush.bf16.msra.mxu0 %v2328
    %3230 = vmatpush.bf16.msra.mxu0 %v2324
    %3231 = vmatpush.bf16.msra.mxu0 %v2320
    %3232 = vmatpush.bf16.msra.mxu0 %v2316
    %3233 = vmatpush.bf16.msra.mxu0 %v2312
    %3234 = vmatpush.bf16.msra.mxu0 %v2308
    %3235 = vmatpush.bf16.msra.mxu0 %v2304
    %3236 = vmatpush.bf16.msra.mxu0 %v2300
    %3237 = vmatmul.bf16.gmra.mxu0 %v71
    %v3238 = vpop.f32.mrf.mxu0
    %v3239 = vadd.f32 %v3226, %v3238
    %v3240 = vpop.f32.mrf.mxu0
    %3241 = vdwg.mxu0
    %3242 = vmatpush.bf16.msra.mxu0 %v2360
    %3243 = vmatpush.bf16.msra.mxu0 %v2356
    %3244 = vmatpush.bf16.msra.mxu0 %v2352
    %3245 = vmatpush.bf16.msra.mxu0 %v2348
    %3246 = vmatpush.bf16.msra.mxu0 %v2344
    %3247 = vmatpush.bf16.msra.mxu0 %v2340
    %3248 = vmatpush.bf16.msra.mxu0 %v2336
    %3249 = vmatpush.bf16.msra.mxu0 %v2332
    %3250 = vmatmul.bf16.gmra.mxu0 %v72
    %v3251 = vpop.f32.mrf.mxu0
    %v3252 = vadd.f32 %v3239, %v3251
    %v3253 = vpop.f32.mrf.mxu0
    %3254 = vdwg.mxu0
    %3255 = vmatpush.bf16.msra.mxu0 %v2392
    %3256 = vmatpush.bf16.msra.mxu0 %v2388
    %3257 = vmatpush.bf16.msra.mxu0 %v2384
    %3258 = vmatpush.bf16.msra.mxu0 %v2380
    %3259 = vmatpush.bf16.msra.mxu0 %v2376
    %3260 = vmatpush.bf16.msra.mxu0 %v2372
    %3261 = vmatpush.bf16.msra.mxu0 %v2368
    %3262 = vmatpush.bf16.msra.mxu0 %v2364
    %3263 = vmatmul.bf16.gmra.mxu0 %v73
    %v3264 = vpop.f32.mrf.mxu0
    %v3265 = vadd.f32 %v3252, %v3264
    %v3266 = vpop.f32.mrf.mxu0
    %3267 = vdwg.mxu0
    %3268 = vmatpush.bf16.msra.mxu0 %v2424
    %3269 = vmatpush.bf16.msra.mxu0 %v2420
    %3270 = vmatpush.bf16.msra.mxu0 %v2416
    %3271 = vmatpush.bf16.msra.mxu0 %v2412
    %3272 = vmatpush.bf16.msra.mxu0 %v2408
    %3273 = vmatpush.bf16.msra.mxu0 %v2404
    %3274 = vmatpush.bf16.msra.mxu0 %v2400
    %3275 = vmatpush.bf16.msra.mxu0 %v2396
    %3276 = vmatmul.bf16.gmra.mxu0 %v74
    %v3277 = vpop.f32.mrf.mxu0
    %v3278 = vadd.f32 %v3265, %v3277
    %v3279 = vpop.f32.mrf.mxu0
    %3280 = vdwg.mxu0
    %3281 = vmatpush.bf16.msra.mxu0 %v2456
    %3282 = vmatpush.bf16.msra.mxu0 %v2452
    %3283 = vmatpush.bf16.msra.mxu0 %v2448
    %3284 = vmatpush.bf16.msra.mxu0 %v2444
    %3285 = vmatpush.bf16.msra.mxu0 %v2440
    %3286 = vmatpush.bf16.msra.mxu0 %v2436
    %3287 = vmatpush.bf16.msra.mxu0 %v2432
    %3288 = vmatpush.bf16.msra.mxu0 %v2428
    %3289 = vmatmul.bf16.gmra.mxu0 %v75
    %v3290 = vpop.f32.mrf.mxu0
    %v3291 = vadd.f32 %v3278, %v3290
    %v3292 = vpop.f32.mrf.mxu0
    %3293 = vdwg.mxu0
    %3294 = vmatpush.bf16.msra.mxu0 %v2488
    %3295 = vmatpush.bf16.msra.mxu0 %v2484
    %3296 = vmatpush.bf16.msra.mxu0 %v2480
    %3297 = vmatpush.bf16.msra.mxu0 %v2476
    %3298 = vmatpush.bf16.msra.mxu0 %v2472
    %3299 = vmatpush.bf16.msra.mxu0 %v2468
    %3300 = vmatpush.bf16.msra.mxu0 %v2464
    %3301 = vmatpush.bf16.msra.mxu0 %v2460
    %3302 = vmatmul.bf16.gmra.mxu0 %v76
    %v3303 = vpop.f32.mrf.mxu0
    %v3304 = vadd.f32 %v3291, %v3303
    %v3305 = vpop.f32.mrf.mxu0
    %3306 = vdwg.mxu0
    %3307 = vmatpush.bf16.msra.mxu0 %v2520
    %3308 = vmatpush.bf16.msra.mxu0 %v2516
    %3309 = vmatpush.bf16.msra.mxu0 %v2512
    %3310 = vmatpush.bf16.msra.mxu0 %v2508
    %3311 = vmatpush.bf16.msra.mxu0 %v2504
    %3312 = vmatpush.bf16.msra.mxu0 %v2500
    %3313 = vmatpush.bf16.msra.mxu0 %v2496
    %3314 = vmatpush.bf16.msra.mxu0 %v2492
    %3315 = vmatmul.bf16.gmra.mxu0 %v77
    %v3316 = vpop.f32.mrf.mxu0
    %v3317 = vadd.f32 %v3304, %v3316
    %v3318 = vpop.f32.mrf.mxu0
    %3319 = vdwg.mxu0
    %3320 = vmatpush.bf16.msra.mxu0 %v2552
    %3321 = vmatpush.bf16.msra.mxu0 %v2548
    %3322 = vmatpush.bf16.msra.mxu0 %v2544
    %3323 = vmatpush.bf16.msra.mxu0 %v2540
    %3324 = vmatpush.bf16.msra.mxu0 %v2536
    %3325 = vmatpush.bf16.msra.mxu0 %v2532
    %3326 = vmatpush.bf16.msra.mxu0 %v2528
    %3327 = vmatpush.bf16.msra.mxu0 %v2524
    %3328 = vmatmul.bf16.gmra.mxu0 %v78
    %v3329 = vpop.f32.mrf.mxu0
    %v3330 = vadd.f32 %v3317, %v3329
    %v3331 = vpop.f32.mrf.mxu0
    %3332 = vdwg.mxu0
    %3333 = vmatpush.bf16.msra.mxu0 %v2584
    %3334 = vmatpush.bf16.msra.mxu0 %v2580
    %3335 = vmatpush.bf16.msra.mxu0 %v2576
    %3336 = vmatpush.bf16.msra.mxu0 %v2572
    %3337 = vmatpush.bf16.msra.mxu0 %v2568
    %3338 = vmatpush.bf16.msra.mxu0 %v2564
    %3339 = vmatpush.bf16.msra.mxu0 %v2560
    %3340 = vmatpush.bf16.msra.mxu0 %v2556
    %3341 = vmatmul.bf16.gmra.mxu0 %v79
    %v3342 = vpop.f32.mrf.mxu0
    %v3343 = vadd.f32 %v3330, %v3342
    %v3344 = vpop.f32.mrf.mxu0
    %3345 = vdwg.mxu0
    %3346 = vmatpush.bf16.msra.mxu0 %v2616
    %3347 = vmatpush.bf16.msra.mxu0 %v2612
    %3348 = vmatpush.bf16.msra.mxu0 %v2608
    %3349 = vmatpush.bf16.msra.mxu0 %v2604
    %3350 = vmatpush.bf16.msra.mxu0 %v2600
    %3351 = vmatpush.bf16.msra.mxu0 %v2596
    %3352 = vmatpush.bf16.msra.mxu0 %v2592
    %3353 = vmatpush.bf16.msra.mxu0 %v2588
    %3354 = vmatmul.bf16.gmra.mxu0 %v80
    %v3355 = vpop.f32.mrf.mxu0
    %v3356 = vadd.f32 %v3343, %v3355
    %v3357 = vpop.f32.mrf.mxu0
    %3358 = vdwg.mxu0
    %3359 = vmatpush.bf16.msra.mxu0 %v2648
    %3360 = vmatpush.bf16.msra.mxu0 %v2644
    %3361 = vmatpush.bf16.msra.mxu0 %v2640
    %3362 = vmatpush.bf16.msra.mxu0 %v2636
    %3363 = vmatpush.bf16.msra.mxu0 %v2632
    %3364 = vmatpush.bf16.msra.mxu0 %v2628
    %3365 = vmatpush.bf16.msra.mxu0 %v2624
    %3366 = vmatpush.bf16.msra.mxu0 %v2620
    %3367 = vmatmul.bf16.gmra.mxu0 %v81
    %v3368 = vpop.f32.mrf.mxu0
    %v3369 = vadd.f32 %v3356, %v3368
    %v3370 = vpop.f32.mrf.mxu0
    %3371 = vdwg.mxu0
    %3372 = vmatpush.bf16.msra.mxu0 %v2169
    %3373 = vmatpush.bf16.msra.mxu0 %v2165
    %3374 = vmatpush.bf16.msra.mxu0 %v2161
    %3375 = vmatpush.bf16.msra.mxu0 %v2157
    %3376 = vmatpush.bf16.msra.mxu0 %v2153
    %3377 = vmatpush.bf16.msra.mxu0 %v2149
    %3378 = vmatpush.bf16.msra.mxu0 %v2145
    %3379 = vmatpush.bf16.msra.mxu0 %v2141
    %3380 = vmatmul.bf16.gmra.mxu0 %v66
    %v3381 = vpop.f32.mrf.mxu0
    %v3382 = vadd.f32 %v597, %v3381
    %v3383 = vpop.f32.mrf.mxu0
    %3384 = vdwg.mxu0
    %3385 = vmatpush.bf16.msra.mxu0 %v2201
    %3386 = vmatpush.bf16.msra.mxu0 %v2197
    %3387 = vmatpush.bf16.msra.mxu0 %v2193
    %3388 = vmatpush.bf16.msra.mxu0 %v2189
    %3389 = vmatpush.bf16.msra.mxu0 %v2185
    %3390 = vmatpush.bf16.msra.mxu0 %v2181
    %3391 = vmatpush.bf16.msra.mxu0 %v2177
    %3392 = vmatpush.bf16.msra.mxu0 %v2173
    %3393 = vmatmul.bf16.gmra.mxu0 %v67
    %v3394 = vpop.f32.mrf.mxu0
    %v3395 = vadd.f32 %v3382, %v3394
    %v3396 = vpop.f32.mrf.mxu0
    %3397 = vdwg.mxu0
    %3398 = vmatpush.bf16.msra.mxu0 %v2233
    %3399 = vmatpush.bf16.msra.mxu0 %v2229
    %3400 = vmatpush.bf16.msra.mxu0 %v2225
    %3401 = vmatpush.bf16.msra.mxu0 %v2221
    %3402 = vmatpush.bf16.msra.mxu0 %v2217
    %3403 = vmatpush.bf16.msra.mxu0 %v2213
    %3404 = vmatpush.bf16.msra.mxu0 %v2209
    %3405 = vmatpush.bf16.msra.mxu0 %v2205
    %3406 = vmatmul.bf16.gmra.mxu0 %v68
    %v3407 = vpop.f32.mrf.mxu0
    %v3408 = vadd.f32 %v3395, %v3407
    %v3409 = vpop.f32.mrf.mxu0
    %3410 = vdwg.mxu0
    %3411 = vmatpush.bf16.msra.mxu0 %v2265
    %3412 = vmatpush.bf16.msra.mxu0 %v2261
    %3413 = vmatpush.bf16.msra.mxu0 %v2257
    %3414 = vmatpush.bf16.msra.mxu0 %v2253
    %3415 = vmatpush.bf16.msra.mxu0 %v2249
    %3416 = vmatpush.bf16.msra.mxu0 %v2245
    %3417 = vmatpush.bf16.msra.mxu0 %v2241
    %3418 = vmatpush.bf16.msra.mxu0 %v2237
    %3419 = vmatmul.bf16.gmra.mxu0 %v69
    %v3420 = vpop.f32.mrf.mxu0
    %v3421 = vadd.f32 %v3408, %v3420
    %v3422 = vpop.f32.mrf.mxu0
    %3423 = vdwg.mxu0
    %3424 = vmatpush.bf16.msra.mxu0 %v2297
    %3425 = vmatpush.bf16.msra.mxu0 %v2293
    %3426 = vmatpush.bf16.msra.mxu0 %v2289
    %3427 = vmatpush.bf16.msra.mxu0 %v2285
    %3428 = vmatpush.bf16.msra.mxu0 %v2281
    %3429 = vmatpush.bf16.msra.mxu0 %v2277
    %3430 = vmatpush.bf16.msra.mxu0 %v2273
    %3431 = vmatpush.bf16.msra.mxu0 %v2269
    %3432 = vmatmul.bf16.gmra.mxu0 %v70
    %v3433 = vpop.f32.mrf.mxu0
    %v3434 = vadd.f32 %v3421, %v3433
    %v3435 = vpop.f32.mrf.mxu0
    %3436 = vdwg.mxu0
    %3437 = vmatpush.bf16.msra.mxu0 %v2329
    %3438 = vmatpush.bf16.msra.mxu0 %v2325
    %3439 = vmatpush.bf16.msra.mxu0 %v2321
    %3440 = vmatpush.bf16.msra.mxu0 %v2317
    %3441 = vmatpush.bf16.msra.mxu0 %v2313
    %3442 = vmatpush.bf16.msra.mxu0 %v2309
    %3443 = vmatpush.bf16.msra.mxu0 %v2305
    %3444 = vmatpush.bf16.msra.mxu0 %v2301
    %3445 = vmatmul.bf16.gmra.mxu0 %v71
    %v3446 = vpop.f32.mrf.mxu0
    %v3447 = vadd.f32 %v3434, %v3446
    %v3448 = vpop.f32.mrf.mxu0
    %3449 = vdwg.mxu0
    %3450 = vmatpush.bf16.msra.mxu0 %v2361
    %3451 = vmatpush.bf16.msra.mxu0 %v2357
    %3452 = vmatpush.bf16.msra.mxu0 %v2353
    %3453 = vmatpush.bf16.msra.mxu0 %v2349
    %3454 = vmatpush.bf16.msra.mxu0 %v2345
    %3455 = vmatpush.bf16.msra.mxu0 %v2341
    %3456 = vmatpush.bf16.msra.mxu0 %v2337
    %3457 = vmatpush.bf16.msra.mxu0 %v2333
    %3458 = vmatmul.bf16.gmra.mxu0 %v72
    %v3459 = vpop.f32.mrf.mxu0
    %v3460 = vadd.f32 %v3447, %v3459
    %v3461 = vpop.f32.mrf.mxu0
    %3462 = vdwg.mxu0
    %3463 = vmatpush.bf16.msra.mxu0 %v2393
    %3464 = vmatpush.bf16.msra.mxu0 %v2389
    %3465 = vmatpush.bf16.msra.mxu0 %v2385
    %3466 = vmatpush.bf16.msra.mxu0 %v2381
    %3467 = vmatpush.bf16.msra.mxu0 %v2377
    %3468 = vmatpush.bf16.msra.mxu0 %v2373
    %3469 = vmatpush.bf16.msra.mxu0 %v2369
    %3470 = vmatpush.bf16.msra.mxu0 %v2365
    %3471 = vmatmul.bf16.gmra.mxu0 %v73
    %v3472 = vpop.f32.mrf.mxu0
    %v3473 = vadd.f32 %v3460, %v3472
    %v3474 = vpop.f32.mrf.mxu0
    %3475 = vdwg.mxu0
    %3476 = vmatpush.bf16.msra.mxu0 %v2425
    %3477 = vmatpush.bf16.msra.mxu0 %v2421
    %3478 = vmatpush.bf16.msra.mxu0 %v2417
    %3479 = vmatpush.bf16.msra.mxu0 %v2413
    %3480 = vmatpush.bf16.msra.mxu0 %v2409
    %3481 = vmatpush.bf16.msra.mxu0 %v2405
    %3482 = vmatpush.bf16.msra.mxu0 %v2401
    %3483 = vmatpush.bf16.msra.mxu0 %v2397
    %3484 = vmatmul.bf16.gmra.mxu0 %v74
    %v3485 = vpop.f32.mrf.mxu0
    %v3486 = vadd.f32 %v3473, %v3485
    %v3487 = vpop.f32.mrf.mxu0
    %3488 = vdwg.mxu0
    %3489 = vmatpush.bf16.msra.mxu0 %v2457
    %3490 = vmatpush.bf16.msra.mxu0 %v2453
    %3491 = vmatpush.bf16.msra.mxu0 %v2449
    %3492 = vmatpush.bf16.msra.mxu0 %v2445
    %3493 = vmatpush.bf16.msra.mxu0 %v2441
    %3494 = vmatpush.bf16.msra.mxu0 %v2437
    %3495 = vmatpush.bf16.msra.mxu0 %v2433
    %3496 = vmatpush.bf16.msra.mxu0 %v2429
    %3497 = vmatmul.bf16.gmra.mxu0 %v75
    %v3498 = vpop.f32.mrf.mxu0
    %v3499 = vadd.f32 %v3486, %v3498
    %v3500 = vpop.f32.mrf.mxu0
    %3501 = vdwg.mxu0
    %3502 = vmatpush.bf16.msra.mxu0 %v2489
    %3503 = vmatpush.bf16.msra.mxu0 %v2485
    %3504 = vmatpush.bf16.msra.mxu0 %v2481
    %3505 = vmatpush.bf16.msra.mxu0 %v2477
    %3506 = vmatpush.bf16.msra.mxu0 %v2473
    %3507 = vmatpush.bf16.msra.mxu0 %v2469
    %3508 = vmatpush.bf16.msra.mxu0 %v2465
    %3509 = vmatpush.bf16.msra.mxu0 %v2461
    %3510 = vmatmul.bf16.gmra.mxu0 %v76
    %v3511 = vpop.f32.mrf.mxu0
    %v3512 = vadd.f32 %v3499, %v3511
    %v3513 = vpop.f32.mrf.mxu0
    %3514 = vdwg.mxu0
    %3515 = vmatpush.bf16.msra.mxu0 %v2521
    %3516 = vmatpush.bf16.msra.mxu0 %v2517
    %3517 = vmatpush.bf16.msra.mxu0 %v2513
    %3518 = vmatpush.bf16.msra.mxu0 %v2509
    %3519 = vmatpush.bf16.msra.mxu0 %v2505
    %3520 = vmatpush.bf16.msra.mxu0 %v2501
    %3521 = vmatpush.bf16.msra.mxu0 %v2497
    %3522 = vmatpush.bf16.msra.mxu0 %v2493
    %3523 = vmatmul.bf16.gmra.mxu0 %v77
    %v3524 = vpop.f32.mrf.mxu0
    %v3525 = vadd.f32 %v3512, %v3524
    %v3526 = vpop.f32.mrf.mxu0
    %3527 = vdwg.mxu0
    %3528 = vmatpush.bf16.msra.mxu0 %v2553
    %3529 = vmatpush.bf16.msra.mxu0 %v2549
    %3530 = vmatpush.bf16.msra.mxu0 %v2545
    %3531 = vmatpush.bf16.msra.mxu0 %v2541
    %3532 = vmatpush.bf16.msra.mxu0 %v2537
    %3533 = vmatpush.bf16.msra.mxu0 %v2533
    %3534 = vmatpush.bf16.msra.mxu0 %v2529
    %3535 = vmatpush.bf16.msra.mxu0 %v2525
    %3536 = vmatmul.bf16.gmra.mxu0 %v78
    %v3537 = vpop.f32.mrf.mxu0
    %v3538 = vadd.f32 %v3525, %v3537
    %v3539 = vpop.f32.mrf.mxu0
    %3540 = vdwg.mxu0
    %3541 = vmatpush.bf16.msra.mxu0 %v2585
    %3542 = vmatpush.bf16.msra.mxu0 %v2581
    %3543 = vmatpush.bf16.msra.mxu0 %v2577
    %3544 = vmatpush.bf16.msra.mxu0 %v2573
    %3545 = vmatpush.bf16.msra.mxu0 %v2569
    %3546 = vmatpush.bf16.msra.mxu0 %v2565
    %3547 = vmatpush.bf16.msra.mxu0 %v2561
    %3548 = vmatpush.bf16.msra.mxu0 %v2557
    %3549 = vmatmul.bf16.gmra.mxu0 %v79
    %v3550 = vpop.f32.mrf.mxu0
    %v3551 = vadd.f32 %v3538, %v3550
    %v3552 = vpop.f32.mrf.mxu0
    %3553 = vdwg.mxu0
    %3554 = vmatpush.bf16.msra.mxu0 %v2617
    %3555 = vmatpush.bf16.msra.mxu0 %v2613
    %3556 = vmatpush.bf16.msra.mxu0 %v2609
    %3557 = vmatpush.bf16.msra.mxu0 %v2605
    %3558 = vmatpush.bf16.msra.mxu0 %v2601
    %3559 = vmatpush.bf16.msra.mxu0 %v2597
    %3560 = vmatpush.bf16.msra.mxu0 %v2593
    %3561 = vmatpush.bf16.msra.mxu0 %v2589
    %3562 = vmatmul.bf16.gmra.mxu0 %v80
    %v3563 = vpop.f32.mrf.mxu0
    %v3564 = vadd.f32 %v3551, %v3563
    %v3565 = vpop.f32.mrf.mxu0
    %3566 = vdwg.mxu0
    %3567 = vmatpush.bf16.msra.mxu0 %v2649
    %3568 = vmatpush.bf16.msra.mxu0 %v2645
    %3569 = vmatpush.bf16.msra.mxu0 %v2641
    %3570 = vmatpush.bf16.msra.mxu0 %v2637
    %3571 = vmatpush.bf16.msra.mxu0 %v2633
    %3572 = vmatpush.bf16.msra.mxu0 %v2629
    %3573 = vmatpush.bf16.msra.mxu0 %v2625
    %3574 = vmatpush.bf16.msra.mxu0 %v2621
    %3575 = vmatmul.bf16.gmra.mxu0 %v81
    %v3576 = vpop.f32.mrf.mxu0
    %v3577 = vadd.f32 %v3564, %v3576
    %v3578 = vpop.f32.mrf.mxu0
    %3579 = vdwg.mxu0
    %3580 = vmatpush.bf16.msra.mxu0 %v2170
    %3581 = vmatpush.bf16.msra.mxu0 %v2166
    %3582 = vmatpush.bf16.msra.mxu0 %v2162
    %3583 = vmatpush.bf16.msra.mxu0 %v2158
    %3584 = vmatpush.bf16.msra.mxu0 %v2154
    %3585 = vmatpush.bf16.msra.mxu0 %v2150
    %3586 = vmatpush.bf16.msra.mxu0 %v2146
    %3587 = vmatpush.bf16.msra.mxu0 %v2142
    %3588 = vmatmul.bf16.gmra.mxu0 %v66
    %v3589 = vpop.f32.mrf.mxu0
    %v3590 = vadd.f32 %v598, %v3589
    %v3591 = vpop.f32.mrf.mxu0
    %3592 = vdwg.mxu0
    %3593 = vmatpush.bf16.msra.mxu0 %v2202
    %3594 = vmatpush.bf16.msra.mxu0 %v2198
    %3595 = vmatpush.bf16.msra.mxu0 %v2194
    %3596 = vmatpush.bf16.msra.mxu0 %v2190
    %3597 = vmatpush.bf16.msra.mxu0 %v2186
    %3598 = vmatpush.bf16.msra.mxu0 %v2182
    %3599 = vmatpush.bf16.msra.mxu0 %v2178
    %3600 = vmatpush.bf16.msra.mxu0 %v2174
    %3601 = vmatmul.bf16.gmra.mxu0 %v67
    %v3602 = vpop.f32.mrf.mxu0
    %v3603 = vadd.f32 %v3590, %v3602
    %v3604 = vpop.f32.mrf.mxu0
    %3605 = vdwg.mxu0
    %3606 = vmatpush.bf16.msra.mxu0 %v2234
    %3607 = vmatpush.bf16.msra.mxu0 %v2230
    %3608 = vmatpush.bf16.msra.mxu0 %v2226
    %3609 = vmatpush.bf16.msra.mxu0 %v2222
    %3610 = vmatpush.bf16.msra.mxu0 %v2218
    %3611 = vmatpush.bf16.msra.mxu0 %v2214
    %3612 = vmatpush.bf16.msra.mxu0 %v2210
    %3613 = vmatpush.bf16.msra.mxu0 %v2206
    %3614 = vmatmul.bf16.gmra.mxu0 %v68
    %v3615 = vpop.f32.mrf.mxu0
    %v3616 = vadd.f32 %v3603, %v3615
    %v3617 = vpop.f32.mrf.mxu0
    %3618 = vdwg.mxu0
    %3619 = vmatpush.bf16.msra.mxu0 %v2266
    %3620 = vmatpush.bf16.msra.mxu0 %v2262
    %3621 = vmatpush.bf16.msra.mxu0 %v2258
    %3622 = vmatpush.bf16.msra.mxu0 %v2254
    %3623 = vmatpush.bf16.msra.mxu0 %v2250
    %3624 = vmatpush.bf16.msra.mxu0 %v2246
    %3625 = vmatpush.bf16.msra.mxu0 %v2242
    %3626 = vmatpush.bf16.msra.mxu0 %v2238
    %3627 = vmatmul.bf16.gmra.mxu0 %v69
    %v3628 = vpop.f32.mrf.mxu0
    %v3629 = vadd.f32 %v3616, %v3628
    %v3630 = vpop.f32.mrf.mxu0
    %3631 = vdwg.mxu0
    %3632 = vmatpush.bf16.msra.mxu0 %v2298
    %3633 = vmatpush.bf16.msra.mxu0 %v2294
    %3634 = vmatpush.bf16.msra.mxu0 %v2290
    %3635 = vmatpush.bf16.msra.mxu0 %v2286
    %3636 = vmatpush.bf16.msra.mxu0 %v2282
    %3637 = vmatpush.bf16.msra.mxu0 %v2278
    %3638 = vmatpush.bf16.msra.mxu0 %v2274
    %3639 = vmatpush.bf16.msra.mxu0 %v2270
    %3640 = vmatmul.bf16.gmra.mxu0 %v70
    %v3641 = vpop.f32.mrf.mxu0
    %v3642 = vadd.f32 %v3629, %v3641
    %v3643 = vpop.f32.mrf.mxu0
    %3644 = vdwg.mxu0
    %3645 = vmatpush.bf16.msra.mxu0 %v2330
    %3646 = vmatpush.bf16.msra.mxu0 %v2326
    %3647 = vmatpush.bf16.msra.mxu0 %v2322
    %3648 = vmatpush.bf16.msra.mxu0 %v2318
    %3649 = vmatpush.bf16.msra.mxu0 %v2314
    %3650 = vmatpush.bf16.msra.mxu0 %v2310
    %3651 = vmatpush.bf16.msra.mxu0 %v2306
    %3652 = vmatpush.bf16.msra.mxu0 %v2302
    %3653 = vmatmul.bf16.gmra.mxu0 %v71
    %v3654 = vpop.f32.mrf.mxu0
    %v3655 = vadd.f32 %v3642, %v3654
    %v3656 = vpop.f32.mrf.mxu0
    %3657 = vdwg.mxu0
    %3658 = vmatpush.bf16.msra.mxu0 %v2362
    %3659 = vmatpush.bf16.msra.mxu0 %v2358
    %3660 = vmatpush.bf16.msra.mxu0 %v2354
    %3661 = vmatpush.bf16.msra.mxu0 %v2350
    %3662 = vmatpush.bf16.msra.mxu0 %v2346
    %3663 = vmatpush.bf16.msra.mxu0 %v2342
    %3664 = vmatpush.bf16.msra.mxu0 %v2338
    %3665 = vmatpush.bf16.msra.mxu0 %v2334
    %3666 = vmatmul.bf16.gmra.mxu0 %v72
    %v3667 = vpop.f32.mrf.mxu0
    %v3668 = vadd.f32 %v3655, %v3667
    %v3669 = vpop.f32.mrf.mxu0
    %3670 = vdwg.mxu0
    %3671 = vmatpush.bf16.msra.mxu0 %v2394
    %3672 = vmatpush.bf16.msra.mxu0 %v2390
    %3673 = vmatpush.bf16.msra.mxu0 %v2386
    %3674 = vmatpush.bf16.msra.mxu0 %v2382
    %3675 = vmatpush.bf16.msra.mxu0 %v2378
    %3676 = vmatpush.bf16.msra.mxu0 %v2374
    %3677 = vmatpush.bf16.msra.mxu0 %v2370
    %3678 = vmatpush.bf16.msra.mxu0 %v2366
    %3679 = vmatmul.bf16.gmra.mxu0 %v73
    %v3680 = vpop.f32.mrf.mxu0
    %v3681 = vadd.f32 %v3668, %v3680
    %v3682 = vpop.f32.mrf.mxu0
    %3683 = vdwg.mxu0
    %3684 = vmatpush.bf16.msra.mxu0 %v2426
    %3685 = vmatpush.bf16.msra.mxu0 %v2422
    %3686 = vmatpush.bf16.msra.mxu0 %v2418
    %3687 = vmatpush.bf16.msra.mxu0 %v2414
    %3688 = vmatpush.bf16.msra.mxu0 %v2410
    %3689 = vmatpush.bf16.msra.mxu0 %v2406
    %3690 = vmatpush.bf16.msra.mxu0 %v2402
    %3691 = vmatpush.bf16.msra.mxu0 %v2398
    %3692 = vmatmul.bf16.gmra.mxu0 %v74
    %v3693 = vpop.f32.mrf.mxu0
    %v3694 = vadd.f32 %v3681, %v3693
    %v3695 = vpop.f32.mrf.mxu0
    %3696 = vdwg.mxu0
    %3697 = vmatpush.bf16.msra.mxu0 %v2458
    %3698 = vmatpush.bf16.msra.mxu0 %v2454
    %3699 = vmatpush.bf16.msra.mxu0 %v2450
    %3700 = vmatpush.bf16.msra.mxu0 %v2446
    %3701 = vmatpush.bf16.msra.mxu0 %v2442
    %3702 = vmatpush.bf16.msra.mxu0 %v2438
    %3703 = vmatpush.bf16.msra.mxu0 %v2434
    %3704 = vmatpush.bf16.msra.mxu0 %v2430
    %3705 = vmatmul.bf16.gmra.mxu0 %v75
    %v3706 = vpop.f32.mrf.mxu0
    %v3707 = vadd.f32 %v3694, %v3706
    %v3708 = vpop.f32.mrf.mxu0
    %3709 = vdwg.mxu0
    %3710 = vmatpush.bf16.msra.mxu0 %v2490
    %3711 = vmatpush.bf16.msra.mxu0 %v2486
    %3712 = vmatpush.bf16.msra.mxu0 %v2482
    %3713 = vmatpush.bf16.msra.mxu0 %v2478
    %3714 = vmatpush.bf16.msra.mxu0 %v2474
    %3715 = vmatpush.bf16.msra.mxu0 %v2470
    %3716 = vmatpush.bf16.msra.mxu0 %v2466
    %3717 = vmatpush.bf16.msra.mxu0 %v2462
    %3718 = vmatmul.bf16.gmra.mxu0 %v76
    %v3719 = vpop.f32.mrf.mxu0
    %v3720 = vadd.f32 %v3707, %v3719
    %v3721 = vpop.f32.mrf.mxu0
    %3722 = vdwg.mxu0
    %3723 = vmatpush.bf16.msra.mxu0 %v2522
    %3724 = vmatpush.bf16.msra.mxu0 %v2518
    %3725 = vmatpush.bf16.msra.mxu0 %v2514
    %3726 = vmatpush.bf16.msra.mxu0 %v2510
    %3727 = vmatpush.bf16.msra.mxu0 %v2506
    %3728 = vmatpush.bf16.msra.mxu0 %v2502
    %3729 = vmatpush.bf16.msra.mxu0 %v2498
    %3730 = vmatpush.bf16.msra.mxu0 %v2494
    %3731 = vmatmul.bf16.gmra.mxu0 %v77
    %v3732 = vpop.f32.mrf.mxu0
    %v3733 = vadd.f32 %v3720, %v3732
    %v3734 = vpop.f32.mrf.mxu0
    %3735 = vdwg.mxu0
    %3736 = vmatpush.bf16.msra.mxu0 %v2554
    %3737 = vmatpush.bf16.msra.mxu0 %v2550
    %3738 = vmatpush.bf16.msra.mxu0 %v2546
    %3739 = vmatpush.bf16.msra.mxu0 %v2542
    %3740 = vmatpush.bf16.msra.mxu0 %v2538
    %3741 = vmatpush.bf16.msra.mxu0 %v2534
    %3742 = vmatpush.bf16.msra.mxu0 %v2530
    %3743 = vmatpush.bf16.msra.mxu0 %v2526
    %3744 = vmatmul.bf16.gmra.mxu0 %v78
    %v3745 = vpop.f32.mrf.mxu0
    %v3746 = vadd.f32 %v3733, %v3745
    %v3747 = vpop.f32.mrf.mxu0
    %3748 = vdwg.mxu0
    %3749 = vmatpush.bf16.msra.mxu0 %v2586
    %3750 = vmatpush.bf16.msra.mxu0 %v2582
    %3751 = vmatpush.bf16.msra.mxu0 %v2578
    %3752 = vmatpush.bf16.msra.mxu0 %v2574
    %3753 = vmatpush.bf16.msra.mxu0 %v2570
    %3754 = vmatpush.bf16.msra.mxu0 %v2566
    %3755 = vmatpush.bf16.msra.mxu0 %v2562
    %3756 = vmatpush.bf16.msra.mxu0 %v2558
    %3757 = vmatmul.bf16.gmra.mxu0 %v79
    %v3758 = vpop.f32.mrf.mxu0
    %v3759 = vadd.f32 %v3746, %v3758
    %v3760 = vpop.f32.mrf.mxu0
    %3761 = vdwg.mxu0
    %3762 = vmatpush.bf16.msra.mxu0 %v2618
    %3763 = vmatpush.bf16.msra.mxu0 %v2614
    %3764 = vmatpush.bf16.msra.mxu0 %v2610
    %3765 = vmatpush.bf16.msra.mxu0 %v2606
    %3766 = vmatpush.bf16.msra.mxu0 %v2602
    %3767 = vmatpush.bf16.msra.mxu0 %v2598
    %3768 = vmatpush.bf16.msra.mxu0 %v2594
    %3769 = vmatpush.bf16.msra.mxu0 %v2590
    %3770 = vmatmul.bf16.gmra.mxu0 %v80
    %v3771 = vpop.f32.mrf.mxu0
    %v3772 = vadd.f32 %v3759, %v3771
    %v3773 = vpop.f32.mrf.mxu0
    %3774 = vdwg.mxu0
    %3775 = vmatpush.bf16.msra.mxu0 %v2650
    %3776 = vmatpush.bf16.msra.mxu0 %v2646
    %3777 = vmatpush.bf16.msra.mxu0 %v2642
    %3778 = vmatpush.bf16.msra.mxu0 %v2638
    %3779 = vmatpush.bf16.msra.mxu0 %v2634
    %3780 = vmatpush.bf16.msra.mxu0 %v2630
    %3781 = vmatpush.bf16.msra.mxu0 %v2626
    %3782 = vmatpush.bf16.msra.mxu0 %v2622
    %3783 = vmatmul.bf16.gmra.mxu0 %v81
    %v3784 = vpop.f32.mrf.mxu0
    %v3785 = vadd.f32 %v3772, %v3784
    %v3786 = vpop.f32.mrf.mxu0
    %3787 = vdwg.mxu0
    %3788 = vmatpush.bf16.msra.mxu0 %v2171
    %3789 = vmatpush.bf16.msra.mxu0 %v2167
    %3790 = vmatpush.bf16.msra.mxu0 %v2163
    %3791 = vmatpush.bf16.msra.mxu0 %v2159
    %3792 = vmatpush.bf16.msra.mxu0 %v2155
    %3793 = vmatpush.bf16.msra.mxu0 %v2151
    %3794 = vmatpush.bf16.msra.mxu0 %v2147
    %3795 = vmatpush.bf16.msra.mxu0 %v2143
    %3796 = vmatmul.bf16.gmra.mxu0 %v66
    %v3797 = vpop.f32.mrf.mxu0
    %v3798 = vadd.f32 %v599, %v3797
    %v3799 = vpop.f32.mrf.mxu0
    %3800 = vdwg.mxu0
    %3801 = vmatpush.bf16.msra.mxu0 %v2203
    %3802 = vmatpush.bf16.msra.mxu0 %v2199
    %3803 = vmatpush.bf16.msra.mxu0 %v2195
    %3804 = vmatpush.bf16.msra.mxu0 %v2191
    %3805 = vmatpush.bf16.msra.mxu0 %v2187
    %3806 = vmatpush.bf16.msra.mxu0 %v2183
    %3807 = vmatpush.bf16.msra.mxu0 %v2179
    %3808 = vmatpush.bf16.msra.mxu0 %v2175
    %3809 = vmatmul.bf16.gmra.mxu0 %v67
    %v3810 = vpop.f32.mrf.mxu0
    %v3811 = vadd.f32 %v3798, %v3810
    %v3812 = vpop.f32.mrf.mxu0
    %3813 = vdwg.mxu0
    %3814 = vmatpush.bf16.msra.mxu0 %v2235
    %3815 = vmatpush.bf16.msra.mxu0 %v2231
    %3816 = vmatpush.bf16.msra.mxu0 %v2227
    %3817 = vmatpush.bf16.msra.mxu0 %v2223
    %3818 = vmatpush.bf16.msra.mxu0 %v2219
    %3819 = vmatpush.bf16.msra.mxu0 %v2215
    %3820 = vmatpush.bf16.msra.mxu0 %v2211
    %3821 = vmatpush.bf16.msra.mxu0 %v2207
    %3822 = vmatmul.bf16.gmra.mxu0 %v68
    %v3823 = vpop.f32.mrf.mxu0
    %v3824 = vadd.f32 %v3811, %v3823
    %v3825 = vpop.f32.mrf.mxu0
    %3826 = vdwg.mxu0
    %3827 = vmatpush.bf16.msra.mxu0 %v2267
    %3828 = vmatpush.bf16.msra.mxu0 %v2263
    %3829 = vmatpush.bf16.msra.mxu0 %v2259
    %3830 = vmatpush.bf16.msra.mxu0 %v2255
    %3831 = vmatpush.bf16.msra.mxu0 %v2251
    %3832 = vmatpush.bf16.msra.mxu0 %v2247
    %3833 = vmatpush.bf16.msra.mxu0 %v2243
    %3834 = vmatpush.bf16.msra.mxu0 %v2239
    %3835 = vmatmul.bf16.gmra.mxu0 %v69
    %v3836 = vpop.f32.mrf.mxu0
    %v3837 = vadd.f32 %v3824, %v3836
    %v3838 = vpop.f32.mrf.mxu0
    %3839 = vdwg.mxu0
    %3840 = vmatpush.bf16.msra.mxu0 %v2299
    %3841 = vmatpush.bf16.msra.mxu0 %v2295
    %3842 = vmatpush.bf16.msra.mxu0 %v2291
    %3843 = vmatpush.bf16.msra.mxu0 %v2287
    %3844 = vmatpush.bf16.msra.mxu0 %v2283
    %3845 = vmatpush.bf16.msra.mxu0 %v2279
    %3846 = vmatpush.bf16.msra.mxu0 %v2275
    %3847 = vmatpush.bf16.msra.mxu0 %v2271
    %3848 = vmatmul.bf16.gmra.mxu0 %v70
    %v3849 = vpop.f32.mrf.mxu0
    %v3850 = vadd.f32 %v3837, %v3849
    %v3851 = vpop.f32.mrf.mxu0
    %3852 = vdwg.mxu0
    %3853 = vmatpush.bf16.msra.mxu0 %v2331
    %3854 = vmatpush.bf16.msra.mxu0 %v2327
    %3855 = vmatpush.bf16.msra.mxu0 %v2323
    %3856 = vmatpush.bf16.msra.mxu0 %v2319
    %3857 = vmatpush.bf16.msra.mxu0 %v2315
    %3858 = vmatpush.bf16.msra.mxu0 %v2311
    %3859 = vmatpush.bf16.msra.mxu0 %v2307
    %3860 = vmatpush.bf16.msra.mxu0 %v2303
    %3861 = vmatmul.bf16.gmra.mxu0 %v71
    %v3862 = vpop.f32.mrf.mxu0
    %v3863 = vadd.f32 %v3850, %v3862
    %v3864 = vpop.f32.mrf.mxu0
    %3865 = vdwg.mxu0
    %3866 = vmatpush.bf16.msra.mxu0 %v2363
    %3867 = vmatpush.bf16.msra.mxu0 %v2359
    %3868 = vmatpush.bf16.msra.mxu0 %v2355
    %3869 = vmatpush.bf16.msra.mxu0 %v2351
    %3870 = vmatpush.bf16.msra.mxu0 %v2347
    %3871 = vmatpush.bf16.msra.mxu0 %v2343
    %3872 = vmatpush.bf16.msra.mxu0 %v2339
    %3873 = vmatpush.bf16.msra.mxu0 %v2335
    %3874 = vmatmul.bf16.gmra.mxu0 %v72
    %v3875 = vpop.f32.mrf.mxu0
    %v3876 = vadd.f32 %v3863, %v3875
    %v3877 = vpop.f32.mrf.mxu0
    %3878 = vdwg.mxu0
    %3879 = vmatpush.bf16.msra.mxu0 %v2395
    %3880 = vmatpush.bf16.msra.mxu0 %v2391
    %3881 = vmatpush.bf16.msra.mxu0 %v2387
    %3882 = vmatpush.bf16.msra.mxu0 %v2383
    %3883 = vmatpush.bf16.msra.mxu0 %v2379
    %3884 = vmatpush.bf16.msra.mxu0 %v2375
    %3885 = vmatpush.bf16.msra.mxu0 %v2371
    %3886 = vmatpush.bf16.msra.mxu0 %v2367
    %3887 = vmatmul.bf16.gmra.mxu0 %v73
    %v3888 = vpop.f32.mrf.mxu0
    %v3889 = vadd.f32 %v3876, %v3888
    %v3890 = vpop.f32.mrf.mxu0
    %3891 = vdwg.mxu0
    %3892 = vmatpush.bf16.msra.mxu0 %v2427
    %3893 = vmatpush.bf16.msra.mxu0 %v2423
    %3894 = vmatpush.bf16.msra.mxu0 %v2419
    %3895 = vmatpush.bf16.msra.mxu0 %v2415
    %3896 = vmatpush.bf16.msra.mxu0 %v2411
    %3897 = vmatpush.bf16.msra.mxu0 %v2407
    %3898 = vmatpush.bf16.msra.mxu0 %v2403
    %3899 = vmatpush.bf16.msra.mxu0 %v2399
    %3900 = vmatmul.bf16.gmra.mxu0 %v74
    %v3901 = vpop.f32.mrf.mxu0
    %v3902 = vadd.f32 %v3889, %v3901
    %v3903 = vpop.f32.mrf.mxu0
    %3904 = vdwg.mxu0
    %3905 = vmatpush.bf16.msra.mxu0 %v2459
    %3906 = vmatpush.bf16.msra.mxu0 %v2455
    %3907 = vmatpush.bf16.msra.mxu0 %v2451
    %3908 = vmatpush.bf16.msra.mxu0 %v2447
    %3909 = vmatpush.bf16.msra.mxu0 %v2443
    %3910 = vmatpush.bf16.msra.mxu0 %v2439
    %3911 = vmatpush.bf16.msra.mxu0 %v2435
    %3912 = vmatpush.bf16.msra.mxu0 %v2431
    %3913 = vmatmul.bf16.gmra.mxu0 %v75
    %v3914 = vpop.f32.mrf.mxu0
    %v3915 = vadd.f32 %v3902, %v3914
    %v3916 = vpop.f32.mrf.mxu0
    %3917 = vdwg.mxu0
    %3918 = vmatpush.bf16.msra.mxu0 %v2491
    %3919 = vmatpush.bf16.msra.mxu0 %v2487
    %3920 = vmatpush.bf16.msra.mxu0 %v2483
    %3921 = vmatpush.bf16.msra.mxu0 %v2479
    %3922 = vmatpush.bf16.msra.mxu0 %v2475
    %3923 = vmatpush.bf16.msra.mxu0 %v2471
    %3924 = vmatpush.bf16.msra.mxu0 %v2467
    %3925 = vmatpush.bf16.msra.mxu0 %v2463
    %3926 = vmatmul.bf16.gmra.mxu0 %v76
    %v3927 = vpop.f32.mrf.mxu0
    %v3928 = vadd.f32 %v3915, %v3927
    %v3929 = vpop.f32.mrf.mxu0
    %3930 = vdwg.mxu0
    %3931 = vmatpush.bf16.msra.mxu0 %v2523
    %3932 = vmatpush.bf16.msra.mxu0 %v2519
    %3933 = vmatpush.bf16.msra.mxu0 %v2515
    %3934 = vmatpush.bf16.msra.mxu0 %v2511
    %3935 = vmatpush.bf16.msra.mxu0 %v2507
    %3936 = vmatpush.bf16.msra.mxu0 %v2503
    %3937 = vmatpush.bf16.msra.mxu0 %v2499
    %3938 = vmatpush.bf16.msra.mxu0 %v2495
    %3939 = vmatmul.bf16.gmra.mxu0 %v77
    %v3940 = vpop.f32.mrf.mxu0
    %v3941 = vadd.f32 %v3928, %v3940
    %v3942 = vpop.f32.mrf.mxu0
    %3943 = vdwg.mxu0
    %3944 = vmatpush.bf16.msra.mxu0 %v2555
    %3945 = vmatpush.bf16.msra.mxu0 %v2551
    %3946 = vmatpush.bf16.msra.mxu0 %v2547
    %3947 = vmatpush.bf16.msra.mxu0 %v2543
    %3948 = vmatpush.bf16.msra.mxu0 %v2539
    %3949 = vmatpush.bf16.msra.mxu0 %v2535
    %3950 = vmatpush.bf16.msra.mxu0 %v2531
    %3951 = vmatpush.bf16.msra.mxu0 %v2527
    %3952 = vmatmul.bf16.gmra.mxu0 %v78
    %v3953 = vpop.f32.mrf.mxu0
    %v3954 = vadd.f32 %v3941, %v3953
    %v3955 = vpop.f32.mrf.mxu0
    %3956 = vdwg.mxu0
    %3957 = vmatpush.bf16.msra.mxu0 %v2587
    %3958 = vmatpush.bf16.msra.mxu0 %v2583
    %3959 = vmatpush.bf16.msra.mxu0 %v2579
    %3960 = vmatpush.bf16.msra.mxu0 %v2575
    %3961 = vmatpush.bf16.msra.mxu0 %v2571
    %3962 = vmatpush.bf16.msra.mxu0 %v2567
    %3963 = vmatpush.bf16.msra.mxu0 %v2563
    %3964 = vmatpush.bf16.msra.mxu0 %v2559
    %3965 = vmatmul.bf16.gmra.mxu0 %v79
    %v3966 = vpop.f32.mrf.mxu0
    %v3967 = vadd.f32 %v3954, %v3966
    %v3968 = vpop.f32.mrf.mxu0
    %3969 = vdwg.mxu0
    %3970 = vmatpush.bf16.msra.mxu0 %v2619
    %3971 = vmatpush.bf16.msra.mxu0 %v2615
    %3972 = vmatpush.bf16.msra.mxu0 %v2611
    %3973 = vmatpush.bf16.msra.mxu0 %v2607
    %3974 = vmatpush.bf16.msra.mxu0 %v2603
    %3975 = vmatpush.bf16.msra.mxu0 %v2599
    %3976 = vmatpush.bf16.msra.mxu0 %v2595
    %3977 = vmatpush.bf16.msra.mxu0 %v2591
    %3978 = vmatmul.bf16.gmra.mxu0 %v80
    %v3979 = vpop.f32.mrf.mxu0
    %v3980 = vadd.f32 %v3967, %v3979
    %v3981 = vpop.f32.mrf.mxu0
    %3982 = vdwg.mxu0
    %3983 = vmatpush.bf16.msra.mxu0 %v2651
    %3984 = vmatpush.bf16.msra.mxu0 %v2647
    %3985 = vmatpush.bf16.msra.mxu0 %v2643
    %3986 = vmatpush.bf16.msra.mxu0 %v2639
    %3987 = vmatpush.bf16.msra.mxu0 %v2635
    %3988 = vmatpush.bf16.msra.mxu0 %v2631
    %3989 = vmatpush.bf16.msra.mxu0 %v2627
    %3990 = vmatpush.bf16.msra.mxu0 %v2623
    %3991 = vmatmul.bf16.gmra.mxu0 %v81
    %v3992 = vpop.f32.mrf.mxu0
    %v3993 = vadd.f32 %v3980, %v3992
    %v3994 = vpop.f32.mrf.mxu0
    %3995 = vdwg.mxu0
    %v3996 = vmax.f32 %v3369, 0.0
    %v3997 = vmax.f32 %v3577, 0.0
    %v3998 = vmax.f32 %v3785, 0.0
    %v3999 = vmax.f32 %v3993, 0.0
    %v4000 = vpack.c.bf16 %v3996, %v3996
    %v4001 = vpack.c.bf16 %v3997, %v3997
    %v4002 = vpack.c.bf16 %v3998, %v3998
    %v4003 = vpack.c.bf16 %v3999, %v3999
    %v4004 = vld [vmem:[%s3] sm:$0xf]
    %v4005 = vld [vmem:[%s3 + $0x4] sm:$0xf]
    %v4006 = vld [vmem:[%s3 + $0x8] sm:$0xf]
    %v4007 = vld [vmem:[%s3 + $0xc] sm:$0xf]
    %v4008 = vld [vmem:[%s3 + $0x10] sm:$0xf]
    %v4009 = vld [vmem:[%s3 + $0x14] sm:$0xf]
    %v4010 = vld [vmem:[%s3 + $0x18] sm:$0xf]
    %v4011 = vld [vmem:[%s3 + $0x1c] sm:$0xf]
    %v4012 = vld [vmem:[%s3 + $0x20] sm:$0xf]
    %v4013 = vld [vmem:[%s3 + $0x24] sm:$0xf]
    %v4014 = vld [vmem:[%s3 + $0x28] sm:$0xf]
    %v4015 = vld [vmem:[%s3 + $0x2c] sm:$0xf]
    %v4016 = vld [vmem:[%s3 + $0x30] sm:$0xf]
    %v4017 = vld [vmem:[%s3 + $0x34] sm:$0xf]
    %v4018 = vld [vmem:[%s3 + $0x38] sm:$0xf]
    %v4019 = vld [vmem:[%s3 + $0x3c] sm:$0xf]
    %v4020 = vld [vmem:[%s3 + $0x40] sm:$0xf]
    %v4021 = vld [vmem:[%s3 + $0x44] sm:$0xf]
    %v4022 = vld [vmem:[%s3 + $0x48] sm:$0xf]
    %v4023 = vld [vmem:[%s3 + $0x4c] sm:$0xf]
    %v4024 = vld [vmem:[%s3 + $0x50] sm:$0xf]
    %v4025 = vld [vmem:[%s3 + $0x54] sm:$0xf]
    %v4026 = vld [vmem:[%s3 + $0x58] sm:$0xf]
    %v4027 = vld [vmem:[%s3 + $0x5c] sm:$0xf]
    %v4028 = vld [vmem:[%s3 + $0x60] sm:$0xf]
    %v4029 = vld [vmem:[%s3 + $0x64] sm:$0xf]
    %v4030 = vld [vmem:[%s3 + $0x68] sm:$0xf]
    %v4031 = vld [vmem:[%s3 + $0x6c] sm:$0xf]
    %v4032 = vld [vmem:[%s3 + $0x70] sm:$0xf]
    %v4033 = vld [vmem:[%s3 + $0x74] sm:$0xf]
    %v4034 = vld [vmem:[%s3 + $0x78] sm:$0xf]
    %v4035 = vld [vmem:[%s3 + $0x7c] sm:$0xf]
    %v4036 = vld [vmem:[%s3 + $0x80] sm:$0xf]
    %v4037 = vld [vmem:[%s3 + $0x84] sm:$0xf]
    %v4038 = vld [vmem:[%s3 + $0x88] sm:$0xf]
    %v4039 = vld [vmem:[%s3 + $0x8c] sm:$0xf]
    %v4040 = vld [vmem:[%s3 + $0x90] sm:$0xf]
    %v4041 = vld [vmem:[%s3 + $0x94] sm:$0xf]
    %v4042 = vld [vmem:[%s3 + $0x98] sm:$0xf]
    %v4043 = vld [vmem:[%s3 + $0x9c] sm:$0xf]
    %v4044 = vld [vmem:[%s3 + $0xa0] sm:$0xf]
    %v4045 = vld [vmem:[%s3 + $0xa4] sm:$0xf]
    %v4046 = vld [vmem:[%s3 + $0xa8] sm:$0xf]
    %v4047 = vld [vmem:[%s3 + $0xac] sm:$0xf]
    %v4048 = vld [vmem:[%s3 + $0xb0] sm:$0xf]
    %v4049 = vld [vmem:[%s3 + $0xb4] sm:$0xf]
    %v4050 = vld [vmem:[%s3 + $0xb8] sm:$0xf]
    %v4051 = vld [vmem:[%s3 + $0xbc] sm:$0xf]
    %v4052 = vld [vmem:[%s3 + $0xc0] sm:$0xf]
    %v4053 = vld [vmem:[%s3 + $0xc4] sm:$0xf]
    %v4054 = vld [vmem:[%s3 + $0xc8] sm:$0xf]
    %v4055 = vld [vmem:[%s3 + $0xcc] sm:$0xf]
    %v4056 = vld [vmem:[%s3 + $0xd0] sm:$0xf]
    %v4057 = vld [vmem:[%s3 + $0xd4] sm:$0xf]
    %v4058 = vld [vmem:[%s3 + $0xd8] sm:$0xf]
    %v4059 = vld [vmem:[%s3 + $0xdc] sm:$0xf]
    %v4060 = vld [vmem:[%s3 + $0xe0] sm:$0xf]
    %v4061 = vld [vmem:[%s3 + $0xe4] sm:$0xf]
    %v4062 = vld [vmem:[%s3 + $0xe8] sm:$0xf]
    %v4063 = vld [vmem:[%s3 + $0xec] sm:$0xf]
    %v4064 = vld [vmem:[%s3 + $0xf0] sm:$0xf]
    %v4065 = vld [vmem:[%s3 + $0xf4] sm:$0xf]
    %v4066 = vld [vmem:[%s3 + $0xf8] sm:$0xf]
    %v4067 = vld [vmem:[%s3 + $0xfc] sm:$0xf]
    %v4068 = vld [vmem:[%s4] sm:$0x1]
    %v4070 = vperm.slane %v4068, 0
    %v4136 = vunpack.c.l.b16 %v4004
    %v4137 = vunpack.c.l.b16 %v4005
    %v4138 = vunpack.c.l.b16 %v4006
    %v4139 = vunpack.c.l.b16 %v4007
    %v4140 = vunpack.c.l.b16 %v4008
    %v4141 = vunpack.c.l.b16 %v4009
    %v4142 = vunpack.c.l.b16 %v4010
    %v4143 = vunpack.c.l.b16 %v4011
    %v4144 = vunpack.c.l.b16 %v4012
    %v4145 = vunpack.c.l.b16 %v4013
    %v4146 = vunpack.c.l.b16 %v4014
    %v4147 = vunpack.c.l.b16 %v4015
    %v4148 = vunpack.c.l.b16 %v4016
    %v4149 = vunpack.c.l.b16 %v4017
    %v4150 = vunpack.c.l.b16 %v4018
    %v4151 = vunpack.c.l.b16 %v4019
    %v4152 = vunpack.c.l.b16 %v4020
    %v4153 = vunpack.c.l.b16 %v4021
    %v4154 = vunpack.c.l.b16 %v4022
    %v4155 = vunpack.c.l.b16 %v4023
    %v4156 = vunpack.c.l.b16 %v4024
    %v4157 = vunpack.c.l.b16 %v4025
    %v4158 = vunpack.c.l.b16 %v4026
    %v4159 = vunpack.c.l.b16 %v4027
    %v4160 = vunpack.c.l.b16 %v4028
    %v4161 = vunpack.c.l.b16 %v4029
    %v4162 = vunpack.c.l.b16 %v4030
    %v4163 = vunpack.c.l.b16 %v4031
    %v4164 = vunpack.c.l.b16 %v4032
    %v4165 = vunpack.c.l.b16 %v4033
    %v4166 = vunpack.c.l.b16 %v4034
    %v4167 = vunpack.c.l.b16 %v4035
    %v4168 = vunpack.c.l.b16 %v4036
    %v4169 = vunpack.c.l.b16 %v4037
    %v4170 = vunpack.c.l.b16 %v4038
    %v4171 = vunpack.c.l.b16 %v4039
    %v4172 = vunpack.c.l.b16 %v4040
    %v4173 = vunpack.c.l.b16 %v4041
    %v4174 = vunpack.c.l.b16 %v4042
    %v4175 = vunpack.c.l.b16 %v4043
    %v4176 = vunpack.c.l.b16 %v4044
    %v4177 = vunpack.c.l.b16 %v4045
    %v4178 = vunpack.c.l.b16 %v4046
    %v4179 = vunpack.c.l.b16 %v4047
    %v4180 = vunpack.c.l.b16 %v4048
    %v4181 = vunpack.c.l.b16 %v4049
    %v4182 = vunpack.c.l.b16 %v4050
    %v4183 = vunpack.c.l.b16 %v4051
    %v4184 = vunpack.c.l.b16 %v4052
    %v4185 = vunpack.c.l.b16 %v4053
    %v4186 = vunpack.c.l.b16 %v4054
    %v4187 = vunpack.c.l.b16 %v4055
    %v4188 = vunpack.c.l.b16 %v4056
    %v4189 = vunpack.c.l.b16 %v4057
    %v4190 = vunpack.c.l.b16 %v4058
    %v4191 = vunpack.c.l.b16 %v4059
    %v4192 = vunpack.c.l.b16 %v4060
    %v4193 = vunpack.c.l.b16 %v4061
    %v4194 = vunpack.c.l.b16 %v4062
    %v4195 = vunpack.c.l.b16 %v4063
    %v4196 = vunpack.c.l.b16 %v4064
    %v4197 = vunpack.c.l.b16 %v4065
    %v4198 = vunpack.c.l.b16 %v4066
    %v4199 = vunpack.c.l.b16 %v4067
    %v4200 = vpack.c.b16 %v4137, %v4136
    %v4201 = vpack.c.b16 %v4139, %v4138
    %v4202 = vpack.c.b16 %v4141, %v4140
    %v4203 = vpack.c.b16 %v4143, %v4142
    %v4204 = vpack.c.b16 %v4145, %v4144
    %v4205 = vpack.c.b16 %v4147, %v4146
    %v4206 = vpack.c.b16 %v4149, %v4148
    %v4207 = vpack.c.b16 %v4151, %v4150
    %v4208 = vpack.c.b16 %v4153, %v4152
    %v4209 = vpack.c.b16 %v4155, %v4154
    %v4210 = vpack.c.b16 %v4157, %v4156
    %v4211 = vpack.c.b16 %v4159, %v4158
    %v4212 = vpack.c.b16 %v4161, %v4160
    %v4213 = vpack.c.b16 %v4163, %v4162
    %v4214 = vpack.c.b16 %v4165, %v4164
    %v4215 = vpack.c.b16 %v4167, %v4166
    %v4216 = vpack.c.b16 %v4169, %v4168
    %v4217 = vpack.c.b16 %v4171, %v4170
    %v4218 = vpack.c.b16 %v4173, %v4172
    %v4219 = vpack.c.b16 %v4175, %v4174
    %v4220 = vpack.c.b16 %v4177, %v4176
    %v4221 = vpack.c.b16 %v4179, %v4178
    %v4222 = vpack.c.b16 %v4181, %v4180
    %v4223 = vpack.c.b16 %v4183, %v4182
    %v4224 = vpack.c.b16 %v4185, %v4184
    %v4225 = vpack.c.b16 %v4187, %v4186
    %v4226 = vpack.c.b16 %v4189, %v4188
    %v4227 = vpack.c.b16 %v4191, %v4190
    %v4228 = vpack.c.b16 %v4193, %v4192
    %v4229 = vpack.c.b16 %v4195, %v4194
    %v4230 = vpack.c.b16 %v4197, %v4196
    %v4231 = vpack.c.b16 %v4199, %v4198
    %4264 = vmatpush.bf16.msra.mxu0 %v4207
    %4265 = vmatpush.bf16.msra.mxu0 %v4206
    %4266 = vmatpush.bf16.msra.mxu0 %v4205
    %4267 = vmatpush.bf16.msra.mxu0 %v4204
    %4268 = vmatpush.bf16.msra.mxu0 %v4203
    %4269 = vmatpush.bf16.msra.mxu0 %v4202
    %4270 = vmatpush.bf16.msra.mxu0 %v4201
    %4271 = vmatpush.bf16.msra.mxu0 %v4200
    %4272 = vmatmul.bf16.gmra.mxu0 %v4000
    %v4273 = vpop.f32.mrf.mxu0
    %v4274 = vadd.f32 %v4070, %v4273
    %v4275 = vpop.f32.mrf.mxu0
    %4276 = vdwg.mxu0
    %4277 = vmatpush.bf16.msra.mxu0 %v4215
    %4278 = vmatpush.bf16.msra.mxu0 %v4214
    %4279 = vmatpush.bf16.msra.mxu0 %v4213
    %4280 = vmatpush.bf16.msra.mxu0 %v4212
    %4281 = vmatpush.bf16.msra.mxu0 %v4211
    %4282 = vmatpush.bf16.msra.mxu0 %v4210
    %4283 = vmatpush.bf16.msra.mxu0 %v4209
    %4284 = vmatpush.bf16.msra.mxu0 %v4208
    %4285 = vmatmul.bf16.gmra.mxu0 %v4001
    %v4286 = vpop.f32.mrf.mxu0
    %v4287 = vadd.f32 %v4274, %v4286
    %v4288 = vpop.f32.mrf.mxu0
    %4289 = vdwg.mxu0
    %4290 = vmatpush.bf16.msra.mxu0 %v4223
    %4291 = vmatpush.bf16.msra.mxu0 %v4222
    %4292 = vmatpush.bf16.msra.mxu0 %v4221
    %4293 = vmatpush.bf16.msra.mxu0 %v4220
    %4294 = vmatpush.bf16.msra.mxu0 %v4219
    %4295 = vmatpush.bf16.msra.mxu0 %v4218
    %4296 = vmatpush.bf16.msra.mxu0 %v4217
    %4297 = vmatpush.bf16.msra.mxu0 %v4216
    %4298 = vmatmul.bf16.gmra.mxu0 %v4002
    %v4299 = vpop.f32.mrf.mxu0
    %v4300 = vadd.f32 %v4287, %v4299
    %v4301 = vpop.f32.mrf.mxu0
    %4302 = vdwg.mxu0
    %4303 = vmatpush.bf16.msra.mxu0 %v4231
    %4304 = vmatpush.bf16.msra.mxu0 %v4230
    %4305 = vmatpush.bf16.msra.mxu0 %v4229
    %4306 = vmatpush.bf16.msra.mxu0 %v4228
    %4307 = vmatpush.bf16.msra.mxu0 %v4227
    %4308 = vmatpush.bf16.msra.mxu0 %v4226
    %4309 = vmatpush.bf16.msra.mxu0 %v4225
    %4310 = vmatpush.bf16.msra.mxu0 %v4224
    %4311 = vmatmul.bf16.gmra.mxu0 %v4003
    %v4312 = vpop.f32.mrf.mxu0
    %v4313 = vadd.f32 %v4300, %v4312
    %v4314 = vpop.f32.mrf.mxu0
    %4315 = vdwg.mxu0
    %4316 = vst [vmem:[#allocation2] sm:$0x3] %v4313
    // Predicated region
    $region22: #{lenet_forward.5} parent=1 // pred_check
      _
    $region23: #{lenet_forward.5} parent=1 // pred_check_branch
      %4318 = sbr.rel (0) target = $region25
    $region24: #{lenet_forward.5} parent=1 // pred_region
      %4320 = vsyncadd [#allocation3], 0
      %s4322 = sshll.u32 [#allocation2], 4
      %s4323 = int_to_ptr.vmem [resolvable:$true] %s4322
      %s4324 = sshll.u32 %s5, 4
      %s4325 = int_to_ptr.hbm [resolvable:$true] %s4324
      %4327 = dma.vmem_to_hbm [thread:$0]  %s4323, 32, %s4325, [#allocation3]
    $region25: #{lenet_forward.5} parent=1 // pred_fallthru
      _
    // Predicated region
    $region26: #{lenet_forward.5} parent=1 // pred_check
      _
    $region27: #{lenet_forward.5} parent=1 // pred_check_branch
      %4329 = sbr.rel (0) target = $region29
    $region28: #{lenet_forward.5} parent=1 // pred_region
      %4331 = dma.done [#allocation3], 32
    $region29: #{lenet_forward.5} parent=1 // pred_fallthru
      _
    %4332 = vsyncpa [#allocation3], 1

</llo_original>
